<compile_context>
chip_gen: v6e
topology: v6e:2x2x1
jax: 0.10.0
libtpu: 0.0.40
codegen_flags: <defaults>
</compile_context>

<pallas_src>
import functools

import jax
import jax.numpy as jnp
from jax.experimental import pallas as pl
from jax.experimental.pallas import tpu as pltpu

EPS = 1e-5                     # nn.BatchNorm2d default eps
TILE_M = 512                   # rows per grid step (good for v5e/v6e/v7x)
VMEM_LIMIT = 40 * 1024 * 1024  # leaves headroom on v7x's 64 MiB physical VMEM


def _round_up(x, m):
    return -(-x // m) * m


def _halo_pad(halo, tile_m):
    """Smallest power-of-two >= halo that divides tile_m."""
    hp = 8
    while hp < halo:
        hp *= 2
    assert hp <= tile_m and tile_m % hp == 0, \
        "spatial width too large for this TILE_M"
    return hp


# ---------------------------------------------------------------------------
# Pallas kernel 1: direct conv (in-kernel taps) + per-tile BN partial stats
# ---------------------------------------------------------------------------
def _conv_stats_kernel(op_meta, *refs):
    """op_meta: tuple of (shifts, has_halo) per conv op.

    refs layout:
      [mask] + per-op inputs (main, [halo], weight) + raws (n_ops) + stats (n_ops)
    """
    pos = 0
    mask = refs[pos][...]                       # (tile_m, 1) f32, 1=valid row
    pos += 1

    per_op_in = []
    for _, has_halo in op_meta:
        n = 3 if has_halo else 2
        per_op_in.append(refs[pos:pos + n])
        pos += n

    n_ops = len(op_meta)
    raw_refs = refs[pos: pos + n_ops]
    stat_refs = refs[pos + n_ops: pos + 2 * n_ops]

    for (shifts, has_halo), inr, raw_ref, stat_ref in zip(
            op_meta, per_op_in, raw_refs, stat_refs):
        if has_halo:
            main_ref, halo_ref, w_ref = inr
            # window = tile rows followed by the halo rows (contiguous in HBM).
            window = jnp.concatenate([main_ref[...], halo_ref[...]], axis=0)
        else:
            main_ref, w_ref = inr
            window = main_ref[...]
        tm = main_ref.shape[0]
        kin = w_ref.shape[0] // len(shifts)     # input channels per tap

        # 9 accumulated MXU matmuls over shifted row-slices (f32 accumulation).
        acc = None
        for t, s in enumerate(shifts):
            tap = window[s:s + tm, :]
            wt = w_ref[t * kin:(t + 1) * kin, :]
            d = jnp.dot(tap, wt, preferred_element_type=jnp.float32)
            acc = d if acc is None else acc + d

        # BN partial statistics from the f32 accumulator, masked to valid rows.
        ssum = jnp.sum(acc * mask, axis=0, keepdims=True)
        ssq = jnp.sum(acc * acc * mask, axis=0, keepdims=True)
        stat_ref[...] = jnp.concatenate([ssum, ssq], axis=0)[None]

        # Raw conv output written back in bf16 (halves pass-1/pass-2 traffic).
        raw_ref[...] = acc.astype(raw_ref.dtype)


def conv_stats_call(ops, mask_rows, tile_m=TILE_M):
    """ops[i]: dict(x=(rows[,+halo], K) bf16, w=(K_w, c_pad) bf16,
                    shifts=tuple[int], halo_pad=int|None)."""
    rows_m = mask_rows.shape[0]
    n_tiles = rows_m // tile_m
    c_pad = ops[0]["w"].shape[1]
    n_ops = len(ops)

    args = [mask_rows]
    in_specs = [pl.BlockSpec((tile_m, 1), lambda i: (i, 0))]
    op_meta = []
    for op in ops:
        shifts = op["shifts"]
        has_halo = max(shifts) > 0
        x, w = op["x"], op["w"]
        kdim = x.shape[1]
        args.append(x)
        in_specs.append(pl.BlockSpec((tile_m, kdim), lambda i: (i, 0)))
        if has_halo:
            hp = op["halo_pad"]
            ratio = tile_m // hp
            # Halo block = the `hp` rows immediately after the main tile,
            # fetched from the same HBM array via a second BlockSpec.
            args.append(x)
            in_specs.append(
                pl.BlockSpec((hp, kdim), lambda i, r=ratio: ((i + 1) * r, 0)))
        args.append(w)
        in_specs.append(pl.BlockSpec(w.shape, lambda i: (0, 0)))
        op_meta.append((shifts, has_halo))

    out_shape = ([jax.ShapeDtypeStruct((rows_m, c_pad), jnp.bfloat16)] * n_ops
                 + [jax.ShapeDtypeStruct((n_tiles, 2, c_pad), jnp.float32)] * n_ops)
    out_specs = ([pl.BlockSpec((tile_m, c_pad), lambda i: (i, 0))] * n_ops
                 + [pl.BlockSpec((1, 2, c_pad), lambda i: (i, 0, 0))] * n_ops)

    outs = pl.pallas_call(
        functools.partial(_conv_stats_kernel, tuple(op_meta)),
        grid=(n_tiles,),
        in_specs=in_specs,
        out_specs=out_specs,
        out_shape=out_shape,
        compiler_params=pltpu.CompilerParams(
            dimension_semantics=("parallel",),
            vmem_limit_bytes=VMEM_LIMIT),
    )(*args)
    return tuple(outs[:n_ops]), tuple(outs[n_ops:])


# ---------------------------------------------------------------------------
# Pallas kernel 2: folded-BN affine (+ optional residual) (+ ReLU)
# ---------------------------------------------------------------------------
def _bn_act_kernel(n_affine, has_residual, relu, *refs):
    y = None
    for i in range(n_affine):
        raw = refs[3 * i][...].astype(jnp.float32)      # bf16 raw -> f32 math
        sc = refs[3 * i + 1][...]
        sh = refs[3 * i + 2][...]
        t = raw * sc + sh
        y = t if y is None else y + t
    idx = 3 * n_affine
    if has_residual:
        y = y + refs[idx][...].astype(jnp.float32)
        idx += 1
    if relu:
        y = jnp.maximum(y, 0.0)
    o_ref = refs[idx]
    o_ref[...] = y.astype(o_ref.dtype)


def bn_act_call(raws, scale_shifts, residual=None, relu=True,
                out_dtype=jnp.float32, tile_m=TILE_M):
    rows_m, c_pad = raws[0].shape
    n_tiles = rows_m // tile_m

    args, in_specs = [], []
    for raw, (sc, sh) in zip(raws, scale_shifts):
        args += [raw, sc, sh]
        in_specs += [pl.BlockSpec((tile_m, c_pad), lambda i: (i, 0)),
                     pl.BlockSpec((1, c_pad), lambda i: (0, 0)),
                     pl.BlockSpec((1, c_pad), lambda i: (0, 0))]
    if residual is not None:
        args.append(residual)
        in_specs.append(pl.BlockSpec((tile_m, c_pad), lambda i: (i, 0)))

    return pl.pallas_call(
        functools.partial(_bn_act_kernel, len(raws), residual is not None, relu),
        grid=(n_tiles,),
        in_specs=in_specs,
        out_specs=pl.BlockSpec((tile_m, c_pad), lambda i: (i, 0)),
        out_shape=jax.ShapeDtypeStruct((rows_m, c_pad), out_dtype),
        compiler_params=pltpu.CompilerParams(
            dimension_semantics=("parallel",),
            vmem_limit_bytes=VMEM_LIMIT),
    )(*args)


# ---------------------------------------------------------------------------
# Host-side glue
# ---------------------------------------------------------------------------
def _pad_rows(a, rows):
    return jnp.pad(a, ((0, rows - a.shape[0]), (0, 0)))


def _pad_cols(a, cols):
    return jnp.pad(a, ((0, 0), (0, cols - a.shape[1])))


def _pad1d(v, n):
    return jnp.pad(v.astype(jnp.float32), (0, n - v.shape[0]))


def _oihw_to_matrix(w_oihw):
    o, i, kh, kw = w_oihw.shape
    return jnp.transpose(w_oihw, (2, 3, 1, 0)).reshape(kh * kw * i, o)


def bn_fold(stats_tiles, gamma_pad, beta_pad, m_real):
    """Reduce per-tile (sum, sumsq) partials, fold BN into scale/shift (f32).
    # TODO(synk): fold in f64 if E[x^2]-E[x]^2 cancellation is observed at
    # real batch*spatial sizes."""
    s = jnp.sum(stats_tiles, axis=0)                 # (2, c_pad)
    mean = s[0] / m_real
    var = s[1] / m_real - mean * mean                # biased (training-mode) var
    scale = gamma_pad * jax.lax.rsqrt(var + EPS)
    shift = beta_pad - mean * scale
    return scale.reshape(1, -1), shift.reshape(1, -1)


def _prep_conv3x3_s1(x_nhwc, tile_m):
    """Stride-1 3x3 conv prep: flat conv-padded rows + in-kernel tap shifts.

    The kernel computes one output row per flat padded-input row ("extended"
    layout over (H+2, W+2)); rows with hi>=H or wi>=W are garbage and are
    masked out of the BN statistics and discarded on extraction."""
    N, H, W, C = x_nhwc.shape
    Hp, Wp = H + 2, W + 2
    m_ext = N * Hp * Wp
    n_tiles = pl.cdiv(m_ext, tile_m)
    rows_m = n_tiles * tile_m
    halo = 2 * Wp + 2                                # max tap shift
    hp = _halo_pad(halo, tile_m)

    xp = jnp.pad(x_nhwc, ((0, 0), (1, 1), (1, 1), (0, 0))).reshape(m_ext, C)
    xp = _pad_rows(xp, rows_m + hp).astype(jnp.bfloat16)
    shifts = tuple(kh * Wp + kw for kh in range(3) for kw in range(3))

    r = jnp.arange(rows_m)
    rem = r % (Hp * Wp)
    valid = (r < m_ext) & ((rem // Wp) < H) & ((rem % Wp) < W)
    mask = valid.astype(jnp.float32).reshape(rows_m, 1)
    meta = dict(rows_m=rows_m, m_ext=m_ext, N=N, Hp=Hp, Wp=Wp, Ho=H, Wo=W)
    return xp, shifts, hp, mask, meta


def _prep_conv3x3_strided(x_nhwc, stride, tile_m):
    """Host im2col, only used for the stride>1 conv1 (taps ~ 9/stride^2 x)."""
    N, H, W, C = x_nhwc.shape
    Ho = (H + 2 - 3) // stride + 1
    Wo = (W + 2 - 3) // stride + 1
    xp = jnp.pad(x_nhwc, ((0, 0), (1, 1), (1, 1), (0, 0)))
    taps = []
    for kh in range(3):
        for kw in range(3):
            sl = jax.lax.slice(
                xp, (0, kh, kw, 0),
                (N, kh + stride * (Ho - 1) + 1, kw + stride * (Wo - 1) + 1, C),
                (1, stride, stride, 1))
            taps.append(sl.reshape(N * Ho * Wo, C))
    taps = jnp.concatenate(taps, axis=1)                     # (M, 9C)
    M = N * Ho * Wo
    rows_m = pl.cdiv(M, tile_m) * tile_m
    taps = _pad_rows(taps, rows_m).astype(jnp.bfloat16)
    mask = (jnp.arange(rows_m) < M).astype(jnp.float32).reshape(rows_m, 1)
    meta = dict(rows_m=rows_m, m_ext=M, N=N, Hp=Ho, Wp=Wo, Ho=Ho, Wo=Wo)
    return taps, mask, meta


def _extract_valid(flat_rows, meta, channels):
    y = flat_rows[:meta["m_ext"]].reshape(meta["N"], meta["Hp"], meta["Wp"], -1)
    return y[:, :meta["Ho"], :meta["Wo"], :channels]


def basic_block_forward(x_nchw, params, stride=1, downsample=False,
                        tile_m=TILE_M, out_dtype=jnp.float32):
    x = jnp.transpose(x_nchw, (0, 2, 3, 1)).astype(jnp.float32)   # NHWC f32
    N, H, W, Cin = x.shape
    planes = params["w1_oihw"].shape[0]
    c_pad = _round_up(planes, 128)
    Ho = (H + 2 - 3) // stride + 1
    Wo = (W + 2 - 3) // stride + 1
    M = N * Ho * Wo                                   # true #output positions

    w1 = _pad_cols(_oihw_to_matrix(params["w1_oihw"]), c_pad).astype(jnp.bfloat16)
    w2 = _pad_cols(_oihw_to_matrix(params["w2_oihw"]), c_pad).astype(jnp.bfloat16)
    g1, b1 = _pad1d(params["g1"], c_pad), _pad1d(params["b1"], c_pad)
    g2, b2 = _pad1d(params["g2"], c_pad), _pad1d(params["b2"], c_pad)

    # ---- conv1 (3x3, stride) + bn1 + relu ---------------------------------
    if stride == 1:
        x1_flat, shifts1, hp1, mask1, meta1 = _prep_conv3x3_s1(x, tile_m)
        op1 = dict(x=x1_flat, w=w1, shifts=shifts1, halo_pad=hp1)
    else:
        taps1, mask1, meta1 = _prep_conv3x3_strided(x, stride, tile_m)
        op1 = dict(x=taps1, w=w1, shifts=(0,), halo_pad=None)
    (raw1,), (st1,) = conv_stats_call([op1], mask1, tile_m)
    sc1, sh1 = bn_fold(st1, g1, b1, M)
    y1_rows = bn_act_call([raw1], [(sc1, sh1)], relu=True,
                          out_dtype=jnp.bfloat16, tile_m=tile_m)
    y1 = _extract_valid(y1_rows, meta1, planes)       # (N, Ho, Wo, planes) bf16

    # ---- conv2 (3x3, stride 1) (+ fused 1x1 downsample) + bn2 + add + relu -
    x2_flat, shifts2, hp2, mask2, meta2 = _prep_conv3x3_s1(y1, tile_m)
    op2 = dict(x=x2_flat, w=w2, shifts=shifts2, halo_pad=hp2)
    rows2 = meta2["rows_m"]

    if downsample:
        wd = _pad_cols(_oihw_to_matrix(params["wd_oihw"]), c_pad).astype(jnp.bfloat16)
        gd, bd = _pad1d(params["gd"], c_pad), _pad1d(params["bd"], c_pad)
        # 1x1 stride-s conv input, laid out in conv2's extended (Ho+2, Wo+2)
        # row indexing so the residual add in pass 2 aligns row-for-row.
        xs = x[:, ::stride, ::stride, :]
        xs = jnp.pad(xs, ((0, 0), (0, 2), (0, 2), (0, 0))).reshape(-1, Cin)
        xs = _pad_rows(xs, rows2).astype(jnp.bfloat16)
        opd = dict(x=xs, w=wd, shifts=(0,), halo_pad=None)

        (raw2, rawd), (st2, std_) = conv_stats_call([op2, opd], mask2, tile_m)
        sc2, sh2 = bn_fold(st2, g2, b2, M)
        scd, shd = bn_fold(std_, gd, bd, M)
        out_rows = bn_act_call([raw2, rawd], [(sc2, sh2), (scd, shd)],
                               relu=True, out_dtype=out_dtype, tile_m=tile_m)
    else:
        assert stride == 1 and Cin == planes, \
            "identity path requires stride==1 and inplanes==planes"
        # Identity residual in conv2's extended layout (bf16 stream; the extra
        # rounding is far inside the block's bf16-MXU tolerance).
        res = jnp.pad(x, ((0, 0), (0, 2), (0, 2), (0, 0))).reshape(-1, Cin)
        res = _pad_rows(_pad_cols(res, c_pad), rows2).astype(jnp.bfloat16)
        (raw2,), (st2,) = conv_stats_call([op2], mask2, tile_m)
        sc2, sh2 = bn_fold(st2, g2, b2, M)
        out_rows = bn_act_call([raw2], [(sc2, sh2)], residual=res,
                               relu=True, out_dtype=out_dtype, tile_m=tile_m)

    out = _extract_valid(out_rows, meta2, planes)     # (N, Ho, Wo, planes)
    return jnp.transpose(out, (0, 3, 1, 2)).astype(out_dtype)    # NCHW


# ---------------------------------------------------------------------------
# Deterministic parameter init (shapes per BasicBlock.__init__)
# ---------------------------------------------------------------------------
def init_basic_block_params(key, inplanes, planes, downsample):
    ks = jax.random.split(key, 10)
    p = {
        "w1_oihw": 0.1 * jax.random.normal(ks[0], (planes, inplanes, 3, 3), jnp.float32),
        "w2_oihw": 0.1 * jax.random.normal(ks[1], (planes, planes, 3, 3), jnp.float32),
        "g1": 1.0 + 0.1 * jax.random.normal(ks[2], (planes,), jnp.float32),
        "b1": 0.1 * jax.random.normal(ks[3], (planes,), jnp.float32),
        "g2": 1.0 + 0.1 * jax.random.normal(ks[4], (planes,), jnp.float32),
        "b2": 0.1 * jax.random.normal(ks[5], (planes,), jnp.float32),
    }
    if downsample:
        p["wd_oihw"] = 0.1 * jax.random.normal(ks[6], (planes, inplanes, 1, 1), jnp.float32)
        p["gd"] = 1.0 + 0.1 * jax.random.normal(ks[7], (planes,), jnp.float32)
        p["bd"] = 0.1 * jax.random.normal(ks[8], (planes,), jnp.float32)
    return p


# ---------------------------------------------------------------------------
# Pure-JAX reference (lax.conv) for correctness checking
# ---------------------------------------------------------------------------
def basic_block_ref(x_nchw, params, stride=1, downsample=False):
    def conv(x, w, s, pad):
        return jax.lax.conv_general_dilated(
            x, w, (s, s), pad, dimension_numbers=("NCHW", "OIHW", "NCHW"))

    def bn(y, g, b):
        mean = jnp.mean(y, axis=(0, 2, 3), keepdims=True)
        var = jnp.mean((y - mean) ** 2, axis=(0, 2, 3), keepdims=True)
        yn = (y - mean) * jax.lax.rsqrt(var + EPS)
        return yn * g.reshape(1, -1, 1, 1) + b.reshape(1, -1, 1, 1)

    out = conv(x_nchw, params["w1_oihw"], stride, ((1, 1), (1, 1)))
    out = jax.nn.relu(bn(out, params["g1"], params["b1"]))
    out = bn(conv(out, params["w2_oihw"], 1, ((1, 1), (1, 1))),
             params["g2"], params["b2"])
    if downsample:
        identity = bn(conv(x_nchw, params["wd_oihw"], stride, ((0, 0), (0, 0))),
                      params["gd"], params["bd"])
    else:
        identity = x_nchw
    return jax.nn.relu(out + identity)


if __name__ == "__main__":
    key = jax.random.PRNGKey(0)
    kx, kp1, kp2 = jax.random.split(key, 3)

    N, C, H, W = 2, 8, 16, 16
    x = jax.random.normal(kx, (N, C, H, W), jnp.float32)

    # bf16 MXU operands / bf16 raw & residual streams -> bf16-aware tolerance.
    TOL = dict(atol=5e-2, rtol=5e-2)

    # Config A: stride=1, no downsample (inplanes == planes)
    params_a = init_basic_block_params(kp1, inplanes=C, planes=C, downsample=False)
    out_a = jax.block_until_ready(
        basic_block_forward(x, params_a, stride=1, downsample=False))
    ref_a = basic_block_ref(x, params_a, stride=1, downsample=False)
    assert out_a.shape == (N, C, H, W)
    assert jnp.allclose(out_a, ref_a, **TOL), \
        float(jnp.max(jnp.abs(out_a - ref_a)))

    # Config B: stride=2 with 1x1 downsample (inplanes != planes)
    planes = 16
    params_b = init_basic_block_params(kp2, inplanes=C, planes=planes, downsample=True)
    out_b = jax.block_until_ready(
        basic_block_forward(x, params_b, stride=2, downsample=True))
    ref_b = basic_block_ref(x, params_b, stride=2, downsample=True)
    assert out_b.shape == (N, planes, H // 2, W // 2)
    assert jnp.allclose(out_b, ref_b, **TOL), \
        float(jnp.max(jnp.abs(out_b - ref_b)))

    print("KERNEL_OK")
</pallas_src>

<mosaic_0001>
module attributes {stable_mosaic.version = 11 : i64} {
  func.func @_conv_stats_kernel(%arg0: i32, %arg1: memref<512x1xf32, #tpu.memory_space<vmem>>, %arg2: memref<512x8xbf16, #tpu.memory_space<vmem>>, %arg3: memref<64x8xbf16, #tpu.memory_space<vmem>>, %arg4: memref<72x128xbf16, #tpu.memory_space<vmem>>, %arg5: memref<512x128xbf16, #tpu.memory_space<vmem>>, %arg6: memref<1x2x128xf32, #tpu.memory_space<vmem>>) attributes {dimension_semantics = [#tpu.dimension_semantics<parallel>], iteration_bounds = array<i64: 2>, scalar_prefetch = 0 : i64, scratch_operands = 0 : i64, tpu.core_type = #tpu.core_type<tc>, window_params = [{transform_indices = @transform_0, window_bounds = array<i64: 512, 1>}, {transform_indices = @transform_1, window_bounds = array<i64: 512, 8>}, {transform_indices = @transform_2, window_bounds = array<i64: 64, 8>}, {pipeline_mode = #tpu.pipeline_mode<synchronous>, transform_indices = @transform_3, window_bounds = array<i64: 72, 128>}, {transform_indices = @transform_4, window_bounds = array<i64: 512, 128>}, {transform_indices = @transform_5, window_bounds = array<i64: 1, 2, 128>}]} {
    %c0 = arith.constant 0 : index
    %c0_0 = arith.constant 0 : index
    %0 = vector.load %arg1[%c0, %c0_0] : memref<512x1xf32, #tpu.memory_space<vmem>>, vector<512x1xf32>
    %c0_1 = arith.constant 0 : index
    %c0_2 = arith.constant 0 : index
    %1 = vector.load %arg2[%c0_1, %c0_2] : memref<512x8xbf16, #tpu.memory_space<vmem>>, vector<512x8xbf16>
    %c0_3 = arith.constant 0 : index
    %c0_4 = arith.constant 0 : index
    %2 = vector.load %arg3[%c0_3, %c0_4] : memref<64x8xbf16, #tpu.memory_space<vmem>>, vector<64x8xbf16>
    %3 = tpu.concatenate %1, %2 in 0 : vector<512x8xbf16>, vector<64x8xbf16> -> vector<576x8xbf16>
    %4 = vector.extract_strided_slice %3 {offsets = [0, 0], sizes = [512, 8], strides = [1, 1]} : vector<576x8xbf16> to vector<512x8xbf16>
    %c0_5 = arith.constant 0 : index
    %c0_6 = arith.constant 0 : index
    %5 = vector.load %arg4[%c0_5, %c0_6] : memref<72x128xbf16, #tpu.memory_space<vmem>>, vector<8x128xbf16>
    %cst = arith.constant dense<0.000000e+00> : vector<512x128xf32>
    %6 = tpu.matmul %4, %5, %cst {dimension_numbers = #tpu.dot_dimension_numbers<[1], [0], [0], [1], [0, 0, 1, 1], [], []>} : vector<512x8xbf16>, vector<8x128xbf16>, vector<512x128xf32> -> vector<512x128xf32>
    %7 = vector.extract_strided_slice %3 {offsets = [1, 0], sizes = [512, 8], strides = [1, 1]} : vector<576x8xbf16> to vector<512x8xbf16>
    %c8 = arith.constant 8 : index
    %c0_7 = arith.constant 0 : index
    %8 = vector.load %arg4[%c8, %c0_7] : memref<72x128xbf16, #tpu.memory_space<vmem>>, vector<8x128xbf16>
    %cst_8 = arith.constant dense<0.000000e+00> : vector<512x128xf32>
    %9 = tpu.matmul %7, %8, %cst_8 {dimension_numbers = #tpu.dot_dimension_numbers<[1], [0], [0], [1], [0, 0, 1, 1], [], []>} : vector<512x8xbf16>, vector<8x128xbf16>, vector<512x128xf32> -> vector<512x128xf32>
    %10 = arith.addf %6, %9 : vector<512x128xf32>
    %11 = vector.extract_strided_slice %3 {offsets = [2, 0], sizes = [512, 8], strides = [1, 1]} : vector<576x8xbf16> to vector<512x8xbf16>
    %c16 = arith.constant 16 : index
    %c0_9 = arith.constant 0 : index
    %12 = vector.load %arg4[%c16, %c0_9] : memref<72x128xbf16, #tpu.memory_space<vmem>>, vector<8x128xbf16>
    %cst_10 = arith.constant dense<0.000000e+00> : vector<512x128xf32>
    %13 = tpu.matmul %11, %12, %cst_10 {dimension_numbers = #tpu.dot_dimension_numbers<[1], [0], [0], [1], [0, 0, 1, 1], [], []>} : vector<512x8xbf16>, vector<8x128xbf16>, vector<512x128xf32> -> vector<512x128xf32>
    %14 = arith.addf %10, %13 : vector<512x128xf32>
    %15 = vector.extract_strided_slice %3 {offsets = [18, 0], sizes = [512, 8], strides = [1, 1]} : vector<576x8xbf16> to vector<512x8xbf16>
    %c24 = arith.constant 24 : index
    %c0_11 = arith.constant 0 : index
    %16 = vector.load %arg4[%c24, %c0_11] : memref<72x128xbf16, #tpu.memory_space<vmem>>, vector<8x128xbf16>
    %cst_12 = arith.constant dense<0.000000e+00> : vector<512x128xf32>
    %17 = tpu.matmul %15, %16, %cst_12 {dimension_numbers = #tpu.dot_dimension_numbers<[1], [0], [0], [1], [0, 0, 1, 1], [], []>} : vector<512x8xbf16>, vector<8x128xbf16>, vector<512x128xf32> -> vector<512x128xf32>
    %18 = arith.addf %14, %17 : vector<512x128xf32>
    %19 = vector.extract_strided_slice %3 {offsets = [19, 0], sizes = [512, 8], strides = [1, 1]} : vector<576x8xbf16> to vector<512x8xbf16>
    %c32 = arith.constant 32 : index
    %c0_13 = arith.constant 0 : index
    %20 = vector.load %arg4[%c32, %c0_13] : memref<72x128xbf16, #tpu.memory_space<vmem>>, vector<8x128xbf16>
    %cst_14 = arith.constant dense<0.000000e+00> : vector<512x128xf32>
    %21 = tpu.matmul %19, %20, %cst_14 {dimension_numbers = #tpu.dot_dimension_numbers<[1], [0], [0], [1], [0, 0, 1, 1], [], []>} : vector<512x8xbf16>, vector<8x128xbf16>, vector<512x128xf32> -> vector<512x128xf32>
    %22 = arith.addf %18, %21 : vector<512x128xf32>
    %23 = vector.extract_strided_slice %3 {offsets = [20, 0], sizes = [512, 8], strides = [1, 1]} : vector<576x8xbf16> to vector<512x8xbf16>
    %c40 = arith.constant 40 : index
    %c0_15 = arith.constant 0 : index
    %24 = vector.load %arg4[%c40, %c0_15] : memref<72x128xbf16, #tpu.memory_space<vmem>>, vector<8x128xbf16>
    %cst_16 = arith.constant dense<0.000000e+00> : vector<512x128xf32>
    %25 = tpu.matmul %23, %24, %cst_16 {dimension_numbers = #tpu.dot_dimension_numbers<[1], [0], [0], [1], [0, 0, 1, 1], [], []>} : vector<512x8xbf16>, vector<8x128xbf16>, vector<512x128xf32> -> vector<512x128xf32>
    %26 = arith.addf %22, %25 : vector<512x128xf32>
    %27 = vector.extract_strided_slice %3 {offsets = [36, 0], sizes = [512, 8], strides = [1, 1]} : vector<576x8xbf16> to vector<512x8xbf16>
    %c48 = arith.constant 48 : index
    %c0_17 = arith.constant 0 : index
    %28 = vector.load %arg4[%c48, %c0_17] : memref<72x128xbf16, #tpu.memory_space<vmem>>, vector<8x128xbf16>
    %cst_18 = arith.constant dense<0.000000e+00> : vector<512x128xf32>
    %29 = tpu.matmul %27, %28, %cst_18 {dimension_numbers = #tpu.dot_dimension_numbers<[1], [0], [0], [1], [0, 0, 1, 1], [], []>} : vector<512x8xbf16>, vector<8x128xbf16>, vector<512x128xf32> -> vector<512x128xf32>
    %30 = arith.addf %26, %29 : vector<512x128xf32>
    %31 = vector.extract_strided_slice %3 {offsets = [37, 0], sizes = [512, 8], strides = [1, 1]} : vector<576x8xbf16> to vector<512x8xbf16>
    %c56 = arith.constant 56 : index
    %c0_19 = arith.constant 0 : index
    %32 = vector.load %arg4[%c56, %c0_19] : memref<72x128xbf16, #tpu.memory_space<vmem>>, vector<8x128xbf16>
    %cst_20 = arith.constant dense<0.000000e+00> : vector<512x128xf32>
    %33 = tpu.matmul %31, %32, %cst_20 {dimension_numbers = #tpu.dot_dimension_numbers<[1], [0], [0], [1], [0, 0, 1, 1], [], []>} : vector<512x8xbf16>, vector<8x128xbf16>, vector<512x128xf32> -> vector<512x128xf32>
    %34 = arith.addf %30, %33 : vector<512x128xf32>
    %35 = vector.extract_strided_slice %3 {offsets = [38, 0], sizes = [512, 8], strides = [1, 1]} : vector<576x8xbf16> to vector<512x8xbf16>
    %c64 = arith.constant 64 : index
    %c0_21 = arith.constant 0 : index
    %36 = vector.load %arg4[%c64, %c0_21] : memref<72x128xbf16, #tpu.memory_space<vmem>>, vector<8x128xbf16>
    %cst_22 = arith.constant dense<0.000000e+00> : vector<512x128xf32>
    %37 = tpu.matmul %35, %36, %cst_22 {dimension_numbers = #tpu.dot_dimension_numbers<[1], [0], [0], [1], [0, 0, 1, 1], [], []>} : vector<512x8xbf16>, vector<8x128xbf16>, vector<512x128xf32> -> vector<512x128xf32>
    %38 = arith.addf %34, %37 : vector<512x128xf32>
    %39 = vector.broadcast %0 : vector<512x1xf32> to vector<512x128xf32>
    %40 = arith.mulf %38, %39 : vector<512x128xf32>
    %cst_23 = arith.constant dense<0.000000e+00> : vector<128xf32>
    %41 = vector.multi_reduction <add>, %40, %cst_23 [0] : vector<512x128xf32> to vector<128xf32>
    %42 = vector.shape_cast %41 : vector<128xf32> to vector<1x128xf32>
    %43 = arith.mulf %38, %38 : vector<512x128xf32>
    %44 = vector.broadcast %0 : vector<512x1xf32> to vector<512x128xf32>
    %45 = arith.mulf %43, %44 : vector<512x128xf32>
    %cst_24 = arith.constant dense<0.000000e+00> : vector<128xf32>
    %46 = vector.multi_reduction <add>, %45, %cst_24 [0] : vector<512x128xf32> to vector<128xf32>
    %47 = vector.shape_cast %46 : vector<128xf32> to vector<1x128xf32>
    %48 = tpu.concatenate %42, %47 in 0 : vector<1x128xf32>, vector<1x128xf32> -> vector<2x128xf32>
    %49 = vector.shape_cast %48 : vector<2x128xf32> to vector<1x2x128xf32>
    %c0_25 = arith.constant 0 : index
    %c0_26 = arith.constant 0 : index
    %c0_27 = arith.constant 0 : index
    %50 = vector.load %arg6[%c0_25, %c0_26, %c0_27] : memref<1x2x128xf32, #tpu.memory_space<vmem>>, vector<1x2x128xf32>
    tpu.vector_store %arg6[%c0_25, %c0_26, %c0_27], %49 {strides = array<i32>} : memref<1x2x128xf32, #tpu.memory_space<vmem>>, vector<1x2x128xf32>,
    %51 = arith.truncf %38 : vector<512x128xf32> to vector<512x128xbf16>
    %c0_28 = arith.constant 0 : index
    %c0_29 = arith.constant 0 : index
    %52 = vector.load %arg5[%c0_28, %c0_29] : memref<512x128xbf16, #tpu.memory_space<vmem>>, vector<512x128xbf16>
    tpu.vector_store %arg5[%c0_28, %c0_29], %51 {strides = array<i32>} : memref<512x128xbf16, #tpu.memory_space<vmem>>, vector<512x128xbf16>,
    return
  }
  func.func @transform_0(%arg0: i32) -> (i32, i32) {
    %c0_i32 = arith.constant 0 : i32
    %c0_i32_0 = arith.constant 0 : i32
    return %arg0, %c0_i32 : i32, i32
  }
  func.func @transform_1(%arg0: i32) -> (i32, i32) {
    %c0_i32 = arith.constant 0 : i32
    %c0_i32_0 = arith.constant 0 : i32
    return %arg0, %c0_i32 : i32, i32
  }
  func.func @transform_2(%arg0: i32) -> (i32, i32) {
    %c1_i32 = arith.constant 1 : i32
    %0 = arith.addi %arg0, %c1_i32 : i32
    %c8_i32 = arith.constant 8 : i32
    %1 = arith.muli %0, %c8_i32 : i32
    %c0_i32 = arith.constant 0 : i32
    %c0_i32_0 = arith.constant 0 : i32
    return %1, %c0_i32 : i32, i32
  }
  func.func @transform_3(%arg0: i32) -> (i32, i32) {
    %c0_i32 = arith.constant 0 : i32
    %c0_i32_0 = arith.constant 0 : i32
    %c0_i32_1 = arith.constant 0 : i32
    return %c0_i32, %c0_i32_0 : i32, i32
  }
  func.func @transform_4(%arg0: i32) -> (i32, i32) {
    %c0_i32 = arith.constant 0 : i32
    %c0_i32_0 = arith.constant 0 : i32
    return %arg0, %c0_i32 : i32, i32
  }
  func.func @transform_5(%arg0: i32) -> (i32, i32, i32) {
    %c0_i32 = arith.constant 0 : i32
    %c0_i32_0 = arith.constant 0 : i32
    %c0_i32_1 = arith.constant 0 : i32
    return %arg0, %c0_i32, %c0_i32_0 : i32, i32, i32
  }
}

</mosaic_0001>

<llo_original>
// kernel: tpu_custom_call.1
$region0: #{tpu_custom_call.1}
  #allocation0 [shape = 'u32[]', space=smem, size = 0x4, offset = 0x4, fixed_abs, tag = 'smem constant byte address 0x4 - core index']
  #allocation1 [shape = 'u32[144,128]{1,0:T(1,128)}', space=vmem, size = 0x12000, scoped, tag = 'internal scratch']
  %s0 = inlined_call_operand.vmem [shape: f32[1024,1], index: 0, kind: input, shape index: {}]
  %s1 = inlined_call_operand.vmem [shape: bf16[1088,8], index: 1, kind: input, shape index: {}]
  %s2 = inlined_call_operand.vmem [shape: bf16[1088,8], index: 2, kind: input, shape index: {}]
  %s3 = inlined_call_operand.vmem [shape: bf16[72,128], index: 3, kind: input, shape index: {}]
  %s4 = inlined_call_operand.hbm [shape: bf16[1024,128], index: 4, kind: output, shape index: {0}]
  %s5 = inlined_call_operand.hbm [shape: f32[2,2,128], index: 5, kind: output, shape index: {1}]
  %6 = xla_tuple %s4, %s5
  %s7 = sld [smem:[#allocation0]]
  $region57: #{tpu_custom_call.1} parent=0
    _
  %s9 = ssub.s32 1, %s7
  %s10 = scalar_select 0, %s9, %s7
  $region1: #{tpu_custom_call.1} parent=0
    #allocation2 [shape = 'u8[262144]{0}', space=vmem, size = 0x40000, scoped, tag = 'output window, operand 0']
    #allocation3 [shape = 's32[2]{0}', space=sflag, size = 0x8, scoped, tag = 'scoped memory for tpu_custom_call.1']
    #allocation4 [shape = 'u8[2048]{0}', space=vmem, size = 0x800, scoped, tag = 'output window, operand 1']
    #allocation5 [shape = 's32[2]{0}', space=sflag, size = 0x8, scoped, tag = 'scoped memory for tpu_custom_call.1']
    %11 = vsyncpa [#allocation3], 0
    %s12 = scalar_lea.sflag [#allocation3], 1
    %13 = vsyncpa %s12, 0
    %14 = vsyncpa [#allocation5], 0
    %s15 = scalar_lea.sflag [#allocation5], 1
    %16 = vsyncpa %s15, 0
    loop: start=0, step=1, limit=4
    $region2: #{tpu_custom_call.1} parent=1 // loop_pre_header
      _
    $region3: #{tpu_custom_call.1} parent=1 // loop_header
      %s18 = sphi 0, %s22
      %p19 = scmp.ge.s32.totalorder %s18, 4
      %s28 = sphi 0, %s30
      %s31 = sphi 0, %s28
      %s32 = sphi 0, %s31
      %s48 = sphi 0, %s32
      %s54 = sphi 0, %s56
      %s57 = sphi 0, %s54
      %s58 = sphi 0, %s57
      %s74 = sphi 0, %s58
      %s84 = sphi 0, %s86
      %s87 = sphi 0, %s84
      %s88 = sphi 0, %s87
      %s104 = sphi 0, %s88
      %s108 = sphi 0, %s108
      %s110 = sphi 0, %s108
      %s111 = sphi 0, %s110
      %s125 = sphi 0, %s111
      %s131 = sphi 0, %s133
      %s134 = sphi 0, %s131
      %s135 = sphi 0, %s134
      %s151 = sphi 0, %s135
      %s157 = sphi 0, %s159
      %s160 = sphi 0, %s157
      %s161 = sphi 0, %s160
      %s177 = sphi 0, %s161
    $region4: #{tpu_custom_call.1} parent=1 // loop_header_branch
      %21 = sbr.rel (%p19) target = $region8
    $region5: #{tpu_custom_call.1} parent=1 // loop_body
      %s23 = ssub.s32 %s18, 1
      %s24 = ssub.s32 %s18, 2
      %s25 = sadd.s32 %s18, 1
      %s26 = ssub.s32 %s18, %s25
      %p27 = scmp.eq.s32.totalorder %s26, 0
      %s29 = sadd.s32 %s28, 1
      %s30 = scalar_select %p27, %s28, %s29
      %p33 = pneg %p27
      %p34 = scmp.eq.s32.totalorder %s18, 1
      %p35 = por %p33, %p34
      %p36 = scmp.ne.s32.totalorder %s28, %s31
      %p37 = scmp.eq.s32.totalorder %s18, 0
      %p38 = por %p36, %p37
      %p39 = scmp.ne.s32.totalorder %s28, %s31
      %p40 = scmp.eq.s32.totalorder %s23, 1
      %p41 = por %p39, %p40
      %p42 = scmp.ne.s32.totalorder %s31, %s32
      %p43 = scmp.eq.s32.totalorder %s23, 0
      %p44 = por %p42, %p43
      %p45 = scmp.ne.s32.totalorder %s31, %s32
      %p46 = scmp.eq.s32.totalorder %s24, 1
      %p47 = por %p45, %p46
      %p49 = scmp.ne.s32.totalorder %s32, %s48
      %p50 = scmp.eq.s32.totalorder %s24, 0
      %p51 = por %p49, %p50
      %s52 = ssub.s32 %s18, %s25
      %p53 = scmp.eq.s32.totalorder %s52, 0
      %s55 = sadd.s32 %s54, 1
      %s56 = scalar_select %p53, %s54, %s55
      %p59 = pneg %p53
      %p60 = scmp.eq.s32.totalorder %s18, 1
      %p61 = por %p59, %p60
      %p62 = scmp.ne.s32.totalorder %s54, %s57
      %p63 = scmp.eq.s32.totalorder %s18, 0
      %p64 = por %p62, %p63
      %p65 = scmp.ne.s32.totalorder %s54, %s57
      %p66 = scmp.eq.s32.totalorder %s23, 1
      %p67 = por %p65, %p66
      %p68 = scmp.ne.s32.totalorder %s57, %s58
      %p69 = scmp.eq.s32.totalorder %s23, 0
      %p70 = por %p68, %p69
      %p71 = scmp.ne.s32.totalorder %s57, %s58
      %p72 = scmp.eq.s32.totalorder %s24, 1
      %p73 = por %p71, %p72
      %p75 = scmp.ne.s32.totalorder %s58, %s74
      %p76 = scmp.eq.s32.totalorder %s24, 0
      %p77 = por %p75, %p76
      %s78 = sadd.s32 %s18, 1
      %s79 = smul.u32 %s78, 8
      %s80 = sadd.s32 %s25, 1
      %s81 = smul.u32 %s80, 8
      %s82 = ssub.s32 %s79, %s81
      %p83 = scmp.eq.s32.totalorder %s82, 0
      %s85 = sadd.s32 %s84, 1
      %s86 = scalar_select %p83, %s84, %s85
      %p89 = pneg %p83
      %p90 = scmp.eq.s32.totalorder %s18, 1
      %p91 = por %p89, %p90
      %p92 = scmp.ne.s32.totalorder %s84, %s87
      %p93 = scmp.eq.s32.totalorder %s18, 0
      %p94 = por %p92, %p93
      %p95 = scmp.ne.s32.totalorder %s84, %s87
      %p96 = scmp.eq.s32.totalorder %s23, 1
      %p97 = por %p95, %p96
      %p98 = scmp.ne.s32.totalorder %s87, %s88
      %p99 = scmp.eq.s32.totalorder %s23, 0
      %p100 = por %p98, %p99
      %p101 = scmp.ne.s32.totalorder %s87, %s88
      %p102 = scmp.eq.s32.totalorder %s24, 1
      %p103 = por %p101, %p102
      %p105 = scmp.ne.s32.totalorder %s88, %s104
      %p106 = scmp.eq.s32.totalorder %s24, 0
      %p107 = por %p105, %p106
      %s109 = sadd.s32 %s108, 1
      %p112 = scmp.eq.s32.totalorder %s18, 1
      %p113 = scmp.ne.s32.totalorder %s108, %s110
      %p114 = scmp.eq.s32.totalorder %s18, 0
      %p115 = por %p113, %p114
      %p116 = scmp.ne.s32.totalorder %s108, %s110
      %p117 = scmp.eq.s32.totalorder %s23, 1
      %p118 = por %p116, %p117
      %p119 = scmp.ne.s32.totalorder %s110, %s111
      %p120 = scmp.eq.s32.totalorder %s23, 0
      %p121 = por %p119, %p120
      %p122 = scmp.ne.s32.totalorder %s110, %s111
      %p123 = scmp.eq.s32.totalorder %s24, 1
      %p124 = por %p122, %p123
      %p126 = scmp.ne.s32.totalorder %s111, %s125
      %p127 = scmp.eq.s32.totalorder %s24, 0
      %p128 = por %p126, %p127
      %s129 = ssub.s32 %s18, %s25
      %p130 = scmp.eq.s32.totalorder %s129, 0
      %s132 = sadd.s32 %s131, 1
      %s133 = scalar_select %p130, %s131, %s132
      %p136 = pneg %p130
      %p137 = scmp.eq.s32.totalorder %s18, 1
      %p138 = por %p136, %p137
      %p139 = scmp.ne.s32.totalorder %s131, %s134
      %p140 = scmp.eq.s32.totalorder %s18, 0
      %p141 = por %p139, %p140
      %p142 = scmp.ne.s32.totalorder %s131, %s134
      %p143 = scmp.eq.s32.totalorder %s23, 1
      %p144 = por %p142, %p143
      %p145 = scmp.ne.s32.totalorder %s134, %s135
      %p146 = scmp.eq.s32.totalorder %s23, 0
      %p147 = por %p145, %p146
      %p148 = scmp.ne.s32.totalorder %s134, %s135
      %p149 = scmp.eq.s32.totalorder %s24, 1
      %p150 = por %p148, %p149
      %p152 = scmp.ne.s32.totalorder %s135, %s151
      %p153 = scmp.eq.s32.totalorder %s24, 0
      %p154 = por %p152, %p153
      %s155 = ssub.s32 %s18, %s25
      %p156 = scmp.eq.s32.totalorder %s155, 0
      %s158 = sadd.s32 %s157, 1
      %s159 = scalar_select %p156, %s157, %s158
      %p162 = pneg %p156
      %p163 = scmp.eq.s32.totalorder %s18, 1
      %p164 = por %p162, %p163
      %p165 = scmp.ne.s32.totalorder %s157, %s160
      %p166 = scmp.eq.s32.totalorder %s18, 0
      %p167 = por %p165, %p166
      %p168 = scmp.ne.s32.totalorder %s157, %s160
      %p169 = scmp.eq.s32.totalorder %s23, 1
      %p170 = por %p168, %p169
      %p171 = scmp.ne.s32.totalorder %s160, %s161
      %p172 = scmp.eq.s32.totalorder %s23, 0
      %p173 = por %p171, %p172
      %p174 = scmp.ne.s32.totalorder %s160, %s161
      %p175 = scmp.eq.s32.totalorder %s24, 1
      %p176 = por %p174, %p175
      %p178 = scmp.ne.s32.totalorder %s161, %s177
      %p179 = scmp.eq.s32.totalorder %s24, 0
      %p180 = por %p178, %p179
      %p181 = scmp.le.s32.totalorder 1, %s18
      %p182 = scmp.lt.s32.totalorder %s18, 3
      %p183 = pnand %p181, %p182
      %p184 = pneg %p183
      // Predicated region
      $region9: #{tpu_custom_call.1} parent=5 // pred_check
        _
      $region10: #{tpu_custom_call.1} parent=5 // pred_check_branch
        %186 = sbr.rel (%p183) target = $region12
      $region11: #{tpu_custom_call.1} parent=5 // pred_region
        %s187 = ssub.s32 %s18, 1
        // Predicated region
        $region13: #{tpu_custom_call.1} parent=11 // pred_check
          %p188 = pneg %p121
        $region14: #{tpu_custom_call.1} parent=11 // pred_check_branch
          %190 = sbr.rel (%p188) target = $region16
        $region15: #{tpu_custom_call.1} parent=11 // pred_region
          _
        $region16: #{tpu_custom_call.1} parent=11 // pred_fallthru
          _
      $region12: #{tpu_custom_call.1} parent=5 // pred_fallthru
        _
      %p191 = scmp.lt.s32.totalorder %s18, 2
      // Predicated region
      $region17: #{tpu_custom_call.1} parent=5 // pred_check
        %p192 = pneg %p191
      $region18: #{tpu_custom_call.1} parent=5 // pred_check_branch
        %194 = sbr.rel (%p192) target = $region20
      $region19: #{tpu_custom_call.1} parent=5 // pred_region
        // Predicated region
        $region21: #{tpu_custom_call.1} parent=19 // pred_check
          %p195 = pneg %p38
        $region22: #{tpu_custom_call.1} parent=19 // pred_check_branch
          %197 = sbr.rel (%p195) target = $region24
        $region23: #{tpu_custom_call.1} parent=19 // pred_region
          %s198 = smul.u32 64, %s18
          %p199 = scmp.lt.s32.totalorder %s198, 127
          %s200 = scalar_select %p199, %s198, 127
          %s201 = smul.addr %s200, 8
          %s202 = scalar_lea.vmem %s0, %s201
          %s203 = smul.u32 64, %s18
        $region24: #{tpu_custom_call.1} parent=19 // pred_fallthru
          _
        // Predicated region
        $region25: #{tpu_custom_call.1} parent=19 // pred_check
          %p204 = pneg %p64
        $region26: #{tpu_custom_call.1} parent=19 // pred_check_branch
          %206 = sbr.rel (%p204) target = $region28
        $region27: #{tpu_custom_call.1} parent=19 // pred_region
          %s207 = smul.u32 64, %s18
          %s208 = ssub.s32 136, %s207
          %p209 = scmp.lt.s32.totalorder %s208, 64
          %s210 = scalar_select %p209, %s208, 64
          %s211 = smul.u32 64, %s210
          %p212 = scmp.lt.s32.totalorder %s207, 135
          %s213 = scalar_select %p212, %s207, 135
          %s214 = smul.addr %s213, 4
          %s215 = scalar_lea.vmem %s1, %s214
          %s216 = smul.u32 64, %s18
          %s217 = ssub.s32 136, %s216
          %p218 = scmp.lt.s32.totalorder %s217, 64
          %s219 = scalar_select %p218, %s217, 64
          %s220 = smul.u32 64, %s219
        $region28: #{tpu_custom_call.1} parent=19 // pred_fallthru
          _
        // Predicated region
        $region29: #{tpu_custom_call.1} parent=19 // pred_check
          %p221 = pneg %p94
        $region30: #{tpu_custom_call.1} parent=19 // pred_check_branch
          %223 = sbr.rel (%p221) target = $region32
        $region31: #{tpu_custom_call.1} parent=19 // pred_region
          %s224 = sadd.s32 %s18, 1
          %s225 = smul.u32 %s224, 8
          %s226 = smul.u32 8, %s225
          %p227 = scmp.lt.s32.totalorder %s226, 135
          %s228 = scalar_select %p227, %s226, 135
          %s229 = smul.addr %s228, 4
          %s230 = scalar_lea.vmem %s2, %s229
          %s231 = sadd.s32 %s18, 1
          %s232 = smul.u32 %s231, 8
          %s233 = smul.u32 8, %s232
        $region32: #{tpu_custom_call.1} parent=19 // pred_fallthru
          _
      $region20: #{tpu_custom_call.1} parent=5 // pred_fallthru
        _
      %p234 = scmp.le.s32.totalorder 1, %s18
      %p235 = scmp.lt.s32.totalorder %s18, 3
      %p236 = pnand %p234, %p235
      %p237 = pneg %p236
      // Predicated region
      $region33: #{tpu_custom_call.1} parent=5 // pred_check
        _
      $region34: #{tpu_custom_call.1} parent=5 // pred_check_branch
        %239 = sbr.rel (%p236) target = $region36
      $region35: #{tpu_custom_call.1} parent=5 // pred_region
        %s240 = ssub.s32 %s18, 1
        %s241 = smul.u32 64, %s23
        %p242 = scmp.lt.s32.totalorder %s241, 127
        %s243 = scalar_select %p242, %s241, 127
        %s244 = smul.addr %s243, 8
        %s245 = scalar_lea.vmem %s0, %s244
        %p246 = pneg %p44
        %p247 = pneg %p41
        %s248 = smul.u32 64, %s23
        %s249 = ssub.s32 136, %s248
        %p250 = scmp.lt.s32.totalorder %s249, 64
        %s251 = scalar_select %p250, %s249, 64
        %s252 = smul.u32 64, %s251
        %p253 = scmp.lt.s32.totalorder %s248, 135
        %s254 = scalar_select %p253, %s248, 135
        %s255 = smul.addr %s254, 4
        %s256 = scalar_lea.vmem %s1, %s255
        %p257 = pneg %p70
        %p258 = pneg %p67
        %s259 = sadd.s32 %s23, 1
        %s260 = smul.u32 %s259, 8
        %s261 = smul.u32 8, %s260
        %p262 = scmp.lt.s32.totalorder %s261, 135
        %s263 = scalar_select %p262, %s261, 135
        %s264 = smul.addr %s263, 4
        %s265 = scalar_lea.vmem %s2, %s264
        %p266 = pneg %p100
        %p267 = pneg %p97
        %p268 = pneg %p121
        %p269 = pneg %p118
        %p270 = pneg %p147
        %p271 = pneg %p144
        %s272 = sand.u32 %s134, 1
        %s273 = scalar_lea.sflag [#allocation3], %s272
        %s274 = sand.u32 %s134, 1
        %s275 = smul.addr %s274, 256
        %s276 = scalar_lea.vmem [#allocation2], %s275
        %p277 = pneg %p173
        %p278 = pneg %p170
        %s279 = sand.u32 %s160, 1
        %s280 = scalar_lea.sflag [#allocation5], %s279
        %s281 = sand.u32 %s160, 1
        %s282 = smul.addr %s281, 2
        %s283 = scalar_lea.vmem [#allocation4], %s282
        %s284 = smul.u32 64, %s23
        %p285 = scmp.lt.s32.totalorder %s284, 127
        %s286 = scalar_select %p285, %s284, 127
        %s287 = smul.addr %s286, 8
        %s288 = scalar_lea.vmem %s0, %s287
        %s289 = smul.u32 64, %s23
        %s290 = smul.u32 64, %s23
        %s291 = ssub.s32 136, %s290
        %p292 = scmp.lt.s32.totalorder %s291, 64
        %s293 = scalar_select %p292, %s291, 64
        %s294 = smul.u32 64, %s293
        %p295 = scmp.lt.s32.totalorder %s290, 135
        %s296 = scalar_select %p295, %s290, 135
        %s297 = smul.addr %s296, 4
        %s298 = scalar_lea.vmem %s1, %s297
        %s299 = smul.u32 64, %s23
        %s300 = ssub.s32 136, %s299
        %p301 = scmp.lt.s32.totalorder %s300, 64
        %s302 = scalar_select %p301, %s300, 64
        %s303 = smul.u32 64, %s302
        %s304 = sadd.s32 %s23, 1
        %s305 = smul.u32 %s304, 8
        %s306 = smul.u32 8, %s305
        %p307 = scmp.lt.s32.totalorder %s306, 135
        %s308 = scalar_select %p307, %s306, 135
        %s309 = smul.addr %s308, 4
        %s310 = scalar_lea.vmem %s2, %s309
        %s311 = sadd.s32 %s23, 1
        %s312 = smul.u32 %s311, 8
        %s313 = smul.u32 8, %s312
        %s314 = smul.u32 64, %s23
        %v316 = vld [vmem:[%s288] sm:$0xff]
        %v317 = vld [vmem:[%s288 + $0x8] sm:$0xff]
        %v318 = vld [vmem:[%s288 + $0x10] sm:$0xff]
        %v319 = vld [vmem:[%s288 + $0x18] sm:$0xff]
        %v320 = vld [vmem:[%s288 + $0x20] sm:$0xff]
        %v321 = vld [vmem:[%s288 + $0x28] sm:$0xff]
        %v322 = vld [vmem:[%s288 + $0x30] sm:$0xff]
        %v323 = vld [vmem:[%s288 + $0x38] sm:$0xff]
        %v324 = vld [vmem:[%s288 + $0x40] sm:$0xff]
        %v325 = vld [vmem:[%s288 + $0x48] sm:$0xff]
        %v326 = vld [vmem:[%s288 + $0x50] sm:$0xff]
        %v327 = vld [vmem:[%s288 + $0x58] sm:$0xff]
        %v328 = vld [vmem:[%s288 + $0x60] sm:$0xff]
        %v329 = vld [vmem:[%s288 + $0x68] sm:$0xff]
        %v330 = vld [vmem:[%s288 + $0x70] sm:$0xff]
        %v331 = vld [vmem:[%s288 + $0x78] sm:$0xff]
        %v332 = vld [vmem:[%s288 + $0x80] sm:$0xff]
        %v333 = vld [vmem:[%s288 + $0x88] sm:$0xff]
        %v334 = vld [vmem:[%s288 + $0x90] sm:$0xff]
        %v335 = vld [vmem:[%s288 + $0x98] sm:$0xff]
        %v336 = vld [vmem:[%s288 + $0xa0] sm:$0xff]
        %v337 = vld [vmem:[%s288 + $0xa8] sm:$0xff]
        %v338 = vld [vmem:[%s288 + $0xb0] sm:$0xff]
        %v339 = vld [vmem:[%s288 + $0xb8] sm:$0xff]
        %v340 = vld [vmem:[%s288 + $0xc0] sm:$0xff]
        %v341 = vld [vmem:[%s288 + $0xc8] sm:$0xff]
        %v342 = vld [vmem:[%s288 + $0xd0] sm:$0xff]
        %v343 = vld [vmem:[%s288 + $0xd8] sm:$0xff]
        %v344 = vld [vmem:[%s288 + $0xe0] sm:$0xff]
        %v345 = vld [vmem:[%s288 + $0xe8] sm:$0xff]
        %v346 = vld [vmem:[%s288 + $0xf0] sm:$0xff]
        %v347 = vld [vmem:[%s288 + $0xf8] sm:$0xff]
        %v348 = vld [vmem:[%s288 + $0x100] sm:$0xff]
        %v349 = vld [vmem:[%s288 + $0x108] sm:$0xff]
        %v350 = vld [vmem:[%s288 + $0x110] sm:$0xff]
        %v351 = vld [vmem:[%s288 + $0x118] sm:$0xff]
        %v352 = vld [vmem:[%s288 + $0x120] sm:$0xff]
        %v353 = vld [vmem:[%s288 + $0x128] sm:$0xff]
        %v354 = vld [vmem:[%s288 + $0x130] sm:$0xff]
        %v355 = vld [vmem:[%s288 + $0x138] sm:$0xff]
        %v356 = vld [vmem:[%s288 + $0x140] sm:$0xff]
        %v357 = vld [vmem:[%s288 + $0x148] sm:$0xff]
        %v358 = vld [vmem:[%s288 + $0x150] sm:$0xff]
        %v359 = vld [vmem:[%s288 + $0x158] sm:$0xff]
        %v360 = vld [vmem:[%s288 + $0x160] sm:$0xff]
        %v361 = vld [vmem:[%s288 + $0x168] sm:$0xff]
        %v362 = vld [vmem:[%s288 + $0x170] sm:$0xff]
        %v363 = vld [vmem:[%s288 + $0x178] sm:$0xff]
        %v364 = vld [vmem:[%s288 + $0x180] sm:$0xff]
        %v365 = vld [vmem:[%s288 + $0x188] sm:$0xff]
        %v366 = vld [vmem:[%s288 + $0x190] sm:$0xff]
        %v367 = vld [vmem:[%s288 + $0x198] sm:$0xff]
        %v368 = vld [vmem:[%s288 + $0x1a0] sm:$0xff]
        %v369 = vld [vmem:[%s288 + $0x1a8] sm:$0xff]
        %v370 = vld [vmem:[%s288 + $0x1b0] sm:$0xff]
        %v371 = vld [vmem:[%s288 + $0x1b8] sm:$0xff]
        %v372 = vld [vmem:[%s288 + $0x1c0] sm:$0xff]
        %v373 = vld [vmem:[%s288 + $0x1c8] sm:$0xff]
        %v374 = vld [vmem:[%s288 + $0x1d0] sm:$0xff]
        %v375 = vld [vmem:[%s288 + $0x1d8] sm:$0xff]
        %v376 = vld [vmem:[%s288 + $0x1e0] sm:$0xff]
        %v377 = vld [vmem:[%s288 + $0x1e8] sm:$0xff]
        %v378 = vld [vmem:[%s288 + $0x1f0] sm:$0xff]
        %v379 = vld [vmem:[%s288 + $0x1f8] sm:$0xff]
        %v380 = vld [vmem:[%s298] sm:$0xf]
        %v381 = vld [vmem:[%s298 + $0x4] sm:$0xf]
        %v382 = vld [vmem:[%s298 + $0x8] sm:$0xf]
        %v383 = vld [vmem:[%s298 + $0xc] sm:$0xf]
        %v384 = vld [vmem:[%s298 + $0x10] sm:$0xf]
        %v385 = vld [vmem:[%s298 + $0x14] sm:$0xf]
        %v386 = vld [vmem:[%s298 + $0x18] sm:$0xf]
        %v387 = vld [vmem:[%s298 + $0x1c] sm:$0xf]
        %v388 = vld [vmem:[%s298 + $0x20] sm:$0xf]
        %v389 = vld [vmem:[%s298 + $0x24] sm:$0xf]
        %v390 = vld [vmem:[%s298 + $0x28] sm:$0xf]
        %v391 = vld [vmem:[%s298 + $0x2c] sm:$0xf]
        %v392 = vld [vmem:[%s298 + $0x30] sm:$0xf]
        %v393 = vld [vmem:[%s298 + $0x34] sm:$0xf]
        %v394 = vld [vmem:[%s298 + $0x38] sm:$0xf]
        %v395 = vld [vmem:[%s298 + $0x3c] sm:$0xf]
        %v396 = vld [vmem:[%s298 + $0x40] sm:$0xf]
        %v397 = vld [vmem:[%s298 + $0x44] sm:$0xf]
        %v398 = vld [vmem:[%s298 + $0x48] sm:$0xf]
        %v399 = vld [vmem:[%s298 + $0x4c] sm:$0xf]
        %v400 = vld [vmem:[%s298 + $0x50] sm:$0xf]
        %v401 = vld [vmem:[%s298 + $0x54] sm:$0xf]
        %v402 = vld [vmem:[%s298 + $0x58] sm:$0xf]
        %v403 = vld [vmem:[%s298 + $0x5c] sm:$0xf]
        %v404 = vld [vmem:[%s298 + $0x60] sm:$0xf]
        %v405 = vld [vmem:[%s298 + $0x64] sm:$0xf]
        %v406 = vld [vmem:[%s298 + $0x68] sm:$0xf]
        %v407 = vld [vmem:[%s298 + $0x6c] sm:$0xf]
        %v408 = vld [vmem:[%s298 + $0x70] sm:$0xf]
        %v409 = vld [vmem:[%s298 + $0x74] sm:$0xf]
        %v410 = vld [vmem:[%s298 + $0x78] sm:$0xf]
        %v411 = vld [vmem:[%s298 + $0x7c] sm:$0xf]
        %v412 = vld [vmem:[%s298 + $0x80] sm:$0xf]
        %v413 = vld [vmem:[%s298 + $0x84] sm:$0xf]
        %v414 = vld [vmem:[%s298 + $0x88] sm:$0xf]
        %v415 = vld [vmem:[%s298 + $0x8c] sm:$0xf]
        %v416 = vld [vmem:[%s298 + $0x90] sm:$0xf]
        %v417 = vld [vmem:[%s298 + $0x94] sm:$0xf]
        %v418 = vld [vmem:[%s298 + $0x98] sm:$0xf]
        %v419 = vld [vmem:[%s298 + $0x9c] sm:$0xf]
        %v420 = vld [vmem:[%s298 + $0xa0] sm:$0xf]
        %v421 = vld [vmem:[%s298 + $0xa4] sm:$0xf]
        %v422 = vld [vmem:[%s298 + $0xa8] sm:$0xf]
        %v423 = vld [vmem:[%s298 + $0xac] sm:$0xf]
        %v424 = vld [vmem:[%s298 + $0xb0] sm:$0xf]
        %v425 = vld [vmem:[%s298 + $0xb4] sm:$0xf]
        %v426 = vld [vmem:[%s298 + $0xb8] sm:$0xf]
        %v427 = vld [vmem:[%s298 + $0xbc] sm:$0xf]
        %v428 = vld [vmem:[%s298 + $0xc0] sm:$0xf]
        %v429 = vld [vmem:[%s298 + $0xc4] sm:$0xf]
        %v430 = vld [vmem:[%s298 + $0xc8] sm:$0xf]
        %v431 = vld [vmem:[%s298 + $0xcc] sm:$0xf]
        %v432 = vld [vmem:[%s298 + $0xd0] sm:$0xf]
        %v433 = vld [vmem:[%s298 + $0xd4] sm:$0xf]
        %v434 = vld [vmem:[%s298 + $0xd8] sm:$0xf]
        %v435 = vld [vmem:[%s298 + $0xdc] sm:$0xf]
        %v436 = vld [vmem:[%s298 + $0xe0] sm:$0xf]
        %v437 = vld [vmem:[%s298 + $0xe4] sm:$0xf]
        %v438 = vld [vmem:[%s298 + $0xe8] sm:$0xf]
        %v439 = vld [vmem:[%s298 + $0xec] sm:$0xf]
        %v440 = vld [vmem:[%s298 + $0xf0] sm:$0xf]
        %v441 = vld [vmem:[%s298 + $0xf4] sm:$0xf]
        %v442 = vld [vmem:[%s298 + $0xf8] sm:$0xf]
        %v443 = vld [vmem:[%s298 + $0xfc] sm:$0xf]
        %v444 = vld [vmem:[%s310] sm:$0xf]
        %v445 = vld [vmem:[%s310 + $0x4] sm:$0xf]
        %v446 = vld [vmem:[%s310 + $0x8] sm:$0xf]
        %v447 = vld [vmem:[%s310 + $0xc] sm:$0xf]
        %v448 = vld [vmem:[%s310 + $0x10] sm:$0xf]
        %v449 = vld [vmem:[%s310 + $0x14] sm:$0xf]
        %v514 = vunpack.c.l.b16 %v380
        %v515 = vunpack.c.l.b16 %v381
        %v516 = vunpack.c.l.b16 %v382
        %v517 = vunpack.c.l.b16 %v383
        %v518 = vunpack.c.l.b16 %v384
        %v519 = vunpack.c.l.b16 %v385
        %v520 = vunpack.c.l.b16 %v386
        %v521 = vunpack.c.l.b16 %v387
        %v522 = vunpack.c.l.b16 %v388
        %v523 = vunpack.c.l.b16 %v389
        %v524 = vunpack.c.l.b16 %v390
        %v525 = vunpack.c.l.b16 %v391
        %v526 = vunpack.c.l.b16 %v392
        %v527 = vunpack.c.l.b16 %v393
        %v528 = vunpack.c.l.b16 %v394
        %v529 = vunpack.c.l.b16 %v395
        %v530 = vunpack.c.l.b16 %v396
        %v531 = vunpack.c.l.b16 %v397
        %v532 = vunpack.c.l.b16 %v398
        %v533 = vunpack.c.l.b16 %v399
        %v534 = vunpack.c.l.b16 %v400
        %v535 = vunpack.c.l.b16 %v401
        %v536 = vunpack.c.l.b16 %v402
        %v537 = vunpack.c.l.b16 %v403
        %v538 = vunpack.c.l.b16 %v404
        %v539 = vunpack.c.l.b16 %v405
        %v540 = vunpack.c.l.b16 %v406
        %v541 = vunpack.c.l.b16 %v407
        %v542 = vunpack.c.l.b16 %v408
        %v543 = vunpack.c.l.b16 %v409
        %v544 = vunpack.c.l.b16 %v410
        %v545 = vunpack.c.l.b16 %v411
        %v546 = vunpack.c.l.b16 %v412
        %v547 = vunpack.c.l.b16 %v413
        %v548 = vunpack.c.l.b16 %v414
        %v549 = vunpack.c.l.b16 %v415
        %v550 = vunpack.c.l.b16 %v416
        %v551 = vunpack.c.l.b16 %v417
        %v552 = vunpack.c.l.b16 %v418
        %v553 = vunpack.c.l.b16 %v419
        %v554 = vunpack.c.l.b16 %v420
        %v555 = vunpack.c.l.b16 %v421
        %v556 = vunpack.c.l.b16 %v422
        %v557 = vunpack.c.l.b16 %v423
        %v558 = vunpack.c.l.b16 %v424
        %v559 = vunpack.c.l.b16 %v425
        %v560 = vunpack.c.l.b16 %v426
        %v561 = vunpack.c.l.b16 %v427
        %v562 = vunpack.c.l.b16 %v428
        %v563 = vunpack.c.l.b16 %v429
        %v564 = vunpack.c.l.b16 %v430
        %v565 = vunpack.c.l.b16 %v431
        %v566 = vunpack.c.l.b16 %v432
        %v567 = vunpack.c.l.b16 %v433
        %v568 = vunpack.c.l.b16 %v434
        %v569 = vunpack.c.l.b16 %v435
        %v570 = vunpack.c.l.b16 %v436
        %v571 = vunpack.c.l.b16 %v437
        %v572 = vunpack.c.l.b16 %v438
        %v573 = vunpack.c.l.b16 %v439
        %v574 = vunpack.c.l.b16 %v440
        %v575 = vunpack.c.l.b16 %v441
        %v576 = vunpack.c.l.b16 %v442
        %v577 = vunpack.c.l.b16 %v443
        %v578 = vpack.c.b16 %v515, %v514
        %v579 = vpack.c.b16 %v517, %v516
        %v580 = vpack.c.b16 %v519, %v518
        %v581 = vpack.c.b16 %v521, %v520
        %v582 = vpack.c.b16 %v523, %v522
        %v583 = vpack.c.b16 %v525, %v524
        %v584 = vpack.c.b16 %v527, %v526
        %v585 = vpack.c.b16 %v529, %v528
        %v586 = vpack.c.b16 %v531, %v530
        %v587 = vpack.c.b16 %v533, %v532
        %v588 = vpack.c.b16 %v535, %v534
        %v589 = vpack.c.b16 %v537, %v536
        %v590 = vpack.c.b16 %v539, %v538
        %v591 = vpack.c.b16 %v541, %v540
        %v592 = vpack.c.b16 %v543, %v542
        %v593 = vpack.c.b16 %v545, %v544
        %v594 = vpack.c.b16 %v547, %v546
        %v595 = vpack.c.b16 %v549, %v548
        %v596 = vpack.c.b16 %v551, %v550
        %v597 = vpack.c.b16 %v553, %v552
        %v598 = vpack.c.b16 %v555, %v554
        %v599 = vpack.c.b16 %v557, %v556
        %v600 = vpack.c.b16 %v559, %v558
        %v601 = vpack.c.b16 %v561, %v560
        %v602 = vpack.c.b16 %v563, %v562
        %v603 = vpack.c.b16 %v565, %v564
        %v604 = vpack.c.b16 %v567, %v566
        %v605 = vpack.c.b16 %v569, %v568
        %v606 = vpack.c.b16 %v571, %v570
        %v607 = vpack.c.b16 %v573, %v572
        %v608 = vpack.c.b16 %v575, %v574
        %v609 = vpack.c.b16 %v577, %v576
        %v616 = vunpack.c.l.b16 %v444
        %v617 = vunpack.c.l.b16 %v445
        %v618 = vunpack.c.l.b16 %v446
        %v619 = vunpack.c.l.b16 %v447
        %v620 = vunpack.c.l.b16 %v448
        %v621 = vunpack.c.l.b16 %v449
        %v622 = vpack.c.b16 %v617, %v616
        %v623 = vpack.c.b16 %v619, %v618
        %v624 = vpack.c.b16 %v621, %v620
        %v625 = vld [vmem:[%s3] sm:$0xf]
        %v626 = vld [vmem:[%s3 + $0x4] sm:$0xf]
        %vm627 = vsmask.f32 7424
        %v629 = vshrl.u32 %v578, 16
        %v631 = vshll.u32 %v578, 16
        %v633 = vrot.slane %v631, 1
        %v634 = vor.u32 %v629, %v633
        %v636 = vshll.u32 %v579, 16
        %v638 = vrot.slane %v636, 1
        %v639 = vsel %vm627, %v634, %v638
        %v640 = vshrl.u32 %v579, 16
        %v642 = vor.u32 %v640, %v638
        %v644 = vshll.u32 %v580, 16
        %v646 = vrot.slane %v644, 1
        %v647 = vsel %vm627, %v642, %v646
        %v648 = vshrl.u32 %v580, 16
        %v650 = vor.u32 %v648, %v646
        %v652 = vshll.u32 %v581, 16
        %v654 = vrot.slane %v652, 1
        %v655 = vsel %vm627, %v650, %v654
        %v656 = vshrl.u32 %v581, 16
        %v658 = vor.u32 %v656, %v654
        %v660 = vshll.u32 %v582, 16
        %v662 = vrot.slane %v660, 1
        %v663 = vsel %vm627, %v658, %v662
        %v664 = vshrl.u32 %v582, 16
        %v666 = vor.u32 %v664, %v662
        %v668 = vshll.u32 %v583, 16
        %v670 = vrot.slane %v668, 1
        %v671 = vsel %vm627, %v666, %v670
        %v672 = vshrl.u32 %v583, 16
        %v674 = vor.u32 %v672, %v670
        %v676 = vshll.u32 %v584, 16
        %v678 = vrot.slane %v676, 1
        %v679 = vsel %vm627, %v674, %v678
        %v680 = vshrl.u32 %v584, 16
        %v682 = vor.u32 %v680, %v678
        %v684 = vshll.u32 %v585, 16
        %v686 = vrot.slane %v684, 1
        %v687 = vsel %vm627, %v682, %v686
        %v688 = vshrl.u32 %v585, 16
        %v690 = vor.u32 %v688, %v686
        %v692 = vshll.u32 %v586, 16
        %v694 = vrot.slane %v692, 1
        %v695 = vsel %vm627, %v690, %v694
        %v696 = vshrl.u32 %v586, 16
        %v698 = vor.u32 %v696, %v694
        %v700 = vshll.u32 %v587, 16
        %v702 = vrot.slane %v700, 1
        %v703 = vsel %vm627, %v698, %v702
        %v704 = vshrl.u32 %v587, 16
        %v706 = vor.u32 %v704, %v702
        %v708 = vshll.u32 %v588, 16
        %v710 = vrot.slane %v708, 1
        %v711 = vsel %vm627, %v706, %v710
        %v712 = vshrl.u32 %v588, 16
        %v714 = vor.u32 %v712, %v710
        %v716 = vshll.u32 %v589, 16
        %v718 = vrot.slane %v716, 1
        %v719 = vsel %vm627, %v714, %v718
        %v720 = vshrl.u32 %v589, 16
        %v722 = vor.u32 %v720, %v718
        %v724 = vshll.u32 %v590, 16
        %v726 = vrot.slane %v724, 1
        %v727 = vsel %vm627, %v722, %v726
        %v728 = vshrl.u32 %v590, 16
        %v730 = vor.u32 %v728, %v726
        %v732 = vshll.u32 %v591, 16
        %v734 = vrot.slane %v732, 1
        %v735 = vsel %vm627, %v730, %v734
        %v736 = vshrl.u32 %v591, 16
        %v738 = vor.u32 %v736, %v734
        %v740 = vshll.u32 %v592, 16
        %v742 = vrot.slane %v740, 1
        %v743 = vsel %vm627, %v738, %v742
        %v744 = vshrl.u32 %v592, 16
        %v746 = vor.u32 %v744, %v742
        %v748 = vshll.u32 %v593, 16
        %v750 = vrot.slane %v748, 1
        %v751 = vsel %vm627, %v746, %v750
        %v752 = vshrl.u32 %v593, 16
        %v754 = vor.u32 %v752, %v750
        %v756 = vshll.u32 %v594, 16
        %v758 = vrot.slane %v756, 1
        %v759 = vsel %vm627, %v754, %v758
        %v760 = vshrl.u32 %v594, 16
        %v762 = vor.u32 %v760, %v758
        %v764 = vshll.u32 %v595, 16
        %v766 = vrot.slane %v764, 1
        %v767 = vsel %vm627, %v762, %v766
        %v768 = vshrl.u32 %v595, 16
        %v770 = vor.u32 %v768, %v766
        %v772 = vshll.u32 %v596, 16
        %v774 = vrot.slane %v772, 1
        %v775 = vsel %vm627, %v770, %v774
        %v776 = vshrl.u32 %v596, 16
        %v778 = vor.u32 %v776, %v774
        %v780 = vshll.u32 %v597, 16
        %v782 = vrot.slane %v780, 1
        %v783 = vsel %vm627, %v778, %v782
        %v784 = vshrl.u32 %v597, 16
        %v786 = vor.u32 %v784, %v782
        %v788 = vshll.u32 %v598, 16
        %v790 = vrot.slane %v788, 1
        %v791 = vsel %vm627, %v786, %v790
        %v792 = vshrl.u32 %v598, 16
        %v794 = vor.u32 %v792, %v790
        %v796 = vshll.u32 %v599, 16
        %v798 = vrot.slane %v796, 1
        %v799 = vsel %vm627, %v794, %v798
        %v800 = vshrl.u32 %v599, 16
        %v802 = vor.u32 %v800, %v798
        %v804 = vshll.u32 %v600, 16
        %v806 = vrot.slane %v804, 1
        %v807 = vsel %vm627, %v802, %v806
        %v808 = vshrl.u32 %v600, 16
        %v810 = vor.u32 %v808, %v806
        %v812 = vshll.u32 %v601, 16
        %v814 = vrot.slane %v812, 1
        %v815 = vsel %vm627, %v810, %v814
        %v816 = vshrl.u32 %v601, 16
        %v818 = vor.u32 %v816, %v814
        %v820 = vshll.u32 %v602, 16
        %v822 = vrot.slane %v820, 1
        %v823 = vsel %vm627, %v818, %v822
        %v824 = vshrl.u32 %v602, 16
        %v826 = vor.u32 %v824, %v822
        %v828 = vshll.u32 %v603, 16
        %v830 = vrot.slane %v828, 1
        %v831 = vsel %vm627, %v826, %v830
        %v832 = vshrl.u32 %v603, 16
        %v834 = vor.u32 %v832, %v830
        %v836 = vshll.u32 %v604, 16
        %v838 = vrot.slane %v836, 1
        %v839 = vsel %vm627, %v834, %v838
        %v840 = vshrl.u32 %v604, 16
        %v842 = vor.u32 %v840, %v838
        %v844 = vshll.u32 %v605, 16
        %v846 = vrot.slane %v844, 1
        %v847 = vsel %vm627, %v842, %v846
        %v848 = vshrl.u32 %v605, 16
        %v850 = vor.u32 %v848, %v846
        %v852 = vshll.u32 %v606, 16
        %v854 = vrot.slane %v852, 1
        %v855 = vsel %vm627, %v850, %v854
        %v856 = vshrl.u32 %v606, 16
        %v858 = vor.u32 %v856, %v854
        %v860 = vshll.u32 %v607, 16
        %v862 = vrot.slane %v860, 1
        %v863 = vsel %vm627, %v858, %v862
        %v864 = vshrl.u32 %v607, 16
        %v866 = vor.u32 %v864, %v862
        %v868 = vshll.u32 %v608, 16
        %v870 = vrot.slane %v868, 1
        %v871 = vsel %vm627, %v866, %v870
        %v872 = vshrl.u32 %v608, 16
        %v874 = vor.u32 %v872, %v870
        %v876 = vshll.u32 %v609, 16
        %v878 = vrot.slane %v876, 1
        %v879 = vsel %vm627, %v874, %v878
        %v880 = vshrl.u32 %v609, 16
        %v882 = vor.u32 %v880, %v878
        %v884 = vshll.u32 %v622, 16
        %v886 = vrot.slane %v884, 1
        %v887 = vsel %vm627, %v882, %v886
        %vm888 = vcmask 64512
        %v890 = vsel %vm888, %v639, 0
        %v893 = vsel %vm888, %v647, 0
        %v896 = vsel %vm888, %v655, 0
        %v899 = vsel %vm888, %v663, 0
        %v902 = vsel %vm888, %v671, 0
        %v905 = vsel %vm888, %v679, 0
        %v908 = vsel %vm888, %v687, 0
        %v911 = vsel %vm888, %v695, 0
        %v914 = vsel %vm888, %v703, 0
        %v917 = vsel %vm888, %v711, 0
        %v920 = vsel %vm888, %v719, 0
        %v923 = vsel %vm888, %v727, 0
        %v926 = vsel %vm888, %v735, 0
        %v929 = vsel %vm888, %v743, 0
        %v932 = vsel %vm888, %v751, 0
        %v935 = vsel %vm888, %v759, 0
        %v938 = vsel %vm888, %v767, 0
        %v941 = vsel %vm888, %v775, 0
        %v944 = vsel %vm888, %v783, 0
        %v947 = vsel %vm888, %v791, 0
        %v950 = vsel %vm888, %v799, 0
        %v953 = vsel %vm888, %v807, 0
        %v956 = vsel %vm888, %v815, 0
        %v959 = vsel %vm888, %v823, 0
        %v962 = vsel %vm888, %v831, 0
        %v965 = vsel %vm888, %v839, 0
        %v968 = vsel %vm888, %v847, 0
        %v971 = vsel %vm888, %v855, 0
        %v974 = vsel %vm888, %v863, 0
        %v977 = vsel %vm888, %v871, 0
        %v980 = vsel %vm888, %v879, 0
        %v983 = vsel %vm888, %v887, 0
        %vm985 = vcmask 1043456
        %v987 = vsel %vm985, %v626, 0
        %989 = vmatprep.subr.bf16.mxu0 0
        %990 = vmatpush1.bf16.msra.mxu0 0
        %991 = vmatprep.subr.bf16.mxu0 0
        %992 = vmatpush1.bf16.msra.mxu0 0
        %993 = vmatprep.subr.bf16.mxu0 0
        %994 = vmatpush1.bf16.msra.mxu0 0
        %995 = vmatprep.subr.bf16.mxu0 0
        %996 = vmatpush1.bf16.msra.mxu0 0
        %997 = vmatprep.subr.bf16.mxu0 0
        %998 = vmatpush1.bf16.msra.mxu0 0
        %999 = vmatprep.subr.bf16.mxu0 0
        %1000 = vmatpush1.bf16.msra.mxu0 0
        %1001 = vmatprep.subr.bf16.mxu0 0
        %1002 = vmatpush1.bf16.msra.mxu0 0
        %1003 = vmatprep.subr.bf16.mxu0 0
        %1004 = vmatpush1.bf16.msra.mxu0 %v987
        %1005 = vmatprep.subr.bf16.mxu0 0
        %1006 = vmatpush2.bf16.msra.mxu0 0
        %1007 = vmatprep.subr.bf16.mxu0 0
        %1008 = vmatpush2.bf16.msra.mxu0 0
        %1009 = vmatprep.subr.bf16.mxu0 0
        %1010 = vmatpush2.bf16.msra.mxu0 0
        %1011 = vmatprep.subr.bf16.mxu0 0
        %1012 = vmatpush2.bf16.msra.mxu0 0
        %1013 = vmatprep.subr.bf16.mxu0 0
        %1014 = vmatpush2.bf16.msra.mxu0 0
        %1015 = vmatprep.subr.bf16.mxu0 0
        %1016 = vmatpush2.bf16.msra.mxu0 0
        %1017 = vmatprep.subr.bf16.mxu0 0
        %1018 = vmatpush2.bf16.msra.mxu0 0
        %1019 = vmatprep.subr.bf16.mxu0 0
        %1020 = vmatpush2.bf16.msra.mxu0 0
        %1021 = vmatprep.mubr.bf16.mxu0 0
        %1022 = vmatmul.mubr.bf16.gmra.mxu0 %v890
        %v1023 = vpop.f32.mrf.mxu0
        %v1024 = vadd.f32 0.0, %v1023
        %v1025 = vpop.f32.mrf.mxu0
        %v1026 = vpop.f32.mrf.mxu0
        %v1027 = vadd.f32 0.0, %v1026
        %v1028 = vpop.f32.mrf.mxu0
        %1029 = vmatprep.mubr.bf16.mxu0 0
        %1030 = vmatmul.mubr.bf16.gmra.mxu0 %v893
        %v1031 = vpop.f32.mrf.mxu0
        %v1032 = vadd.f32 0.0, %v1031
        %v1033 = vpop.f32.mrf.mxu0
        %v1034 = vpop.f32.mrf.mxu0
        %v1035 = vadd.f32 0.0, %v1034
        %v1036 = vpop.f32.mrf.mxu0
        %1037 = vmatprep.mubr.bf16.mxu0 0
        %1038 = vmatmul.mubr.bf16.gmra.mxu0 %v896
        %v1039 = vpop.f32.mrf.mxu0
        %v1040 = vadd.f32 0.0, %v1039
        %v1041 = vpop.f32.mrf.mxu0
        %v1042 = vpop.f32.mrf.mxu0
        %v1043 = vadd.f32 0.0, %v1042
        %v1044 = vpop.f32.mrf.mxu0
        %1045 = vmatprep.mubr.bf16.mxu0 0
        %1046 = vmatmul.mubr.bf16.gmra.mxu0 %v899
        %v1047 = vpop.f32.mrf.mxu0
        %v1048 = vadd.f32 0.0, %v1047
        %v1049 = vpop.f32.mrf.mxu0
        %v1050 = vpop.f32.mrf.mxu0
        %v1051 = vadd.f32 0.0, %v1050
        %v1052 = vpop.f32.mrf.mxu0
        %1053 = vmatprep.mubr.bf16.mxu0 0
        %1054 = vmatmul.mubr.bf16.gmra.mxu0 %v902
        %v1055 = vpop.f32.mrf.mxu0
        %v1056 = vadd.f32 0.0, %v1055
        %v1057 = vpop.f32.mrf.mxu0
        %v1058 = vpop.f32.mrf.mxu0
        %v1059 = vadd.f32 0.0, %v1058
        %v1060 = vpop.f32.mrf.mxu0
        %1061 = vmatprep.mubr.bf16.mxu0 0
        %1062 = vmatmul.mubr.bf16.gmra.mxu0 %v905
        %v1063 = vpop.f32.mrf.mxu0
        %v1064 = vadd.f32 0.0, %v1063
        %v1065 = vpop.f32.mrf.mxu0
        %v1066 = vpop.f32.mrf.mxu0
        %v1067 = vadd.f32 0.0, %v1066
        %v1068 = vpop.f32.mrf.mxu0
        %1069 = vmatprep.mubr.bf16.mxu0 0
        %1070 = vmatmul.mubr.bf16.gmra.mxu0 %v908
        %v1071 = vpop.f32.mrf.mxu0
        %v1072 = vadd.f32 0.0, %v1071
        %v1073 = vpop.f32.mrf.mxu0
        %v1074 = vpop.f32.mrf.mxu0
        %v1075 = vadd.f32 0.0, %v1074
        %v1076 = vpop.f32.mrf.mxu0
        %1077 = vmatprep.mubr.bf16.mxu0 0
        %1078 = vmatmul.mubr.bf16.gmra.mxu0 %v911
        %v1079 = vpop.f32.mrf.mxu0
        %v1080 = vadd.f32 0.0, %v1079
        %v1081 = vpop.f32.mrf.mxu0
        %v1082 = vpop.f32.mrf.mxu0
        %v1083 = vadd.f32 0.0, %v1082
        %v1084 = vpop.f32.mrf.mxu0
        %1085 = vmatprep.mubr.bf16.mxu0 0
        %1086 = vmatmul.mubr.bf16.gmra.mxu0 %v914
        %v1087 = vpop.f32.mrf.mxu0
        %v1088 = vadd.f32 0.0, %v1087
        %v1089 = vpop.f32.mrf.mxu0
        %v1090 = vpop.f32.mrf.mxu0
        %v1091 = vadd.f32 0.0, %v1090
        %v1092 = vpop.f32.mrf.mxu0
        %1093 = vmatprep.mubr.bf16.mxu0 0
        %1094 = vmatmul.mubr.bf16.gmra.mxu0 %v917
        %v1095 = vpop.f32.mrf.mxu0
        %v1096 = vadd.f32 0.0, %v1095
        %v1097 = vpop.f32.mrf.mxu0
        %v1098 = vpop.f32.mrf.mxu0
        %v1099 = vadd.f32 0.0, %v1098
        %v1100 = vpop.f32.mrf.mxu0
        %1101 = vmatprep.mubr.bf16.mxu0 0
        %1102 = vmatmul.mubr.bf16.gmra.mxu0 %v920
        %v1103 = vpop.f32.mrf.mxu0
        %v1104 = vadd.f32 0.0, %v1103
        %v1105 = vpop.f32.mrf.mxu0
        %v1106 = vpop.f32.mrf.mxu0
        %v1107 = vadd.f32 0.0, %v1106
        %v1108 = vpop.f32.mrf.mxu0
        %1109 = vmatprep.mubr.bf16.mxu0 0
        %1110 = vmatmul.mubr.bf16.gmra.mxu0 %v923
        %v1111 = vpop.f32.mrf.mxu0
        %v1112 = vadd.f32 0.0, %v1111
        %v1113 = vpop.f32.mrf.mxu0
        %v1114 = vpop.f32.mrf.mxu0
        %v1115 = vadd.f32 0.0, %v1114
        %v1116 = vpop.f32.mrf.mxu0
        %1117 = vmatprep.mubr.bf16.mxu0 0
        %1118 = vmatmul.mubr.bf16.gmra.mxu0 %v926
        %v1119 = vpop.f32.mrf.mxu0
        %v1120 = vadd.f32 0.0, %v1119
        %v1121 = vpop.f32.mrf.mxu0
        %v1122 = vpop.f32.mrf.mxu0
        %v1123 = vadd.f32 0.0, %v1122
        %v1124 = vpop.f32.mrf.mxu0
        %1125 = vmatprep.mubr.bf16.mxu0 0
        %1126 = vmatmul.mubr.bf16.gmra.mxu0 %v929
        %v1127 = vpop.f32.mrf.mxu0
        %v1128 = vadd.f32 0.0, %v1127
        %v1129 = vpop.f32.mrf.mxu0
        %v1130 = vpop.f32.mrf.mxu0
        %v1131 = vadd.f32 0.0, %v1130
        %v1132 = vpop.f32.mrf.mxu0
        %1133 = vmatprep.mubr.bf16.mxu0 0
        %1134 = vmatmul.mubr.bf16.gmra.mxu0 %v932
        %v1135 = vpop.f32.mrf.mxu0
        %v1136 = vadd.f32 0.0, %v1135
        %v1137 = vpop.f32.mrf.mxu0
        %v1138 = vpop.f32.mrf.mxu0
        %v1139 = vadd.f32 0.0, %v1138
        %v1140 = vpop.f32.mrf.mxu0
        %1141 = vmatprep.mubr.bf16.mxu0 0
        %1142 = vmatmul.mubr.bf16.gmra.mxu0 %v935
        %v1143 = vpop.f32.mrf.mxu0
        %v1144 = vadd.f32 0.0, %v1143
        %v1145 = vpop.f32.mrf.mxu0
        %v1146 = vpop.f32.mrf.mxu0
        %v1147 = vadd.f32 0.0, %v1146
        %v1148 = vpop.f32.mrf.mxu0
        %1149 = vmatprep.mubr.bf16.mxu0 0
        %1150 = vmatmul.mubr.bf16.gmra.mxu0 %v938
        %v1151 = vpop.f32.mrf.mxu0
        %v1152 = vadd.f32 0.0, %v1151
        %v1153 = vpop.f32.mrf.mxu0
        %v1154 = vpop.f32.mrf.mxu0
        %v1155 = vadd.f32 0.0, %v1154
        %v1156 = vpop.f32.mrf.mxu0
        %1157 = vmatprep.mubr.bf16.mxu0 0
        %1158 = vmatmul.mubr.bf16.gmra.mxu0 %v941
        %v1159 = vpop.f32.mrf.mxu0
        %v1160 = vadd.f32 0.0, %v1159
        %v1161 = vpop.f32.mrf.mxu0
        %v1162 = vpop.f32.mrf.mxu0
        %v1163 = vadd.f32 0.0, %v1162
        %v1164 = vpop.f32.mrf.mxu0
        %1165 = vmatprep.mubr.bf16.mxu0 0
        %1166 = vmatmul.mubr.bf16.gmra.mxu0 %v944
        %v1167 = vpop.f32.mrf.mxu0
        %v1168 = vadd.f32 0.0, %v1167
        %v1169 = vpop.f32.mrf.mxu0
        %v1170 = vpop.f32.mrf.mxu0
        %v1171 = vadd.f32 0.0, %v1170
        %v1172 = vpop.f32.mrf.mxu0
        %1173 = vmatprep.mubr.bf16.mxu0 0
        %1174 = vmatmul.mubr.bf16.gmra.mxu0 %v947
        %v1175 = vpop.f32.mrf.mxu0
        %v1176 = vadd.f32 0.0, %v1175
        %v1177 = vpop.f32.mrf.mxu0
        %v1178 = vpop.f32.mrf.mxu0
        %v1179 = vadd.f32 0.0, %v1178
        %v1180 = vpop.f32.mrf.mxu0
        %1181 = vmatprep.mubr.bf16.mxu0 0
        %1182 = vmatmul.mubr.bf16.gmra.mxu0 %v950
        %v1183 = vpop.f32.mrf.mxu0
        %v1184 = vadd.f32 0.0, %v1183
        %v1185 = vpop.f32.mrf.mxu0
        %v1186 = vpop.f32.mrf.mxu0
        %v1187 = vadd.f32 0.0, %v1186
        %v1188 = vpop.f32.mrf.mxu0
        %1189 = vmatprep.mubr.bf16.mxu0 0
        %1190 = vmatmul.mubr.bf16.gmra.mxu0 %v953
        %v1191 = vpop.f32.mrf.mxu0
        %v1192 = vadd.f32 0.0, %v1191
        %v1193 = vpop.f32.mrf.mxu0
        %v1194 = vpop.f32.mrf.mxu0
        %v1195 = vadd.f32 0.0, %v1194
        %v1196 = vpop.f32.mrf.mxu0
        %1197 = vmatprep.mubr.bf16.mxu0 0
        %1198 = vmatmul.mubr.bf16.gmra.mxu0 %v956
        %v1199 = vpop.f32.mrf.mxu0
        %v1200 = vadd.f32 0.0, %v1199
        %v1201 = vpop.f32.mrf.mxu0
        %v1202 = vpop.f32.mrf.mxu0
        %v1203 = vadd.f32 0.0, %v1202
        %v1204 = vpop.f32.mrf.mxu0
        %1205 = vmatprep.mubr.bf16.mxu0 0
        %1206 = vmatmul.mubr.bf16.gmra.mxu0 %v959
        %v1207 = vpop.f32.mrf.mxu0
        %v1208 = vadd.f32 0.0, %v1207
        %v1209 = vpop.f32.mrf.mxu0
        %v1210 = vpop.f32.mrf.mxu0
        %v1211 = vadd.f32 0.0, %v1210
        %v1212 = vpop.f32.mrf.mxu0
        %1213 = vmatprep.mubr.bf16.mxu0 0
        %1214 = vmatmul.mubr.bf16.gmra.mxu0 %v962
        %v1215 = vpop.f32.mrf.mxu0
        %v1216 = vadd.f32 0.0, %v1215
        %v1217 = vpop.f32.mrf.mxu0
        %v1218 = vpop.f32.mrf.mxu0
        %v1219 = vadd.f32 0.0, %v1218
        %v1220 = vpop.f32.mrf.mxu0
        %1221 = vmatprep.mubr.bf16.mxu0 0
        %1222 = vmatmul.mubr.bf16.gmra.mxu0 %v965
        %v1223 = vpop.f32.mrf.mxu0
        %v1224 = vadd.f32 0.0, %v1223
        %v1225 = vpop.f32.mrf.mxu0
        %v1226 = vpop.f32.mrf.mxu0
        %v1227 = vadd.f32 0.0, %v1226
        %v1228 = vpop.f32.mrf.mxu0
        %1229 = vmatprep.mubr.bf16.mxu0 0
        %1230 = vmatmul.mubr.bf16.gmra.mxu0 %v968
        %v1231 = vpop.f32.mrf.mxu0
        %v1232 = vadd.f32 0.0, %v1231
        %v1233 = vpop.f32.mrf.mxu0
        %v1234 = vpop.f32.mrf.mxu0
        %v1235 = vadd.f32 0.0, %v1234
        %v1236 = vpop.f32.mrf.mxu0
        %1237 = vmatprep.mubr.bf16.mxu0 0
        %1238 = vmatmul.mubr.bf16.gmra.mxu0 %v971
        %v1239 = vpop.f32.mrf.mxu0
        %v1240 = vadd.f32 0.0, %v1239
        %v1241 = vpop.f32.mrf.mxu0
        %v1242 = vpop.f32.mrf.mxu0
        %v1243 = vadd.f32 0.0, %v1242
        %v1244 = vpop.f32.mrf.mxu0
        %1245 = vmatprep.mubr.bf16.mxu0 0
        %1246 = vmatmul.mubr.bf16.gmra.mxu0 %v974
        %v1247 = vpop.f32.mrf.mxu0
        %v1248 = vadd.f32 0.0, %v1247
        %v1249 = vpop.f32.mrf.mxu0
        %v1250 = vpop.f32.mrf.mxu0
        %v1251 = vadd.f32 0.0, %v1250
        %v1252 = vpop.f32.mrf.mxu0
        %1253 = vmatprep.mubr.bf16.mxu0 0
        %1254 = vmatmul.mubr.bf16.gmra.mxu0 %v977
        %v1255 = vpop.f32.mrf.mxu0
        %v1256 = vadd.f32 0.0, %v1255
        %v1257 = vpop.f32.mrf.mxu0
        %v1258 = vpop.f32.mrf.mxu0
        %v1259 = vadd.f32 0.0, %v1258
        %v1260 = vpop.f32.mrf.mxu0
        %1261 = vmatprep.mubr.bf16.mxu0 0
        %1262 = vmatmul.mubr.bf16.gmra.mxu0 %v980
        %v1263 = vpop.f32.mrf.mxu0
        %v1264 = vadd.f32 0.0, %v1263
        %v1265 = vpop.f32.mrf.mxu0
        %v1266 = vpop.f32.mrf.mxu0
        %v1267 = vadd.f32 0.0, %v1266
        %v1268 = vpop.f32.mrf.mxu0
        %1269 = vmatprep.mubr.bf16.mxu0 0
        %1270 = vmatmul.mubr.bf16.gmra.mxu0 %v983
        %v1271 = vpop.f32.mrf.mxu0
        %v1272 = vadd.f32 0.0, %v1271
        %v1273 = vpop.f32.mrf.mxu0
        %v1274 = vpop.f32.mrf.mxu0
        %v1275 = vadd.f32 0.0, %v1274
        %v1276 = vpop.f32.mrf.mxu0
        %1277 = vdwg.mxu0
        %v1278 = vsel %vm888, %v578, 0
        %v1280 = vsel %vm888, %v579, 0
        %v1282 = vsel %vm888, %v580, 0
        %v1284 = vsel %vm888, %v581, 0
        %v1286 = vsel %vm888, %v582, 0
        %v1288 = vsel %vm888, %v583, 0
        %v1290 = vsel %vm888, %v584, 0
        %v1292 = vsel %vm888, %v585, 0
        %v1294 = vsel %vm888, %v586, 0
        %v1296 = vsel %vm888, %v587, 0
        %v1298 = vsel %vm888, %v588, 0
        %v1300 = vsel %vm888, %v589, 0
        %v1302 = vsel %vm888, %v590, 0
        %v1304 = vsel %vm888, %v591, 0
        %v1306 = vsel %vm888, %v592, 0
        %v1308 = vsel %vm888, %v593, 0
        %v1310 = vsel %vm888, %v594, 0
        %v1312 = vsel %vm888, %v595, 0
        %v1314 = vsel %vm888, %v596, 0
        %v1316 = vsel %vm888, %v597, 0
        %v1318 = vsel %vm888, %v598, 0
        %v1320 = vsel %vm888, %v599, 0
        %v1322 = vsel %vm888, %v600, 0
        %v1324 = vsel %vm888, %v601, 0
        %v1326 = vsel %vm888, %v602, 0
        %v1328 = vsel %vm888, %v603, 0
        %v1330 = vsel %vm888, %v604, 0
        %v1332 = vsel %vm888, %v605, 0
        %v1334 = vsel %vm888, %v606, 0
        %v1336 = vsel %vm888, %v607, 0
        %v1338 = vsel %vm888, %v608, 0
        %v1340 = vsel %vm888, %v609, 0
        %v1343 = vsel %vm985, %v625, 0
        %1345 = vmatprep.subr.bf16.mxu0 0
        %1346 = vmatpush1.bf16.msra.mxu0 0
        %1347 = vmatprep.subr.bf16.mxu0 0
        %1348 = vmatpush1.bf16.msra.mxu0 0
        %1349 = vmatprep.subr.bf16.mxu0 0
        %1350 = vmatpush1.bf16.msra.mxu0 0
        %1351 = vmatprep.subr.bf16.mxu0 0
        %1352 = vmatpush1.bf16.msra.mxu0 0
        %1353 = vmatprep.subr.bf16.mxu0 0
        %1354 = vmatpush1.bf16.msra.mxu0 0
        %1355 = vmatprep.subr.bf16.mxu0 0
        %1356 = vmatpush1.bf16.msra.mxu0 0
        %1357 = vmatprep.subr.bf16.mxu0 0
        %1358 = vmatpush1.bf16.msra.mxu0 0
        %1359 = vmatprep.subr.bf16.mxu0 0
        %1360 = vmatpush1.bf16.msra.mxu0 %v1343
        %1361 = vmatprep.subr.bf16.mxu0 0
        %1362 = vmatpush2.bf16.msra.mxu0 0
        %1363 = vmatprep.subr.bf16.mxu0 0
        %1364 = vmatpush2.bf16.msra.mxu0 0
        %1365 = vmatprep.subr.bf16.mxu0 0
        %1366 = vmatpush2.bf16.msra.mxu0 0
        %1367 = vmatprep.subr.bf16.mxu0 0
        %1368 = vmatpush2.bf16.msra.mxu0 0
        %1369 = vmatprep.subr.bf16.mxu0 0
        %1370 = vmatpush2.bf16.msra.mxu0 0
        %1371 = vmatprep.subr.bf16.mxu0 0
        %1372 = vmatpush2.bf16.msra.mxu0 0
        %1373 = vmatprep.subr.bf16.mxu0 0
        %1374 = vmatpush2.bf16.msra.mxu0 0
        %1375 = vmatprep.subr.bf16.mxu0 0
        %1376 = vmatpush2.bf16.msra.mxu0 0
        %1377 = vmatprep.mubr.bf16.mxu0 0
        %1378 = vmatmul.mubr.bf16.gmra.mxu0 %v1278
        %v1379 = vpop.f32.mrf.mxu0
        %v1380 = vadd.f32 %v1024, %v1379
        %v1381 = vpop.f32.mrf.mxu0
        %v1382 = vpop.f32.mrf.mxu0
        %v1383 = vadd.f32 %v1027, %v1382
        %v1384 = vpop.f32.mrf.mxu0
        %1385 = vmatprep.mubr.bf16.mxu0 0
        %1386 = vmatmul.mubr.bf16.gmra.mxu0 %v1280
        %v1387 = vpop.f32.mrf.mxu0
        %v1388 = vadd.f32 %v1032, %v1387
        %v1389 = vpop.f32.mrf.mxu0
        %v1390 = vpop.f32.mrf.mxu0
        %v1391 = vadd.f32 %v1035, %v1390
        %v1392 = vpop.f32.mrf.mxu0
        %1393 = vmatprep.mubr.bf16.mxu0 0
        %1394 = vmatmul.mubr.bf16.gmra.mxu0 %v1282
        %v1395 = vpop.f32.mrf.mxu0
        %v1396 = vadd.f32 %v1040, %v1395
        %v1397 = vpop.f32.mrf.mxu0
        %v1398 = vpop.f32.mrf.mxu0
        %v1399 = vadd.f32 %v1043, %v1398
        %v1400 = vpop.f32.mrf.mxu0
        %1401 = vmatprep.mubr.bf16.mxu0 0
        %1402 = vmatmul.mubr.bf16.gmra.mxu0 %v1284
        %v1403 = vpop.f32.mrf.mxu0
        %v1404 = vadd.f32 %v1048, %v1403
        %v1405 = vpop.f32.mrf.mxu0
        %v1406 = vpop.f32.mrf.mxu0
        %v1407 = vadd.f32 %v1051, %v1406
        %v1408 = vpop.f32.mrf.mxu0
        %1409 = vmatprep.mubr.bf16.mxu0 0
        %1410 = vmatmul.mubr.bf16.gmra.mxu0 %v1286
        %v1411 = vpop.f32.mrf.mxu0
        %v1412 = vadd.f32 %v1056, %v1411
        %v1413 = vpop.f32.mrf.mxu0
        %v1414 = vpop.f32.mrf.mxu0
        %v1415 = vadd.f32 %v1059, %v1414
        %v1416 = vpop.f32.mrf.mxu0
        %1417 = vmatprep.mubr.bf16.mxu0 0
        %1418 = vmatmul.mubr.bf16.gmra.mxu0 %v1288
        %v1419 = vpop.f32.mrf.mxu0
        %v1420 = vadd.f32 %v1064, %v1419
        %v1421 = vpop.f32.mrf.mxu0
        %v1422 = vpop.f32.mrf.mxu0
        %v1423 = vadd.f32 %v1067, %v1422
        %v1424 = vpop.f32.mrf.mxu0
        %1425 = vmatprep.mubr.bf16.mxu0 0
        %1426 = vmatmul.mubr.bf16.gmra.mxu0 %v1290
        %v1427 = vpop.f32.mrf.mxu0
        %v1428 = vadd.f32 %v1072, %v1427
        %v1429 = vpop.f32.mrf.mxu0
        %v1430 = vpop.f32.mrf.mxu0
        %v1431 = vadd.f32 %v1075, %v1430
        %v1432 = vpop.f32.mrf.mxu0
        %1433 = vmatprep.mubr.bf16.mxu0 0
        %1434 = vmatmul.mubr.bf16.gmra.mxu0 %v1292
        %v1435 = vpop.f32.mrf.mxu0
        %v1436 = vadd.f32 %v1080, %v1435
        %v1437 = vpop.f32.mrf.mxu0
        %v1438 = vpop.f32.mrf.mxu0
        %v1439 = vadd.f32 %v1083, %v1438
        %v1440 = vpop.f32.mrf.mxu0
        %1441 = vmatprep.mubr.bf16.mxu0 0
        %1442 = vmatmul.mubr.bf16.gmra.mxu0 %v1294
        %v1443 = vpop.f32.mrf.mxu0
        %v1444 = vadd.f32 %v1088, %v1443
        %v1445 = vpop.f32.mrf.mxu0
        %v1446 = vpop.f32.mrf.mxu0
        %v1447 = vadd.f32 %v1091, %v1446
        %v1448 = vpop.f32.mrf.mxu0
        %1449 = vmatprep.mubr.bf16.mxu0 0
        %1450 = vmatmul.mubr.bf16.gmra.mxu0 %v1296
        %v1451 = vpop.f32.mrf.mxu0
        %v1452 = vadd.f32 %v1096, %v1451
        %v1453 = vpop.f32.mrf.mxu0
        %v1454 = vpop.f32.mrf.mxu0
        %v1455 = vadd.f32 %v1099, %v1454
        %v1456 = vpop.f32.mrf.mxu0
        %1457 = vmatprep.mubr.bf16.mxu0 0
        %1458 = vmatmul.mubr.bf16.gmra.mxu0 %v1298
        %v1459 = vpop.f32.mrf.mxu0
        %v1460 = vadd.f32 %v1104, %v1459
        %v1461 = vpop.f32.mrf.mxu0
        %v1462 = vpop.f32.mrf.mxu0
        %v1463 = vadd.f32 %v1107, %v1462
        %v1464 = vpop.f32.mrf.mxu0
        %1465 = vmatprep.mubr.bf16.mxu0 0
        %1466 = vmatmul.mubr.bf16.gmra.mxu0 %v1300
        %v1467 = vpop.f32.mrf.mxu0
        %v1468 = vadd.f32 %v1112, %v1467
        %v1469 = vpop.f32.mrf.mxu0
        %v1470 = vpop.f32.mrf.mxu0
        %v1471 = vadd.f32 %v1115, %v1470
        %v1472 = vpop.f32.mrf.mxu0
        %1473 = vmatprep.mubr.bf16.mxu0 0
        %1474 = vmatmul.mubr.bf16.gmra.mxu0 %v1302
        %v1475 = vpop.f32.mrf.mxu0
        %v1476 = vadd.f32 %v1120, %v1475
        %v1477 = vpop.f32.mrf.mxu0
        %v1478 = vpop.f32.mrf.mxu0
        %v1479 = vadd.f32 %v1123, %v1478
        %v1480 = vpop.f32.mrf.mxu0
        %1481 = vmatprep.mubr.bf16.mxu0 0
        %1482 = vmatmul.mubr.bf16.gmra.mxu0 %v1304
        %v1483 = vpop.f32.mrf.mxu0
        %v1484 = vadd.f32 %v1128, %v1483
        %v1485 = vpop.f32.mrf.mxu0
        %v1486 = vpop.f32.mrf.mxu0
        %v1487 = vadd.f32 %v1131, %v1486
        %v1488 = vpop.f32.mrf.mxu0
        %1489 = vmatprep.mubr.bf16.mxu0 0
        %1490 = vmatmul.mubr.bf16.gmra.mxu0 %v1306
        %v1491 = vpop.f32.mrf.mxu0
        %v1492 = vadd.f32 %v1136, %v1491
        %v1493 = vpop.f32.mrf.mxu0
        %v1494 = vpop.f32.mrf.mxu0
        %v1495 = vadd.f32 %v1139, %v1494
        %v1496 = vpop.f32.mrf.mxu0
        %1497 = vmatprep.mubr.bf16.mxu0 0
        %1498 = vmatmul.mubr.bf16.gmra.mxu0 %v1308
        %v1499 = vpop.f32.mrf.mxu0
        %v1500 = vadd.f32 %v1144, %v1499
        %v1501 = vpop.f32.mrf.mxu0
        %v1502 = vpop.f32.mrf.mxu0
        %v1503 = vadd.f32 %v1147, %v1502
        %v1504 = vpop.f32.mrf.mxu0
        %1505 = vmatprep.mubr.bf16.mxu0 0
        %1506 = vmatmul.mubr.bf16.gmra.mxu0 %v1310
        %v1507 = vpop.f32.mrf.mxu0
        %v1508 = vadd.f32 %v1152, %v1507
        %v1509 = vpop.f32.mrf.mxu0
        %v1510 = vpop.f32.mrf.mxu0
        %v1511 = vadd.f32 %v1155, %v1510
        %v1512 = vpop.f32.mrf.mxu0
        %1513 = vmatprep.mubr.bf16.mxu0 0
        %1514 = vmatmul.mubr.bf16.gmra.mxu0 %v1312
        %v1515 = vpop.f32.mrf.mxu0
        %v1516 = vadd.f32 %v1160, %v1515
        %v1517 = vpop.f32.mrf.mxu0
        %v1518 = vpop.f32.mrf.mxu0
        %v1519 = vadd.f32 %v1163, %v1518
        %v1520 = vpop.f32.mrf.mxu0
        %1521 = vmatprep.mubr.bf16.mxu0 0
        %1522 = vmatmul.mubr.bf16.gmra.mxu0 %v1314
        %v1523 = vpop.f32.mrf.mxu0
        %v1524 = vadd.f32 %v1168, %v1523
        %v1525 = vpop.f32.mrf.mxu0
        %v1526 = vpop.f32.mrf.mxu0
        %v1527 = vadd.f32 %v1171, %v1526
        %v1528 = vpop.f32.mrf.mxu0
        %1529 = vmatprep.mubr.bf16.mxu0 0
        %1530 = vmatmul.mubr.bf16.gmra.mxu0 %v1316
        %v1531 = vpop.f32.mrf.mxu0
        %v1532 = vadd.f32 %v1176, %v1531
        %v1533 = vpop.f32.mrf.mxu0
        %v1534 = vpop.f32.mrf.mxu0
        %v1535 = vadd.f32 %v1179, %v1534
        %v1536 = vpop.f32.mrf.mxu0
        %1537 = vmatprep.mubr.bf16.mxu0 0
        %1538 = vmatmul.mubr.bf16.gmra.mxu0 %v1318
        %v1539 = vpop.f32.mrf.mxu0
        %v1540 = vadd.f32 %v1184, %v1539
        %v1541 = vpop.f32.mrf.mxu0
        %v1542 = vpop.f32.mrf.mxu0
        %v1543 = vadd.f32 %v1187, %v1542
        %v1544 = vpop.f32.mrf.mxu0
        %1545 = vmatprep.mubr.bf16.mxu0 0
        %1546 = vmatmul.mubr.bf16.gmra.mxu0 %v1320
        %v1547 = vpop.f32.mrf.mxu0
        %v1548 = vadd.f32 %v1192, %v1547
        %v1549 = vpop.f32.mrf.mxu0
        %v1550 = vpop.f32.mrf.mxu0
        %v1551 = vadd.f32 %v1195, %v1550
        %v1552 = vpop.f32.mrf.mxu0
        %1553 = vmatprep.mubr.bf16.mxu0 0
        %1554 = vmatmul.mubr.bf16.gmra.mxu0 %v1322
        %v1555 = vpop.f32.mrf.mxu0
        %v1556 = vadd.f32 %v1200, %v1555
        %v1557 = vpop.f32.mrf.mxu0
        %v1558 = vpop.f32.mrf.mxu0
        %v1559 = vadd.f32 %v1203, %v1558
        %v1560 = vpop.f32.mrf.mxu0
        %1561 = vmatprep.mubr.bf16.mxu0 0
        %1562 = vmatmul.mubr.bf16.gmra.mxu0 %v1324
        %v1563 = vpop.f32.mrf.mxu0
        %v1564 = vadd.f32 %v1208, %v1563
        %v1565 = vpop.f32.mrf.mxu0
        %v1566 = vpop.f32.mrf.mxu0
        %v1567 = vadd.f32 %v1211, %v1566
        %v1568 = vpop.f32.mrf.mxu0
        %1569 = vmatprep.mubr.bf16.mxu0 0
        %1570 = vmatmul.mubr.bf16.gmra.mxu0 %v1326
        %v1571 = vpop.f32.mrf.mxu0
        %v1572 = vadd.f32 %v1216, %v1571
        %v1573 = vpop.f32.mrf.mxu0
        %v1574 = vpop.f32.mrf.mxu0
        %v1575 = vadd.f32 %v1219, %v1574
        %v1576 = vpop.f32.mrf.mxu0
        %1577 = vmatprep.mubr.bf16.mxu0 0
        %1578 = vmatmul.mubr.bf16.gmra.mxu0 %v1328
        %v1579 = vpop.f32.mrf.mxu0
        %v1580 = vadd.f32 %v1224, %v1579
        %v1581 = vpop.f32.mrf.mxu0
        %v1582 = vpop.f32.mrf.mxu0
        %v1583 = vadd.f32 %v1227, %v1582
        %v1584 = vpop.f32.mrf.mxu0
        %1585 = vmatprep.mubr.bf16.mxu0 0
        %1586 = vmatmul.mubr.bf16.gmra.mxu0 %v1330
        %v1587 = vpop.f32.mrf.mxu0
        %v1588 = vadd.f32 %v1232, %v1587
        %v1589 = vpop.f32.mrf.mxu0
        %v1590 = vpop.f32.mrf.mxu0
        %v1591 = vadd.f32 %v1235, %v1590
        %v1592 = vpop.f32.mrf.mxu0
        %1593 = vmatprep.mubr.bf16.mxu0 0
        %1594 = vmatmul.mubr.bf16.gmra.mxu0 %v1332
        %v1595 = vpop.f32.mrf.mxu0
        %v1596 = vadd.f32 %v1240, %v1595
        %v1597 = vpop.f32.mrf.mxu0
        %v1598 = vpop.f32.mrf.mxu0
        %v1599 = vadd.f32 %v1243, %v1598
        %v1600 = vpop.f32.mrf.mxu0
        %1601 = vmatprep.mubr.bf16.mxu0 0
        %1602 = vmatmul.mubr.bf16.gmra.mxu0 %v1334
        %v1603 = vpop.f32.mrf.mxu0
        %v1604 = vadd.f32 %v1248, %v1603
        %v1605 = vpop.f32.mrf.mxu0
        %v1606 = vpop.f32.mrf.mxu0
        %v1607 = vadd.f32 %v1251, %v1606
        %v1608 = vpop.f32.mrf.mxu0
        %1609 = vmatprep.mubr.bf16.mxu0 0
        %1610 = vmatmul.mubr.bf16.gmra.mxu0 %v1336
        %v1611 = vpop.f32.mrf.mxu0
        %v1612 = vadd.f32 %v1256, %v1611
        %v1613 = vpop.f32.mrf.mxu0
        %v1614 = vpop.f32.mrf.mxu0
        %v1615 = vadd.f32 %v1259, %v1614
        %v1616 = vpop.f32.mrf.mxu0
        %1617 = vmatprep.mubr.bf16.mxu0 0
        %1618 = vmatmul.mubr.bf16.gmra.mxu0 %v1338
        %v1619 = vpop.f32.mrf.mxu0
        %v1620 = vadd.f32 %v1264, %v1619
        %v1621 = vpop.f32.mrf.mxu0
        %v1622 = vpop.f32.mrf.mxu0
        %v1623 = vadd.f32 %v1267, %v1622
        %v1624 = vpop.f32.mrf.mxu0
        %1625 = vmatprep.mubr.bf16.mxu0 0
        %1626 = vmatmul.mubr.bf16.gmra.mxu0 %v1340
        %v1627 = vpop.f32.mrf.mxu0
        %v1628 = vadd.f32 %v1272, %v1627
        %v1629 = vpop.f32.mrf.mxu0
        %v1630 = vpop.f32.mrf.mxu0
        %v1631 = vadd.f32 %v1275, %v1630
        %v1632 = vpop.f32.mrf.mxu0
        %1633 = vdwg.mxu0
        %v1634 = vld [vmem:[%s3 + $0x8] sm:$0xf]
        %vm1635 = vcmask 1046528
        %v1636 = vrot.slane %v578, 1
        %v1637 = vrot.slane %v579, 1
        %v1638 = vsel %vm1635, %v1636, %v1637
        %v1639 = vrot.slane %v580, 1
        %v1640 = vsel %vm1635, %v1637, %v1639
        %v1641 = vrot.slane %v581, 1
        %v1642 = vsel %vm1635, %v1639, %v1641
        %v1643 = vrot.slane %v582, 1
        %v1644 = vsel %vm1635, %v1641, %v1643
        %v1645 = vrot.slane %v583, 1
        %v1646 = vsel %vm1635, %v1643, %v1645
        %v1647 = vrot.slane %v584, 1
        %v1648 = vsel %vm1635, %v1645, %v1647
        %v1649 = vrot.slane %v585, 1
        %v1650 = vsel %vm1635, %v1647, %v1649
        %v1651 = vrot.slane %v586, 1
        %v1652 = vsel %vm1635, %v1649, %v1651
        %v1653 = vrot.slane %v587, 1
        %v1654 = vsel %vm1635, %v1651, %v1653
        %v1655 = vrot.slane %v588, 1
        %v1656 = vsel %vm1635, %v1653, %v1655
        %v1657 = vrot.slane %v589, 1
        %v1658 = vsel %vm1635, %v1655, %v1657
        %v1659 = vrot.slane %v590, 1
        %v1660 = vsel %vm1635, %v1657, %v1659
        %v1661 = vrot.slane %v591, 1
        %v1662 = vsel %vm1635, %v1659, %v1661
        %v1663 = vrot.slane %v592, 1
        %v1664 = vsel %vm1635, %v1661, %v1663
        %v1665 = vrot.slane %v593, 1
        %v1666 = vsel %vm1635, %v1663, %v1665
        %v1667 = vrot.slane %v594, 1
        %v1668 = vsel %vm1635, %v1665, %v1667
        %v1669 = vrot.slane %v595, 1
        %v1670 = vsel %vm1635, %v1667, %v1669
        %v1671 = vrot.slane %v596, 1
        %v1672 = vsel %vm1635, %v1669, %v1671
        %v1673 = vrot.slane %v597, 1
        %v1674 = vsel %vm1635, %v1671, %v1673
        %v1675 = vrot.slane %v598, 1
        %v1676 = vsel %vm1635, %v1673, %v1675
        %v1677 = vrot.slane %v599, 1
        %v1678 = vsel %vm1635, %v1675, %v1677
        %v1679 = vrot.slane %v600, 1
        %v1680 = vsel %vm1635, %v1677, %v1679
        %v1681 = vrot.slane %v601, 1
        %v1682 = vsel %vm1635, %v1679, %v1681
        %v1683 = vrot.slane %v602, 1
        %v1684 = vsel %vm1635, %v1681, %v1683
        %v1685 = vrot.slane %v603, 1
        %v1686 = vsel %vm1635, %v1683, %v1685
        %v1687 = vrot.slane %v604, 1
        %v1688 = vsel %vm1635, %v1685, %v1687
        %v1689 = vrot.slane %v605, 1
        %v1690 = vsel %vm1635, %v1687, %v1689
        %v1691 = vrot.slane %v606, 1
        %v1692 = vsel %vm1635, %v1689, %v1691
        %v1693 = vrot.slane %v607, 1
        %v1694 = vsel %vm1635, %v1691, %v1693
        %v1695 = vrot.slane %v608, 1
        %v1696 = vsel %vm1635, %v1693, %v1695
        %v1697 = vrot.slane %v609, 1
        %v1698 = vsel %vm1635, %v1695, %v1697
        %v1699 = vrot.slane %v622, 1
        %v1700 = vsel %vm1635, %v1697, %v1699
        %v1702 = vsel %vm888, %v1638, 0
        %v1705 = vsel %vm888, %v1640, 0
        %v1708 = vsel %vm888, %v1642, 0
        %v1711 = vsel %vm888, %v1644, 0
        %v1714 = vsel %vm888, %v1646, 0
        %v1717 = vsel %vm888, %v1648, 0
        %v1720 = vsel %vm888, %v1650, 0
        %v1723 = vsel %vm888, %v1652, 0
        %v1726 = vsel %vm888, %v1654, 0
        %v1729 = vsel %vm888, %v1656, 0
        %v1732 = vsel %vm888, %v1658, 0
        %v1735 = vsel %vm888, %v1660, 0
        %v1738 = vsel %vm888, %v1662, 0
        %v1741 = vsel %vm888, %v1664, 0
        %v1744 = vsel %vm888, %v1666, 0
        %v1747 = vsel %vm888, %v1668, 0
        %v1750 = vsel %vm888, %v1670, 0
        %v1753 = vsel %vm888, %v1672, 0
        %v1756 = vsel %vm888, %v1674, 0
        %v1759 = vsel %vm888, %v1676, 0
        %v1762 = vsel %vm888, %v1678, 0
        %v1765 = vsel %vm888, %v1680, 0
        %v1768 = vsel %vm888, %v1682, 0
        %v1771 = vsel %vm888, %v1684, 0
        %v1774 = vsel %vm888, %v1686, 0
        %v1777 = vsel %vm888, %v1688, 0
        %v1780 = vsel %vm888, %v1690, 0
        %v1783 = vsel %vm888, %v1692, 0
        %v1786 = vsel %vm888, %v1694, 0
        %v1789 = vsel %vm888, %v1696, 0
        %v1792 = vsel %vm888, %v1698, 0
        %v1795 = vsel %vm888, %v1700, 0
        %v1798 = vsel %vm985, %v1634, 0
        %1800 = vmatprep.subr.bf16.mxu0 0
        %1801 = vmatpush1.bf16.msra.mxu0 0
        %1802 = vmatprep.subr.bf16.mxu0 0
        %1803 = vmatpush1.bf16.msra.mxu0 0
        %1804 = vmatprep.subr.bf16.mxu0 0
        %1805 = vmatpush1.bf16.msra.mxu0 0
        %1806 = vmatprep.subr.bf16.mxu0 0
        %1807 = vmatpush1.bf16.msra.mxu0 0
        %1808 = vmatprep.subr.bf16.mxu0 0
        %1809 = vmatpush1.bf16.msra.mxu0 0
        %1810 = vmatprep.subr.bf16.mxu0 0
        %1811 = vmatpush1.bf16.msra.mxu0 0
        %1812 = vmatprep.subr.bf16.mxu0 0
        %1813 = vmatpush1.bf16.msra.mxu0 0
        %1814 = vmatprep.subr.bf16.mxu0 0
        %1815 = vmatpush1.bf16.msra.mxu0 %v1798
        %1816 = vmatprep.subr.bf16.mxu0 0
        %1817 = vmatpush2.bf16.msra.mxu0 0
        %1818 = vmatprep.subr.bf16.mxu0 0
        %1819 = vmatpush2.bf16.msra.mxu0 0
        %1820 = vmatprep.subr.bf16.mxu0 0
        %1821 = vmatpush2.bf16.msra.mxu0 0
        %1822 = vmatprep.subr.bf16.mxu0 0
        %1823 = vmatpush2.bf16.msra.mxu0 0
        %1824 = vmatprep.subr.bf16.mxu0 0
        %1825 = vmatpush2.bf16.msra.mxu0 0
        %1826 = vmatprep.subr.bf16.mxu0 0
        %1827 = vmatpush2.bf16.msra.mxu0 0
        %1828 = vmatprep.subr.bf16.mxu0 0
        %1829 = vmatpush2.bf16.msra.mxu0 0
        %1830 = vmatprep.subr.bf16.mxu0 0
        %1831 = vmatpush2.bf16.msra.mxu0 0
        %1832 = vmatprep.mubr.bf16.mxu0 0
        %1833 = vmatmul.mubr.bf16.gmra.mxu0 %v1702
        %v1834 = vpop.f32.mrf.mxu0
        %v1835 = vadd.f32 0.0, %v1834
        %v1836 = vpop.f32.mrf.mxu0
        %v1837 = vpop.f32.mrf.mxu0
        %v1838 = vadd.f32 0.0, %v1837
        %v1839 = vpop.f32.mrf.mxu0
        %1840 = vmatprep.mubr.bf16.mxu0 0
        %1841 = vmatmul.mubr.bf16.gmra.mxu0 %v1705
        %v1842 = vpop.f32.mrf.mxu0
        %v1843 = vadd.f32 0.0, %v1842
        %v1844 = vpop.f32.mrf.mxu0
        %v1845 = vpop.f32.mrf.mxu0
        %v1846 = vadd.f32 0.0, %v1845
        %v1847 = vpop.f32.mrf.mxu0
        %1848 = vmatprep.mubr.bf16.mxu0 0
        %1849 = vmatmul.mubr.bf16.gmra.mxu0 %v1708
        %v1850 = vpop.f32.mrf.mxu0
        %v1851 = vadd.f32 0.0, %v1850
        %v1852 = vpop.f32.mrf.mxu0
        %v1853 = vpop.f32.mrf.mxu0
        %v1854 = vadd.f32 0.0, %v1853
        %v1855 = vpop.f32.mrf.mxu0
        %1856 = vmatprep.mubr.bf16.mxu0 0
        %1857 = vmatmul.mubr.bf16.gmra.mxu0 %v1711
        %v1858 = vpop.f32.mrf.mxu0
        %v1859 = vadd.f32 0.0, %v1858
        %v1860 = vpop.f32.mrf.mxu0
        %v1861 = vpop.f32.mrf.mxu0
        %v1862 = vadd.f32 0.0, %v1861
        %v1863 = vpop.f32.mrf.mxu0
        %1864 = vmatprep.mubr.bf16.mxu0 0
        %1865 = vmatmul.mubr.bf16.gmra.mxu0 %v1714
        %v1866 = vpop.f32.mrf.mxu0
        %v1867 = vadd.f32 0.0, %v1866
        %v1868 = vpop.f32.mrf.mxu0
        %v1869 = vpop.f32.mrf.mxu0
        %v1870 = vadd.f32 0.0, %v1869
        %v1871 = vpop.f32.mrf.mxu0
        %1872 = vmatprep.mubr.bf16.mxu0 0
        %1873 = vmatmul.mubr.bf16.gmra.mxu0 %v1717
        %v1874 = vpop.f32.mrf.mxu0
        %v1875 = vadd.f32 0.0, %v1874
        %v1876 = vpop.f32.mrf.mxu0
        %v1877 = vpop.f32.mrf.mxu0
        %v1878 = vadd.f32 0.0, %v1877
        %v1879 = vpop.f32.mrf.mxu0
        %1880 = vmatprep.mubr.bf16.mxu0 0
        %1881 = vmatmul.mubr.bf16.gmra.mxu0 %v1720
        %v1882 = vpop.f32.mrf.mxu0
        %v1883 = vadd.f32 0.0, %v1882
        %v1884 = vpop.f32.mrf.mxu0
        %v1885 = vpop.f32.mrf.mxu0
        %v1886 = vadd.f32 0.0, %v1885
        %v1887 = vpop.f32.mrf.mxu0
        %1888 = vmatprep.mubr.bf16.mxu0 0
        %1889 = vmatmul.mubr.bf16.gmra.mxu0 %v1723
        %v1890 = vpop.f32.mrf.mxu0
        %v1891 = vadd.f32 0.0, %v1890
        %v1892 = vpop.f32.mrf.mxu0
        %v1893 = vpop.f32.mrf.mxu0
        %v1894 = vadd.f32 0.0, %v1893
        %v1895 = vpop.f32.mrf.mxu0
        %1896 = vmatprep.mubr.bf16.mxu0 0
        %1897 = vmatmul.mubr.bf16.gmra.mxu0 %v1726
        %v1898 = vpop.f32.mrf.mxu0
        %v1899 = vadd.f32 0.0, %v1898
        %v1900 = vpop.f32.mrf.mxu0
        %v1901 = vpop.f32.mrf.mxu0
        %v1902 = vadd.f32 0.0, %v1901
        %v1903 = vpop.f32.mrf.mxu0
        %1904 = vmatprep.mubr.bf16.mxu0 0
        %1905 = vmatmul.mubr.bf16.gmra.mxu0 %v1729
        %v1906 = vpop.f32.mrf.mxu0
        %v1907 = vadd.f32 0.0, %v1906
        %v1908 = vpop.f32.mrf.mxu0
        %v1909 = vpop.f32.mrf.mxu0
        %v1910 = vadd.f32 0.0, %v1909
        %v1911 = vpop.f32.mrf.mxu0
        %1912 = vmatprep.mubr.bf16.mxu0 0
        %1913 = vmatmul.mubr.bf16.gmra.mxu0 %v1732
        %v1914 = vpop.f32.mrf.mxu0
        %v1915 = vadd.f32 0.0, %v1914
        %v1916 = vpop.f32.mrf.mxu0
        %v1917 = vpop.f32.mrf.mxu0
        %v1918 = vadd.f32 0.0, %v1917
        %v1919 = vpop.f32.mrf.mxu0
        %1920 = vmatprep.mubr.bf16.mxu0 0
        %1921 = vmatmul.mubr.bf16.gmra.mxu0 %v1735
        %v1922 = vpop.f32.mrf.mxu0
        %v1923 = vadd.f32 0.0, %v1922
        %v1924 = vpop.f32.mrf.mxu0
        %v1925 = vpop.f32.mrf.mxu0
        %v1926 = vadd.f32 0.0, %v1925
        %v1927 = vpop.f32.mrf.mxu0
        %1928 = vmatprep.mubr.bf16.mxu0 0
        %1929 = vmatmul.mubr.bf16.gmra.mxu0 %v1738
        %v1930 = vpop.f32.mrf.mxu0
        %v1931 = vadd.f32 0.0, %v1930
        %v1932 = vpop.f32.mrf.mxu0
        %v1933 = vpop.f32.mrf.mxu0
        %v1934 = vadd.f32 0.0, %v1933
        %v1935 = vpop.f32.mrf.mxu0
        %1936 = vmatprep.mubr.bf16.mxu0 0
        %1937 = vmatmul.mubr.bf16.gmra.mxu0 %v1741
        %v1938 = vpop.f32.mrf.mxu0
        %v1939 = vadd.f32 0.0, %v1938
        %v1940 = vpop.f32.mrf.mxu0
        %v1941 = vpop.f32.mrf.mxu0
        %v1942 = vadd.f32 0.0, %v1941
        %v1943 = vpop.f32.mrf.mxu0
        %1944 = vmatprep.mubr.bf16.mxu0 0
        %1945 = vmatmul.mubr.bf16.gmra.mxu0 %v1744
        %v1946 = vpop.f32.mrf.mxu0
        %v1947 = vadd.f32 0.0, %v1946
        %v1948 = vpop.f32.mrf.mxu0
        %v1949 = vpop.f32.mrf.mxu0
        %v1950 = vadd.f32 0.0, %v1949
        %v1951 = vpop.f32.mrf.mxu0
        %1952 = vmatprep.mubr.bf16.mxu0 0
        %1953 = vmatmul.mubr.bf16.gmra.mxu0 %v1747
        %v1954 = vpop.f32.mrf.mxu0
        %v1955 = vadd.f32 0.0, %v1954
        %v1956 = vpop.f32.mrf.mxu0
        %v1957 = vpop.f32.mrf.mxu0
        %v1958 = vadd.f32 0.0, %v1957
        %v1959 = vpop.f32.mrf.mxu0
        %1960 = vmatprep.mubr.bf16.mxu0 0
        %1961 = vmatmul.mubr.bf16.gmra.mxu0 %v1750
        %v1962 = vpop.f32.mrf.mxu0
        %v1963 = vadd.f32 0.0, %v1962
        %v1964 = vpop.f32.mrf.mxu0
        %v1965 = vpop.f32.mrf.mxu0
        %v1966 = vadd.f32 0.0, %v1965
        %v1967 = vpop.f32.mrf.mxu0
        %1968 = vmatprep.mubr.bf16.mxu0 0
        %1969 = vmatmul.mubr.bf16.gmra.mxu0 %v1753
        %v1970 = vpop.f32.mrf.mxu0
        %v1971 = vadd.f32 0.0, %v1970
        %v1972 = vpop.f32.mrf.mxu0
        %v1973 = vpop.f32.mrf.mxu0
        %v1974 = vadd.f32 0.0, %v1973
        %v1975 = vpop.f32.mrf.mxu0
        %1976 = vmatprep.mubr.bf16.mxu0 0
        %1977 = vmatmul.mubr.bf16.gmra.mxu0 %v1756
        %v1978 = vpop.f32.mrf.mxu0
        %v1979 = vadd.f32 0.0, %v1978
        %v1980 = vpop.f32.mrf.mxu0
        %v1981 = vpop.f32.mrf.mxu0
        %v1982 = vadd.f32 0.0, %v1981
        %v1983 = vpop.f32.mrf.mxu0
        %1984 = vmatprep.mubr.bf16.mxu0 0
        %1985 = vmatmul.mubr.bf16.gmra.mxu0 %v1759
        %v1986 = vpop.f32.mrf.mxu0
        %v1987 = vadd.f32 0.0, %v1986
        %v1988 = vpop.f32.mrf.mxu0
        %v1989 = vpop.f32.mrf.mxu0
        %v1990 = vadd.f32 0.0, %v1989
        %v1991 = vpop.f32.mrf.mxu0
        %1992 = vmatprep.mubr.bf16.mxu0 0
        %1993 = vmatmul.mubr.bf16.gmra.mxu0 %v1762
        %v1994 = vpop.f32.mrf.mxu0
        %v1995 = vadd.f32 0.0, %v1994
        %v1996 = vpop.f32.mrf.mxu0
        %v1997 = vpop.f32.mrf.mxu0
        %v1998 = vadd.f32 0.0, %v1997
        %v1999 = vpop.f32.mrf.mxu0
        %2000 = vmatprep.mubr.bf16.mxu0 0
        %2001 = vmatmul.mubr.bf16.gmra.mxu0 %v1765
        %v2002 = vpop.f32.mrf.mxu0
        %v2003 = vadd.f32 0.0, %v2002
        %v2004 = vpop.f32.mrf.mxu0
        %v2005 = vpop.f32.mrf.mxu0
        %v2006 = vadd.f32 0.0, %v2005
        %v2007 = vpop.f32.mrf.mxu0
        %2008 = vmatprep.mubr.bf16.mxu0 0
        %2009 = vmatmul.mubr.bf16.gmra.mxu0 %v1768
        %v2010 = vpop.f32.mrf.mxu0
        %v2011 = vadd.f32 0.0, %v2010
        %v2012 = vpop.f32.mrf.mxu0
        %v2013 = vpop.f32.mrf.mxu0
        %v2014 = vadd.f32 0.0, %v2013
        %v2015 = vpop.f32.mrf.mxu0
        %2016 = vmatprep.mubr.bf16.mxu0 0
        %2017 = vmatmul.mubr.bf16.gmra.mxu0 %v1771
        %v2018 = vpop.f32.mrf.mxu0
        %v2019 = vadd.f32 0.0, %v2018
        %v2020 = vpop.f32.mrf.mxu0
        %v2021 = vpop.f32.mrf.mxu0
        %v2022 = vadd.f32 0.0, %v2021
        %v2023 = vpop.f32.mrf.mxu0
        %2024 = vmatprep.mubr.bf16.mxu0 0
        %2025 = vmatmul.mubr.bf16.gmra.mxu0 %v1774
        %v2026 = vpop.f32.mrf.mxu0
        %v2027 = vadd.f32 0.0, %v2026
        %v2028 = vpop.f32.mrf.mxu0
        %v2029 = vpop.f32.mrf.mxu0
        %v2030 = vadd.f32 0.0, %v2029
        %v2031 = vpop.f32.mrf.mxu0
        %2032 = vmatprep.mubr.bf16.mxu0 0
        %2033 = vmatmul.mubr.bf16.gmra.mxu0 %v1777
        %v2034 = vpop.f32.mrf.mxu0
        %v2035 = vadd.f32 0.0, %v2034
        %v2036 = vpop.f32.mrf.mxu0
        %v2037 = vpop.f32.mrf.mxu0
        %v2038 = vadd.f32 0.0, %v2037
        %v2039 = vpop.f32.mrf.mxu0
        %2040 = vmatprep.mubr.bf16.mxu0 0
        %2041 = vmatmul.mubr.bf16.gmra.mxu0 %v1780
        %v2042 = vpop.f32.mrf.mxu0
        %v2043 = vadd.f32 0.0, %v2042
        %v2044 = vpop.f32.mrf.mxu0
        %v2045 = vpop.f32.mrf.mxu0
        %v2046 = vadd.f32 0.0, %v2045
        %v2047 = vpop.f32.mrf.mxu0
        %2048 = vmatprep.mubr.bf16.mxu0 0
        %2049 = vmatmul.mubr.bf16.gmra.mxu0 %v1783
        %v2050 = vpop.f32.mrf.mxu0
        %v2051 = vadd.f32 0.0, %v2050
        %v2052 = vpop.f32.mrf.mxu0
        %v2053 = vpop.f32.mrf.mxu0
        %v2054 = vadd.f32 0.0, %v2053
        %v2055 = vpop.f32.mrf.mxu0
        %2056 = vmatprep.mubr.bf16.mxu0 0
        %2057 = vmatmul.mubr.bf16.gmra.mxu0 %v1786
        %v2058 = vpop.f32.mrf.mxu0
        %v2059 = vadd.f32 0.0, %v2058
        %v2060 = vpop.f32.mrf.mxu0
        %v2061 = vpop.f32.mrf.mxu0
        %v2062 = vadd.f32 0.0, %v2061
        %v2063 = vpop.f32.mrf.mxu0
        %2064 = vmatprep.mubr.bf16.mxu0 0
        %2065 = vmatmul.mubr.bf16.gmra.mxu0 %v1789
        %v2066 = vpop.f32.mrf.mxu0
        %v2067 = vadd.f32 0.0, %v2066
        %v2068 = vpop.f32.mrf.mxu0
        %v2069 = vpop.f32.mrf.mxu0
        %v2070 = vadd.f32 0.0, %v2069
        %v2071 = vpop.f32.mrf.mxu0
        %2072 = vmatprep.mubr.bf16.mxu0 0
        %2073 = vmatmul.mubr.bf16.gmra.mxu0 %v1792
        %v2074 = vpop.f32.mrf.mxu0
        %v2075 = vadd.f32 0.0, %v2074
        %v2076 = vpop.f32.mrf.mxu0
        %v2077 = vpop.f32.mrf.mxu0
        %v2078 = vadd.f32 0.0, %v2077
        %v2079 = vpop.f32.mrf.mxu0
        %2080 = vmatprep.mubr.bf16.mxu0 0
        %2081 = vmatmul.mubr.bf16.gmra.mxu0 %v1795
        %v2082 = vpop.f32.mrf.mxu0
        %v2083 = vadd.f32 0.0, %v2082
        %v2084 = vpop.f32.mrf.mxu0
        %v2085 = vpop.f32.mrf.mxu0
        %v2086 = vadd.f32 0.0, %v2085
        %v2087 = vpop.f32.mrf.mxu0
        %2088 = vdwg.mxu0
        %v2089 = vadd.f32 %v1380, %v1835
        %v2090 = vadd.f32 %v1383, %v1838
        %v2091 = vadd.f32 %v1388, %v1843
        %v2092 = vadd.f32 %v1391, %v1846
        %v2093 = vadd.f32 %v1396, %v1851
        %v2094 = vadd.f32 %v1399, %v1854
        %v2095 = vadd.f32 %v1404, %v1859
        %v2096 = vadd.f32 %v1407, %v1862
        %v2097 = vadd.f32 %v1412, %v1867
        %v2098 = vadd.f32 %v1415, %v1870
        %v2099 = vadd.f32 %v1420, %v1875
        %v2100 = vadd.f32 %v1423, %v1878
        %v2101 = vadd.f32 %v1428, %v1883
        %v2102 = vadd.f32 %v1431, %v1886
        %v2103 = vadd.f32 %v1436, %v1891
        %v2104 = vadd.f32 %v1439, %v1894
        %v2105 = vadd.f32 %v1444, %v1899
        %v2106 = vadd.f32 %v1447, %v1902
        %v2107 = vadd.f32 %v1452, %v1907
        %v2108 = vadd.f32 %v1455, %v1910
        %v2109 = vadd.f32 %v1460, %v1915
        %v2110 = vadd.f32 %v1463, %v1918
        %v2111 = vadd.f32 %v1468, %v1923
        %v2112 = vadd.f32 %v1471, %v1926
        %v2113 = vadd.f32 %v1476, %v1931
        %v2114 = vadd.f32 %v1479, %v1934
        %v2115 = vadd.f32 %v1484, %v1939
        %v2116 = vadd.f32 %v1487, %v1942
        %v2117 = vadd.f32 %v1492, %v1947
        %v2118 = vadd.f32 %v1495, %v1950
        %v2119 = vadd.f32 %v1500, %v1955
        %v2120 = vadd.f32 %v1503, %v1958
        %v2121 = vadd.f32 %v1508, %v1963
        %v2122 = vadd.f32 %v1511, %v1966
        %v2123 = vadd.f32 %v1516, %v1971
        %v2124 = vadd.f32 %v1519, %v1974
        %v2125 = vadd.f32 %v1524, %v1979
        %v2126 = vadd.f32 %v1527, %v1982
        %v2127 = vadd.f32 %v1532, %v1987
        %v2128 = vadd.f32 %v1535, %v1990
        %v2129 = vadd.f32 %v1540, %v1995
        %v2130 = vadd.f32 %v1543, %v1998
        %v2131 = vadd.f32 %v1548, %v2003
        %v2132 = vadd.f32 %v1551, %v2006
        %v2133 = vadd.f32 %v1556, %v2011
        %v2134 = vadd.f32 %v1559, %v2014
        %v2135 = vadd.f32 %v1564, %v2019
        %v2136 = vadd.f32 %v1567, %v2022
        %v2137 = vadd.f32 %v1572, %v2027
        %v2138 = vadd.f32 %v1575, %v2030
        %v2139 = vadd.f32 %v1580, %v2035
        %v2140 = vadd.f32 %v1583, %v2038
        %v2141 = vadd.f32 %v1588, %v2043
        %v2142 = vadd.f32 %v1591, %v2046
        %v2143 = vadd.f32 %v1596, %v2051
        %v2144 = vadd.f32 %v1599, %v2054
        %v2145 = vadd.f32 %v1604, %v2059
        %v2146 = vadd.f32 %v1607, %v2062
        %v2147 = vadd.f32 %v1612, %v2067
        %v2148 = vadd.f32 %v1615, %v2070
        %v2149 = vadd.f32 %v1620, %v2075
        %v2150 = vadd.f32 %v1623, %v2078
        %v2151 = vadd.f32 %v1628, %v2083
        %v2152 = vadd.f32 %v1631, %v2086
        %v2153 = vld [vmem:[%s3 + $0xc] sm:$0xf]
        %v2154 = vrot.slane %v623, 1
        %v2155 = vsel %vm1635, %v1699, %v2154
        %v2157 = vsel %vm888, %v2155, 0
        %v2160 = vsel %vm985, %v2153, 0
        %2162 = vmatprep.subr.bf16.mxu0 0
        %2163 = vmatpush1.bf16.msra.mxu0 0
        %2164 = vmatprep.subr.bf16.mxu0 0
        %2165 = vmatpush1.bf16.msra.mxu0 0
        %2166 = vmatprep.subr.bf16.mxu0 0
        %2167 = vmatpush1.bf16.msra.mxu0 0
        %2168 = vmatprep.subr.bf16.mxu0 0
        %2169 = vmatpush1.bf16.msra.mxu0 0
        %2170 = vmatprep.subr.bf16.mxu0 0
        %2171 = vmatpush1.bf16.msra.mxu0 0
        %2172 = vmatprep.subr.bf16.mxu0 0
        %2173 = vmatpush1.bf16.msra.mxu0 0
        %2174 = vmatprep.subr.bf16.mxu0 0
        %2175 = vmatpush1.bf16.msra.mxu0 0
        %2176 = vmatprep.subr.bf16.mxu0 0
        %2177 = vmatpush1.bf16.msra.mxu0 %v2160
        %2178 = vmatprep.subr.bf16.mxu0 0
        %2179 = vmatpush2.bf16.msra.mxu0 0
        %2180 = vmatprep.subr.bf16.mxu0 0
        %2181 = vmatpush2.bf16.msra.mxu0 0
        %2182 = vmatprep.subr.bf16.mxu0 0
        %2183 = vmatpush2.bf16.msra.mxu0 0
        %2184 = vmatprep.subr.bf16.mxu0 0
        %2185 = vmatpush2.bf16.msra.mxu0 0
        %2186 = vmatprep.subr.bf16.mxu0 0
        %2187 = vmatpush2.bf16.msra.mxu0 0
        %2188 = vmatprep.subr.bf16.mxu0 0
        %2189 = vmatpush2.bf16.msra.mxu0 0
        %2190 = vmatprep.subr.bf16.mxu0 0
        %2191 = vmatpush2.bf16.msra.mxu0 0
        %2192 = vmatprep.subr.bf16.mxu0 0
        %2193 = vmatpush2.bf16.msra.mxu0 0
        %2194 = vmatprep.mubr.bf16.mxu0 0
        %2195 = vmatmul.mubr.bf16.gmra.mxu0 %v1705
        %v2196 = vpop.f32.mrf.mxu0
        %v2197 = vadd.f32 0.0, %v2196
        %v2198 = vpop.f32.mrf.mxu0
        %v2199 = vpop.f32.mrf.mxu0
        %v2200 = vadd.f32 0.0, %v2199
        %v2201 = vpop.f32.mrf.mxu0
        %2202 = vmatprep.mubr.bf16.mxu0 0
        %2203 = vmatmul.mubr.bf16.gmra.mxu0 %v1708
        %v2204 = vpop.f32.mrf.mxu0
        %v2205 = vadd.f32 0.0, %v2204
        %v2206 = vpop.f32.mrf.mxu0
        %v2207 = vpop.f32.mrf.mxu0
        %v2208 = vadd.f32 0.0, %v2207
        %v2209 = vpop.f32.mrf.mxu0
        %2210 = vmatprep.mubr.bf16.mxu0 0
        %2211 = vmatmul.mubr.bf16.gmra.mxu0 %v1711
        %v2212 = vpop.f32.mrf.mxu0
        %v2213 = vadd.f32 0.0, %v2212
        %v2214 = vpop.f32.mrf.mxu0
        %v2215 = vpop.f32.mrf.mxu0
        %v2216 = vadd.f32 0.0, %v2215
        %v2217 = vpop.f32.mrf.mxu0
        %2218 = vmatprep.mubr.bf16.mxu0 0
        %2219 = vmatmul.mubr.bf16.gmra.mxu0 %v1714
        %v2220 = vpop.f32.mrf.mxu0
        %v2221 = vadd.f32 0.0, %v2220
        %v2222 = vpop.f32.mrf.mxu0
        %v2223 = vpop.f32.mrf.mxu0
        %v2224 = vadd.f32 0.0, %v2223
        %v2225 = vpop.f32.mrf.mxu0
        %2226 = vmatprep.mubr.bf16.mxu0 0
        %2227 = vmatmul.mubr.bf16.gmra.mxu0 %v1717
        %v2228 = vpop.f32.mrf.mxu0
        %v2229 = vadd.f32 0.0, %v2228
        %v2230 = vpop.f32.mrf.mxu0
        %v2231 = vpop.f32.mrf.mxu0
        %v2232 = vadd.f32 0.0, %v2231
        %v2233 = vpop.f32.mrf.mxu0
        %2234 = vmatprep.mubr.bf16.mxu0 0
        %2235 = vmatmul.mubr.bf16.gmra.mxu0 %v1720
        %v2236 = vpop.f32.mrf.mxu0
        %v2237 = vadd.f32 0.0, %v2236
        %v2238 = vpop.f32.mrf.mxu0
        %v2239 = vpop.f32.mrf.mxu0
        %v2240 = vadd.f32 0.0, %v2239
        %v2241 = vpop.f32.mrf.mxu0
        %2242 = vmatprep.mubr.bf16.mxu0 0
        %2243 = vmatmul.mubr.bf16.gmra.mxu0 %v1723
        %v2244 = vpop.f32.mrf.mxu0
        %v2245 = vadd.f32 0.0, %v2244
        %v2246 = vpop.f32.mrf.mxu0
        %v2247 = vpop.f32.mrf.mxu0
        %v2248 = vadd.f32 0.0, %v2247
        %v2249 = vpop.f32.mrf.mxu0
        %2250 = vmatprep.mubr.bf16.mxu0 0
        %2251 = vmatmul.mubr.bf16.gmra.mxu0 %v1726
        %v2252 = vpop.f32.mrf.mxu0
        %v2253 = vadd.f32 0.0, %v2252
        %v2254 = vpop.f32.mrf.mxu0
        %v2255 = vpop.f32.mrf.mxu0
        %v2256 = vadd.f32 0.0, %v2255
        %v2257 = vpop.f32.mrf.mxu0
        %2258 = vmatprep.mubr.bf16.mxu0 0
        %2259 = vmatmul.mubr.bf16.gmra.mxu0 %v1729
        %v2260 = vpop.f32.mrf.mxu0
        %v2261 = vadd.f32 0.0, %v2260
        %v2262 = vpop.f32.mrf.mxu0
        %v2263 = vpop.f32.mrf.mxu0
        %v2264 = vadd.f32 0.0, %v2263
        %v2265 = vpop.f32.mrf.mxu0
        %2266 = vmatprep.mubr.bf16.mxu0 0
        %2267 = vmatmul.mubr.bf16.gmra.mxu0 %v1732
        %v2268 = vpop.f32.mrf.mxu0
        %v2269 = vadd.f32 0.0, %v2268
        %v2270 = vpop.f32.mrf.mxu0
        %v2271 = vpop.f32.mrf.mxu0
        %v2272 = vadd.f32 0.0, %v2271
        %v2273 = vpop.f32.mrf.mxu0
        %2274 = vmatprep.mubr.bf16.mxu0 0
        %2275 = vmatmul.mubr.bf16.gmra.mxu0 %v1735
        %v2276 = vpop.f32.mrf.mxu0
        %v2277 = vadd.f32 0.0, %v2276
        %v2278 = vpop.f32.mrf.mxu0
        %v2279 = vpop.f32.mrf.mxu0
        %v2280 = vadd.f32 0.0, %v2279
        %v2281 = vpop.f32.mrf.mxu0
        %2282 = vmatprep.mubr.bf16.mxu0 0
        %2283 = vmatmul.mubr.bf16.gmra.mxu0 %v1738
        %v2284 = vpop.f32.mrf.mxu0
        %v2285 = vadd.f32 0.0, %v2284
        %v2286 = vpop.f32.mrf.mxu0
        %v2287 = vpop.f32.mrf.mxu0
        %v2288 = vadd.f32 0.0, %v2287
        %v2289 = vpop.f32.mrf.mxu0
        %2290 = vmatprep.mubr.bf16.mxu0 0
        %2291 = vmatmul.mubr.bf16.gmra.mxu0 %v1741
        %v2292 = vpop.f32.mrf.mxu0
        %v2293 = vadd.f32 0.0, %v2292
        %v2294 = vpop.f32.mrf.mxu0
        %v2295 = vpop.f32.mrf.mxu0
        %v2296 = vadd.f32 0.0, %v2295
        %v2297 = vpop.f32.mrf.mxu0
        %2298 = vmatprep.mubr.bf16.mxu0 0
        %2299 = vmatmul.mubr.bf16.gmra.mxu0 %v1744
        %v2300 = vpop.f32.mrf.mxu0
        %v2301 = vadd.f32 0.0, %v2300
        %v2302 = vpop.f32.mrf.mxu0
        %v2303 = vpop.f32.mrf.mxu0
        %v2304 = vadd.f32 0.0, %v2303
        %v2305 = vpop.f32.mrf.mxu0
        %2306 = vmatprep.mubr.bf16.mxu0 0
        %2307 = vmatmul.mubr.bf16.gmra.mxu0 %v1747
        %v2308 = vpop.f32.mrf.mxu0
        %v2309 = vadd.f32 0.0, %v2308
        %v2310 = vpop.f32.mrf.mxu0
        %v2311 = vpop.f32.mrf.mxu0
        %v2312 = vadd.f32 0.0, %v2311
        %v2313 = vpop.f32.mrf.mxu0
        %2314 = vmatprep.mubr.bf16.mxu0 0
        %2315 = vmatmul.mubr.bf16.gmra.mxu0 %v1750
        %v2316 = vpop.f32.mrf.mxu0
        %v2317 = vadd.f32 0.0, %v2316
        %v2318 = vpop.f32.mrf.mxu0
        %v2319 = vpop.f32.mrf.mxu0
        %v2320 = vadd.f32 0.0, %v2319
        %v2321 = vpop.f32.mrf.mxu0
        %2322 = vmatprep.mubr.bf16.mxu0 0
        %2323 = vmatmul.mubr.bf16.gmra.mxu0 %v1753
        %v2324 = vpop.f32.mrf.mxu0
        %v2325 = vadd.f32 0.0, %v2324
        %v2326 = vpop.f32.mrf.mxu0
        %v2327 = vpop.f32.mrf.mxu0
        %v2328 = vadd.f32 0.0, %v2327
        %v2329 = vpop.f32.mrf.mxu0
        %2330 = vmatprep.mubr.bf16.mxu0 0
        %2331 = vmatmul.mubr.bf16.gmra.mxu0 %v1756
        %v2332 = vpop.f32.mrf.mxu0
        %v2333 = vadd.f32 0.0, %v2332
        %v2334 = vpop.f32.mrf.mxu0
        %v2335 = vpop.f32.mrf.mxu0
        %v2336 = vadd.f32 0.0, %v2335
        %v2337 = vpop.f32.mrf.mxu0
        %2338 = vmatprep.mubr.bf16.mxu0 0
        %2339 = vmatmul.mubr.bf16.gmra.mxu0 %v1759
        %v2340 = vpop.f32.mrf.mxu0
        %v2341 = vadd.f32 0.0, %v2340
        %v2342 = vpop.f32.mrf.mxu0
        %v2343 = vpop.f32.mrf.mxu0
        %v2344 = vadd.f32 0.0, %v2343
        %v2345 = vpop.f32.mrf.mxu0
        %2346 = vmatprep.mubr.bf16.mxu0 0
        %2347 = vmatmul.mubr.bf16.gmra.mxu0 %v1762
        %v2348 = vpop.f32.mrf.mxu0
        %v2349 = vadd.f32 0.0, %v2348
        %v2350 = vpop.f32.mrf.mxu0
        %v2351 = vpop.f32.mrf.mxu0
        %v2352 = vadd.f32 0.0, %v2351
        %v2353 = vpop.f32.mrf.mxu0
        %2354 = vmatprep.mubr.bf16.mxu0 0
        %2355 = vmatmul.mubr.bf16.gmra.mxu0 %v1765
        %v2356 = vpop.f32.mrf.mxu0
        %v2357 = vadd.f32 0.0, %v2356
        %v2358 = vpop.f32.mrf.mxu0
        %v2359 = vpop.f32.mrf.mxu0
        %v2360 = vadd.f32 0.0, %v2359
        %v2361 = vpop.f32.mrf.mxu0
        %2362 = vmatprep.mubr.bf16.mxu0 0
        %2363 = vmatmul.mubr.bf16.gmra.mxu0 %v1768
        %v2364 = vpop.f32.mrf.mxu0
        %v2365 = vadd.f32 0.0, %v2364
        %v2366 = vpop.f32.mrf.mxu0
        %v2367 = vpop.f32.mrf.mxu0
        %v2368 = vadd.f32 0.0, %v2367
        %v2369 = vpop.f32.mrf.mxu0
        %2370 = vmatprep.mubr.bf16.mxu0 0
        %2371 = vmatmul.mubr.bf16.gmra.mxu0 %v1771
        %v2372 = vpop.f32.mrf.mxu0
        %v2373 = vadd.f32 0.0, %v2372
        %v2374 = vpop.f32.mrf.mxu0
        %v2375 = vpop.f32.mrf.mxu0
        %v2376 = vadd.f32 0.0, %v2375
        %v2377 = vpop.f32.mrf.mxu0
        %2378 = vmatprep.mubr.bf16.mxu0 0
        %2379 = vmatmul.mubr.bf16.gmra.mxu0 %v1774
        %v2380 = vpop.f32.mrf.mxu0
        %v2381 = vadd.f32 0.0, %v2380
        %v2382 = vpop.f32.mrf.mxu0
        %v2383 = vpop.f32.mrf.mxu0
        %v2384 = vadd.f32 0.0, %v2383
        %v2385 = vpop.f32.mrf.mxu0
        %2386 = vmatprep.mubr.bf16.mxu0 0
        %2387 = vmatmul.mubr.bf16.gmra.mxu0 %v1777
        %v2388 = vpop.f32.mrf.mxu0
        %v2389 = vadd.f32 0.0, %v2388
        %v2390 = vpop.f32.mrf.mxu0
        %v2391 = vpop.f32.mrf.mxu0
        %v2392 = vadd.f32 0.0, %v2391
        %v2393 = vpop.f32.mrf.mxu0
        %2394 = vmatprep.mubr.bf16.mxu0 0
        %2395 = vmatmul.mubr.bf16.gmra.mxu0 %v1780
        %v2396 = vpop.f32.mrf.mxu0
        %v2397 = vadd.f32 0.0, %v2396
        %v2398 = vpop.f32.mrf.mxu0
        %v2399 = vpop.f32.mrf.mxu0
        %v2400 = vadd.f32 0.0, %v2399
        %v2401 = vpop.f32.mrf.mxu0
        %2402 = vmatprep.mubr.bf16.mxu0 0
        %2403 = vmatmul.mubr.bf16.gmra.mxu0 %v1783
        %v2404 = vpop.f32.mrf.mxu0
        %v2405 = vadd.f32 0.0, %v2404
        %v2406 = vpop.f32.mrf.mxu0
        %v2407 = vpop.f32.mrf.mxu0
        %v2408 = vadd.f32 0.0, %v2407
        %v2409 = vpop.f32.mrf.mxu0
        %2410 = vmatprep.mubr.bf16.mxu0 0
        %2411 = vmatmul.mubr.bf16.gmra.mxu0 %v1786
        %v2412 = vpop.f32.mrf.mxu0
        %v2413 = vadd.f32 0.0, %v2412
        %v2414 = vpop.f32.mrf.mxu0
        %v2415 = vpop.f32.mrf.mxu0
        %v2416 = vadd.f32 0.0, %v2415
        %v2417 = vpop.f32.mrf.mxu0
        %2418 = vmatprep.mubr.bf16.mxu0 0
        %2419 = vmatmul.mubr.bf16.gmra.mxu0 %v1789
        %v2420 = vpop.f32.mrf.mxu0
        %v2421 = vadd.f32 0.0, %v2420
        %v2422 = vpop.f32.mrf.mxu0
        %v2423 = vpop.f32.mrf.mxu0
        %v2424 = vadd.f32 0.0, %v2423
        %v2425 = vpop.f32.mrf.mxu0
        %2426 = vmatprep.mubr.bf16.mxu0 0
        %2427 = vmatmul.mubr.bf16.gmra.mxu0 %v1792
        %v2428 = vpop.f32.mrf.mxu0
        %v2429 = vadd.f32 0.0, %v2428
        %v2430 = vpop.f32.mrf.mxu0
        %v2431 = vpop.f32.mrf.mxu0
        %v2432 = vadd.f32 0.0, %v2431
        %v2433 = vpop.f32.mrf.mxu0
        %2434 = vmatprep.mubr.bf16.mxu0 0
        %2435 = vmatmul.mubr.bf16.gmra.mxu0 %v1795
        %v2436 = vpop.f32.mrf.mxu0
        %v2437 = vadd.f32 0.0, %v2436
        %v2438 = vpop.f32.mrf.mxu0
        %v2439 = vpop.f32.mrf.mxu0
        %v2440 = vadd.f32 0.0, %v2439
        %v2441 = vpop.f32.mrf.mxu0
        %2442 = vmatprep.mubr.bf16.mxu0 0
        %2443 = vmatmul.mubr.bf16.gmra.mxu0 %v2157
        %v2444 = vpop.f32.mrf.mxu0
        %v2445 = vadd.f32 0.0, %v2444
        %v2446 = vpop.f32.mrf.mxu0
        %v2447 = vpop.f32.mrf.mxu0
        %v2448 = vadd.f32 0.0, %v2447
        %v2449 = vpop.f32.mrf.mxu0
        %2450 = vdwg.mxu0
        %v2451 = vadd.f32 %v2089, %v2197
        %v2452 = vadd.f32 %v2090, %v2200
        %v2453 = vadd.f32 %v2091, %v2205
        %v2454 = vadd.f32 %v2092, %v2208
        %v2455 = vadd.f32 %v2093, %v2213
        %v2456 = vadd.f32 %v2094, %v2216
        %v2457 = vadd.f32 %v2095, %v2221
        %v2458 = vadd.f32 %v2096, %v2224
        %v2459 = vadd.f32 %v2097, %v2229
        %v2460 = vadd.f32 %v2098, %v2232
        %v2461 = vadd.f32 %v2099, %v2237
        %v2462 = vadd.f32 %v2100, %v2240
        %v2463 = vadd.f32 %v2101, %v2245
        %v2464 = vadd.f32 %v2102, %v2248
        %v2465 = vadd.f32 %v2103, %v2253
        %v2466 = vadd.f32 %v2104, %v2256
        %v2467 = vadd.f32 %v2105, %v2261
        %v2468 = vadd.f32 %v2106, %v2264
        %v2469 = vadd.f32 %v2107, %v2269
        %v2470 = vadd.f32 %v2108, %v2272
        %v2471 = vadd.f32 %v2109, %v2277
        %v2472 = vadd.f32 %v2110, %v2280
        %v2473 = vadd.f32 %v2111, %v2285
        %v2474 = vadd.f32 %v2112, %v2288
        %v2475 = vadd.f32 %v2113, %v2293
        %v2476 = vadd.f32 %v2114, %v2296
        %v2477 = vadd.f32 %v2115, %v2301
        %v2478 = vadd.f32 %v2116, %v2304
        %v2479 = vadd.f32 %v2117, %v2309
        %v2480 = vadd.f32 %v2118, %v2312
        %v2481 = vadd.f32 %v2119, %v2317
        %v2482 = vadd.f32 %v2120, %v2320
        %v2483 = vadd.f32 %v2121, %v2325
        %v2484 = vadd.f32 %v2122, %v2328
        %v2485 = vadd.f32 %v2123, %v2333
        %v2486 = vadd.f32 %v2124, %v2336
        %v2487 = vadd.f32 %v2125, %v2341
        %v2488 = vadd.f32 %v2126, %v2344
        %v2489 = vadd.f32 %v2127, %v2349
        %v2490 = vadd.f32 %v2128, %v2352
        %v2491 = vadd.f32 %v2129, %v2357
        %v2492 = vadd.f32 %v2130, %v2360
        %v2493 = vadd.f32 %v2131, %v2365
        %v2494 = vadd.f32 %v2132, %v2368
        %v2495 = vadd.f32 %v2133, %v2373
        %v2496 = vadd.f32 %v2134, %v2376
        %v2497 = vadd.f32 %v2135, %v2381
        %v2498 = vadd.f32 %v2136, %v2384
        %v2499 = vadd.f32 %v2137, %v2389
        %v2500 = vadd.f32 %v2138, %v2392
        %v2501 = vadd.f32 %v2139, %v2397
        %v2502 = vadd.f32 %v2140, %v2400
        %v2503 = vadd.f32 %v2141, %v2405
        %v2504 = vadd.f32 %v2142, %v2408
        %v2505 = vadd.f32 %v2143, %v2413
        %v2506 = vadd.f32 %v2144, %v2416
        %v2507 = vadd.f32 %v2145, %v2421
        %v2508 = vadd.f32 %v2146, %v2424
        %v2509 = vadd.f32 %v2147, %v2429
        %v2510 = vadd.f32 %v2148, %v2432
        %v2511 = vadd.f32 %v2149, %v2437
        %v2512 = vadd.f32 %v2150, %v2440
        %v2513 = vadd.f32 %v2151, %v2445
        %v2514 = vadd.f32 %v2152, %v2448
        %v2515 = vld [vmem:[%s3 + $0x10] sm:$0xf]
        %vm2516 = vsmask.f32 6400
        %v2517 = vrot.slane %v640, 1
        %v2518 = vrot.slane %v636, 2
        %v2519 = vor.u32 %v2517, %v2518
        %v2520 = vrot.slane %v648, 1
        %v2521 = vrot.slane %v644, 2
        %v2522 = vor.u32 %v2520, %v2521
        %v2523 = vsel %vm2516, %v2519, %v2522
        %v2524 = vrot.slane %v656, 1
        %v2525 = vrot.slane %v652, 2
        %v2526 = vor.u32 %v2524, %v2525
        %v2527 = vsel %vm2516, %v2522, %v2526
        %v2528 = vrot.slane %v664, 1
        %v2529 = vrot.slane %v660, 2
        %v2530 = vor.u32 %v2528, %v2529
        %v2531 = vsel %vm2516, %v2526, %v2530
        %v2532 = vrot.slane %v672, 1
        %v2533 = vrot.slane %v668, 2
        %v2534 = vor.u32 %v2532, %v2533
        %v2535 = vsel %vm2516, %v2530, %v2534
        %v2536 = vrot.slane %v680, 1
        %v2537 = vrot.slane %v676, 2
        %v2538 = vor.u32 %v2536, %v2537
        %v2539 = vsel %vm2516, %v2534, %v2538
        %v2540 = vrot.slane %v688, 1
        %v2541 = vrot.slane %v684, 2
        %v2542 = vor.u32 %v2540, %v2541
        %v2543 = vsel %vm2516, %v2538, %v2542
        %v2544 = vrot.slane %v696, 1
        %v2545 = vrot.slane %v692, 2
        %v2546 = vor.u32 %v2544, %v2545
        %v2547 = vsel %vm2516, %v2542, %v2546
        %v2548 = vrot.slane %v704, 1
        %v2549 = vrot.slane %v700, 2
        %v2550 = vor.u32 %v2548, %v2549
        %v2551 = vsel %vm2516, %v2546, %v2550
        %v2552 = vrot.slane %v712, 1
        %v2553 = vrot.slane %v708, 2
        %v2554 = vor.u32 %v2552, %v2553
        %v2555 = vsel %vm2516, %v2550, %v2554
        %v2556 = vrot.slane %v720, 1
        %v2557 = vrot.slane %v716, 2
        %v2558 = vor.u32 %v2556, %v2557
        %v2559 = vsel %vm2516, %v2554, %v2558
        %v2560 = vrot.slane %v728, 1
        %v2561 = vrot.slane %v724, 2
        %v2562 = vor.u32 %v2560, %v2561
        %v2563 = vsel %vm2516, %v2558, %v2562
        %v2564 = vrot.slane %v736, 1
        %v2565 = vrot.slane %v732, 2
        %v2566 = vor.u32 %v2564, %v2565
        %v2567 = vsel %vm2516, %v2562, %v2566
        %v2568 = vrot.slane %v744, 1
        %v2569 = vrot.slane %v740, 2
        %v2570 = vor.u32 %v2568, %v2569
        %v2571 = vsel %vm2516, %v2566, %v2570
        %v2572 = vrot.slane %v752, 1
        %v2573 = vrot.slane %v748, 2
        %v2574 = vor.u32 %v2572, %v2573
        %v2575 = vsel %vm2516, %v2570, %v2574
        %v2576 = vrot.slane %v760, 1
        %v2577 = vrot.slane %v756, 2
        %v2578 = vor.u32 %v2576, %v2577
        %v2579 = vsel %vm2516, %v2574, %v2578
        %v2580 = vrot.slane %v768, 1
        %v2581 = vrot.slane %v764, 2
        %v2582 = vor.u32 %v2580, %v2581
        %v2583 = vsel %vm2516, %v2578, %v2582
        %v2584 = vrot.slane %v776, 1
        %v2585 = vrot.slane %v772, 2
        %v2586 = vor.u32 %v2584, %v2585
        %v2587 = vsel %vm2516, %v2582, %v2586
        %v2588 = vrot.slane %v784, 1
        %v2589 = vrot.slane %v780, 2
        %v2590 = vor.u32 %v2588, %v2589
        %v2591 = vsel %vm2516, %v2586, %v2590
        %v2592 = vrot.slane %v792, 1
        %v2593 = vrot.slane %v788, 2
        %v2594 = vor.u32 %v2592, %v2593
        %v2595 = vsel %vm2516, %v2590, %v2594
        %v2596 = vrot.slane %v800, 1
        %v2597 = vrot.slane %v796, 2
        %v2598 = vor.u32 %v2596, %v2597
        %v2599 = vsel %vm2516, %v2594, %v2598
        %v2600 = vrot.slane %v808, 1
        %v2601 = vrot.slane %v804, 2
        %v2602 = vor.u32 %v2600, %v2601
        %v2603 = vsel %vm2516, %v2598, %v2602
        %v2604 = vrot.slane %v816, 1
        %v2605 = vrot.slane %v812, 2
        %v2606 = vor.u32 %v2604, %v2605
        %v2607 = vsel %vm2516, %v2602, %v2606
        %v2608 = vrot.slane %v824, 1
        %v2609 = vrot.slane %v820, 2
        %v2610 = vor.u32 %v2608, %v2609
        %v2611 = vsel %vm2516, %v2606, %v2610
        %v2612 = vrot.slane %v832, 1
        %v2613 = vrot.slane %v828, 2
        %v2614 = vor.u32 %v2612, %v2613
        %v2615 = vsel %vm2516, %v2610, %v2614
        %v2616 = vrot.slane %v840, 1
        %v2617 = vrot.slane %v836, 2
        %v2618 = vor.u32 %v2616, %v2617
        %v2619 = vsel %vm2516, %v2614, %v2618
        %v2620 = vrot.slane %v848, 1
        %v2621 = vrot.slane %v844, 2
        %v2622 = vor.u32 %v2620, %v2621
        %v2623 = vsel %vm2516, %v2618, %v2622
        %v2624 = vrot.slane %v856, 1
        %v2625 = vrot.slane %v852, 2
        %v2626 = vor.u32 %v2624, %v2625
        %v2627 = vsel %vm2516, %v2622, %v2626
        %v2628 = vrot.slane %v864, 1
        %v2629 = vrot.slane %v860, 2
        %v2630 = vor.u32 %v2628, %v2629
        %v2631 = vsel %vm2516, %v2626, %v2630
        %v2632 = vrot.slane %v872, 1
        %v2633 = vrot.slane %v868, 2
        %v2634 = vor.u32 %v2632, %v2633
        %v2635 = vsel %vm2516, %v2630, %v2634
        %v2636 = vrot.slane %v880, 1
        %v2637 = vrot.slane %v876, 2
        %v2638 = vor.u32 %v2636, %v2637
        %v2639 = vsel %vm2516, %v2634, %v2638
        %v2640 = vshrl.u32 %v622, 16
        %v2642 = vrot.slane %v2640, 1
        %v2643 = vrot.slane %v884, 2
        %v2644 = vor.u32 %v2642, %v2643
        %v2645 = vsel %vm2516, %v2638, %v2644
        %v2647 = vshrl.u32 %v623, 16
        %v2649 = vrot.slane %v2647, 1
        %v2650 = vshll.u32 %v623, 16
        %v2652 = vrot.slane %v2650, 2
        %v2653 = vor.u32 %v2649, %v2652
        %v2654 = vsel %vm2516, %v2644, %v2653
        %v2656 = vsel %vm888, %v2523, 0
        %v2659 = vsel %vm888, %v2527, 0
        %v2662 = vsel %vm888, %v2531, 0
        %v2665 = vsel %vm888, %v2535, 0
        %v2668 = vsel %vm888, %v2539, 0
        %v2671 = vsel %vm888, %v2543, 0
        %v2674 = vsel %vm888, %v2547, 0
        %v2677 = vsel %vm888, %v2551, 0
        %v2680 = vsel %vm888, %v2555, 0
        %v2683 = vsel %vm888, %v2559, 0
        %v2686 = vsel %vm888, %v2563, 0
        %v2689 = vsel %vm888, %v2567, 0
        %v2692 = vsel %vm888, %v2571, 0
        %v2695 = vsel %vm888, %v2575, 0
        %v2698 = vsel %vm888, %v2579, 0
        %v2701 = vsel %vm888, %v2583, 0
        %v2704 = vsel %vm888, %v2587, 0
        %v2707 = vsel %vm888, %v2591, 0
        %v2710 = vsel %vm888, %v2595, 0
        %v2713 = vsel %vm888, %v2599, 0
        %v2716 = vsel %vm888, %v2603, 0
        %v2719 = vsel %vm888, %v2607, 0
        %v2722 = vsel %vm888, %v2611, 0
        %v2725 = vsel %vm888, %v2615, 0
        %v2728 = vsel %vm888, %v2619, 0
        %v2731 = vsel %vm888, %v2623, 0
        %v2734 = vsel %vm888, %v2627, 0
        %v2737 = vsel %vm888, %v2631, 0
        %v2740 = vsel %vm888, %v2635, 0
        %v2743 = vsel %vm888, %v2639, 0
        %v2746 = vsel %vm888, %v2645, 0
        %v2749 = vsel %vm888, %v2654, 0
        %v2752 = vsel %vm985, %v2515, 0
        %2754 = vmatprep.subr.bf16.mxu0 0
        %2755 = vmatpush1.bf16.msra.mxu0 0
        %2756 = vmatprep.subr.bf16.mxu0 0
        %2757 = vmatpush1.bf16.msra.mxu0 0
        %2758 = vmatprep.subr.bf16.mxu0 0
        %2759 = vmatpush1.bf16.msra.mxu0 0
        %2760 = vmatprep.subr.bf16.mxu0 0
        %2761 = vmatpush1.bf16.msra.mxu0 0
        %2762 = vmatprep.subr.bf16.mxu0 0
        %2763 = vmatpush1.bf16.msra.mxu0 0
        %2764 = vmatprep.subr.bf16.mxu0 0
        %2765 = vmatpush1.bf16.msra.mxu0 0
        %2766 = vmatprep.subr.bf16.mxu0 0
        %2767 = vmatpush1.bf16.msra.mxu0 0
        %2768 = vmatprep.subr.bf16.mxu0 0
        %2769 = vmatpush1.bf16.msra.mxu0 %v2752
        %2770 = vmatprep.subr.bf16.mxu0 0
        %2771 = vmatpush2.bf16.msra.mxu0 0
        %2772 = vmatprep.subr.bf16.mxu0 0
        %2773 = vmatpush2.bf16.msra.mxu0 0
        %2774 = vmatprep.subr.bf16.mxu0 0
        %2775 = vmatpush2.bf16.msra.mxu0 0
        %2776 = vmatprep.subr.bf16.mxu0 0
        %2777 = vmatpush2.bf16.msra.mxu0 0
        %2778 = vmatprep.subr.bf16.mxu0 0
        %2779 = vmatpush2.bf16.msra.mxu0 0
        %2780 = vmatprep.subr.bf16.mxu0 0
        %2781 = vmatpush2.bf16.msra.mxu0 0
        %2782 = vmatprep.subr.bf16.mxu0 0
        %2783 = vmatpush2.bf16.msra.mxu0 0
        %2784 = vmatprep.subr.bf16.mxu0 0
        %2785 = vmatpush2.bf16.msra.mxu0 0
        %2786 = vmatprep.mubr.bf16.mxu0 0
        %2787 = vmatmul.mubr.bf16.gmra.mxu0 %v2656
        %v2788 = vpop.f32.mrf.mxu0
        %v2789 = vadd.f32 0.0, %v2788
        %v2790 = vpop.f32.mrf.mxu0
        %v2791 = vpop.f32.mrf.mxu0
        %v2792 = vadd.f32 0.0, %v2791
        %v2793 = vpop.f32.mrf.mxu0
        %2794 = vmatprep.mubr.bf16.mxu0 0
        %2795 = vmatmul.mubr.bf16.gmra.mxu0 %v2659
        %v2796 = vpop.f32.mrf.mxu0
        %v2797 = vadd.f32 0.0, %v2796
        %v2798 = vpop.f32.mrf.mxu0
        %v2799 = vpop.f32.mrf.mxu0
        %v2800 = vadd.f32 0.0, %v2799
        %v2801 = vpop.f32.mrf.mxu0
        %2802 = vmatprep.mubr.bf16.mxu0 0
        %2803 = vmatmul.mubr.bf16.gmra.mxu0 %v2662
        %v2804 = vpop.f32.mrf.mxu0
        %v2805 = vadd.f32 0.0, %v2804
        %v2806 = vpop.f32.mrf.mxu0
        %v2807 = vpop.f32.mrf.mxu0
        %v2808 = vadd.f32 0.0, %v2807
        %v2809 = vpop.f32.mrf.mxu0
        %2810 = vmatprep.mubr.bf16.mxu0 0
        %2811 = vmatmul.mubr.bf16.gmra.mxu0 %v2665
        %v2812 = vpop.f32.mrf.mxu0
        %v2813 = vadd.f32 0.0, %v2812
        %v2814 = vpop.f32.mrf.mxu0
        %v2815 = vpop.f32.mrf.mxu0
        %v2816 = vadd.f32 0.0, %v2815
        %v2817 = vpop.f32.mrf.mxu0
        %2818 = vmatprep.mubr.bf16.mxu0 0
        %2819 = vmatmul.mubr.bf16.gmra.mxu0 %v2668
        %v2820 = vpop.f32.mrf.mxu0
        %v2821 = vadd.f32 0.0, %v2820
        %v2822 = vpop.f32.mrf.mxu0
        %v2823 = vpop.f32.mrf.mxu0
        %v2824 = vadd.f32 0.0, %v2823
        %v2825 = vpop.f32.mrf.mxu0
        %2826 = vmatprep.mubr.bf16.mxu0 0
        %2827 = vmatmul.mubr.bf16.gmra.mxu0 %v2671
        %v2828 = vpop.f32.mrf.mxu0
        %v2829 = vadd.f32 0.0, %v2828
        %v2830 = vpop.f32.mrf.mxu0
        %v2831 = vpop.f32.mrf.mxu0
        %v2832 = vadd.f32 0.0, %v2831
        %v2833 = vpop.f32.mrf.mxu0
        %2834 = vmatprep.mubr.bf16.mxu0 0
        %2835 = vmatmul.mubr.bf16.gmra.mxu0 %v2674
        %v2836 = vpop.f32.mrf.mxu0
        %v2837 = vadd.f32 0.0, %v2836
        %v2838 = vpop.f32.mrf.mxu0
        %v2839 = vpop.f32.mrf.mxu0
        %v2840 = vadd.f32 0.0, %v2839
        %v2841 = vpop.f32.mrf.mxu0
        %2842 = vmatprep.mubr.bf16.mxu0 0
        %2843 = vmatmul.mubr.bf16.gmra.mxu0 %v2677
        %v2844 = vpop.f32.mrf.mxu0
        %v2845 = vadd.f32 0.0, %v2844
        %v2846 = vpop.f32.mrf.mxu0
        %v2847 = vpop.f32.mrf.mxu0
        %v2848 = vadd.f32 0.0, %v2847
        %v2849 = vpop.f32.mrf.mxu0
        %2850 = vmatprep.mubr.bf16.mxu0 0
        %2851 = vmatmul.mubr.bf16.gmra.mxu0 %v2680
        %v2852 = vpop.f32.mrf.mxu0
        %v2853 = vadd.f32 0.0, %v2852
        %v2854 = vpop.f32.mrf.mxu0
        %v2855 = vpop.f32.mrf.mxu0
        %v2856 = vadd.f32 0.0, %v2855
        %v2857 = vpop.f32.mrf.mxu0
        %2858 = vmatprep.mubr.bf16.mxu0 0
        %2859 = vmatmul.mubr.bf16.gmra.mxu0 %v2683
        %v2860 = vpop.f32.mrf.mxu0
        %v2861 = vadd.f32 0.0, %v2860
        %v2862 = vpop.f32.mrf.mxu0
        %v2863 = vpop.f32.mrf.mxu0
        %v2864 = vadd.f32 0.0, %v2863
        %v2865 = vpop.f32.mrf.mxu0
        %2866 = vmatprep.mubr.bf16.mxu0 0
        %2867 = vmatmul.mubr.bf16.gmra.mxu0 %v2686
        %v2868 = vpop.f32.mrf.mxu0
        %v2869 = vadd.f32 0.0, %v2868
        %v2870 = vpop.f32.mrf.mxu0
        %v2871 = vpop.f32.mrf.mxu0
        %v2872 = vadd.f32 0.0, %v2871
        %v2873 = vpop.f32.mrf.mxu0
        %2874 = vmatprep.mubr.bf16.mxu0 0
        %2875 = vmatmul.mubr.bf16.gmra.mxu0 %v2689
        %v2876 = vpop.f32.mrf.mxu0
        %v2877 = vadd.f32 0.0, %v2876
        %v2878 = vpop.f32.mrf.mxu0
        %v2879 = vpop.f32.mrf.mxu0
        %v2880 = vadd.f32 0.0, %v2879
        %v2881 = vpop.f32.mrf.mxu0
        %2882 = vmatprep.mubr.bf16.mxu0 0
        %2883 = vmatmul.mubr.bf16.gmra.mxu0 %v2692
        %v2884 = vpop.f32.mrf.mxu0
        %v2885 = vadd.f32 0.0, %v2884
        %v2886 = vpop.f32.mrf.mxu0
        %v2887 = vpop.f32.mrf.mxu0
        %v2888 = vadd.f32 0.0, %v2887
        %v2889 = vpop.f32.mrf.mxu0
        %2890 = vmatprep.mubr.bf16.mxu0 0
        %2891 = vmatmul.mubr.bf16.gmra.mxu0 %v2695
        %v2892 = vpop.f32.mrf.mxu0
        %v2893 = vadd.f32 0.0, %v2892
        %v2894 = vpop.f32.mrf.mxu0
        %v2895 = vpop.f32.mrf.mxu0
        %v2896 = vadd.f32 0.0, %v2895
        %v2897 = vpop.f32.mrf.mxu0
        %2898 = vmatprep.mubr.bf16.mxu0 0
        %2899 = vmatmul.mubr.bf16.gmra.mxu0 %v2698
        %v2900 = vpop.f32.mrf.mxu0
        %v2901 = vadd.f32 0.0, %v2900
        %v2902 = vpop.f32.mrf.mxu0
        %v2903 = vpop.f32.mrf.mxu0
        %v2904 = vadd.f32 0.0, %v2903
        %v2905 = vpop.f32.mrf.mxu0
        %2906 = vmatprep.mubr.bf16.mxu0 0
        %2907 = vmatmul.mubr.bf16.gmra.mxu0 %v2701
        %v2908 = vpop.f32.mrf.mxu0
        %v2909 = vadd.f32 0.0, %v2908
        %v2910 = vpop.f32.mrf.mxu0
        %v2911 = vpop.f32.mrf.mxu0
        %v2912 = vadd.f32 0.0, %v2911
        %v2913 = vpop.f32.mrf.mxu0
        %2914 = vmatprep.mubr.bf16.mxu0 0
        %2915 = vmatmul.mubr.bf16.gmra.mxu0 %v2704
        %v2916 = vpop.f32.mrf.mxu0
        %v2917 = vadd.f32 0.0, %v2916
        %v2918 = vpop.f32.mrf.mxu0
        %v2919 = vpop.f32.mrf.mxu0
        %v2920 = vadd.f32 0.0, %v2919
        %v2921 = vpop.f32.mrf.mxu0
        %2922 = vmatprep.mubr.bf16.mxu0 0
        %2923 = vmatmul.mubr.bf16.gmra.mxu0 %v2707
        %v2924 = vpop.f32.mrf.mxu0
        %v2925 = vadd.f32 0.0, %v2924
        %v2926 = vpop.f32.mrf.mxu0
        %v2927 = vpop.f32.mrf.mxu0
        %v2928 = vadd.f32 0.0, %v2927
        %v2929 = vpop.f32.mrf.mxu0
        %2930 = vmatprep.mubr.bf16.mxu0 0
        %2931 = vmatmul.mubr.bf16.gmra.mxu0 %v2710
        %v2932 = vpop.f32.mrf.mxu0
        %v2933 = vadd.f32 0.0, %v2932
        %v2934 = vpop.f32.mrf.mxu0
        %v2935 = vpop.f32.mrf.mxu0
        %v2936 = vadd.f32 0.0, %v2935
        %v2937 = vpop.f32.mrf.mxu0
        %2938 = vmatprep.mubr.bf16.mxu0 0
        %2939 = vmatmul.mubr.bf16.gmra.mxu0 %v2713
        %v2940 = vpop.f32.mrf.mxu0
        %v2941 = vadd.f32 0.0, %v2940
        %v2942 = vpop.f32.mrf.mxu0
        %v2943 = vpop.f32.mrf.mxu0
        %v2944 = vadd.f32 0.0, %v2943
        %v2945 = vpop.f32.mrf.mxu0
        %2946 = vmatprep.mubr.bf16.mxu0 0
        %2947 = vmatmul.mubr.bf16.gmra.mxu0 %v2716
        %v2948 = vpop.f32.mrf.mxu0
        %v2949 = vadd.f32 0.0, %v2948
        %v2950 = vpop.f32.mrf.mxu0
        %v2951 = vpop.f32.mrf.mxu0
        %v2952 = vadd.f32 0.0, %v2951
        %v2953 = vpop.f32.mrf.mxu0
        %2954 = vmatprep.mubr.bf16.mxu0 0
        %2955 = vmatmul.mubr.bf16.gmra.mxu0 %v2719
        %v2956 = vpop.f32.mrf.mxu0
        %v2957 = vadd.f32 0.0, %v2956
        %v2958 = vpop.f32.mrf.mxu0
        %v2959 = vpop.f32.mrf.mxu0
        %v2960 = vadd.f32 0.0, %v2959
        %v2961 = vpop.f32.mrf.mxu0
        %2962 = vmatprep.mubr.bf16.mxu0 0
        %2963 = vmatmul.mubr.bf16.gmra.mxu0 %v2722
        %v2964 = vpop.f32.mrf.mxu0
        %v2965 = vadd.f32 0.0, %v2964
        %v2966 = vpop.f32.mrf.mxu0
        %v2967 = vpop.f32.mrf.mxu0
        %v2968 = vadd.f32 0.0, %v2967
        %v2969 = vpop.f32.mrf.mxu0
        %2970 = vmatprep.mubr.bf16.mxu0 0
        %2971 = vmatmul.mubr.bf16.gmra.mxu0 %v2725
        %v2972 = vpop.f32.mrf.mxu0
        %v2973 = vadd.f32 0.0, %v2972
        %v2974 = vpop.f32.mrf.mxu0
        %v2975 = vpop.f32.mrf.mxu0
        %v2976 = vadd.f32 0.0, %v2975
        %v2977 = vpop.f32.mrf.mxu0
        %2978 = vmatprep.mubr.bf16.mxu0 0
        %2979 = vmatmul.mubr.bf16.gmra.mxu0 %v2728
        %v2980 = vpop.f32.mrf.mxu0
        %v2981 = vadd.f32 0.0, %v2980
        %v2982 = vpop.f32.mrf.mxu0
        %v2983 = vpop.f32.mrf.mxu0
        %v2984 = vadd.f32 0.0, %v2983
        %v2985 = vpop.f32.mrf.mxu0
        %2986 = vmatprep.mubr.bf16.mxu0 0
        %2987 = vmatmul.mubr.bf16.gmra.mxu0 %v2731
        %v2988 = vpop.f32.mrf.mxu0
        %v2989 = vadd.f32 0.0, %v2988
        %v2990 = vpop.f32.mrf.mxu0
        %v2991 = vpop.f32.mrf.mxu0
        %v2992 = vadd.f32 0.0, %v2991
        %v2993 = vpop.f32.mrf.mxu0
        %2994 = vmatprep.mubr.bf16.mxu0 0
        %2995 = vmatmul.mubr.bf16.gmra.mxu0 %v2734
        %v2996 = vpop.f32.mrf.mxu0
        %v2997 = vadd.f32 0.0, %v2996
        %v2998 = vpop.f32.mrf.mxu0
        %v2999 = vpop.f32.mrf.mxu0
        %v3000 = vadd.f32 0.0, %v2999
        %v3001 = vpop.f32.mrf.mxu0
        %3002 = vmatprep.mubr.bf16.mxu0 0
        %3003 = vmatmul.mubr.bf16.gmra.mxu0 %v2737
        %v3004 = vpop.f32.mrf.mxu0
        %v3005 = vadd.f32 0.0, %v3004
        %v3006 = vpop.f32.mrf.mxu0
        %v3007 = vpop.f32.mrf.mxu0
        %v3008 = vadd.f32 0.0, %v3007
        %v3009 = vpop.f32.mrf.mxu0
        %3010 = vmatprep.mubr.bf16.mxu0 0
        %3011 = vmatmul.mubr.bf16.gmra.mxu0 %v2740
        %v3012 = vpop.f32.mrf.mxu0
        %v3013 = vadd.f32 0.0, %v3012
        %v3014 = vpop.f32.mrf.mxu0
        %v3015 = vpop.f32.mrf.mxu0
        %v3016 = vadd.f32 0.0, %v3015
        %v3017 = vpop.f32.mrf.mxu0
        %3018 = vmatprep.mubr.bf16.mxu0 0
        %3019 = vmatmul.mubr.bf16.gmra.mxu0 %v2743
        %v3020 = vpop.f32.mrf.mxu0
        %v3021 = vadd.f32 0.0, %v3020
        %v3022 = vpop.f32.mrf.mxu0
        %v3023 = vpop.f32.mrf.mxu0
        %v3024 = vadd.f32 0.0, %v3023
        %v3025 = vpop.f32.mrf.mxu0
        %3026 = vmatprep.mubr.bf16.mxu0 0
        %3027 = vmatmul.mubr.bf16.gmra.mxu0 %v2746
        %v3028 = vpop.f32.mrf.mxu0
        %v3029 = vadd.f32 0.0, %v3028
        %v3030 = vpop.f32.mrf.mxu0
        %v3031 = vpop.f32.mrf.mxu0
        %v3032 = vadd.f32 0.0, %v3031
        %v3033 = vpop.f32.mrf.mxu0
        %3034 = vmatprep.mubr.bf16.mxu0 0
        %3035 = vmatmul.mubr.bf16.gmra.mxu0 %v2749
        %v3036 = vpop.f32.mrf.mxu0
        %v3037 = vadd.f32 0.0, %v3036
        %v3038 = vpop.f32.mrf.mxu0
        %v3039 = vpop.f32.mrf.mxu0
        %v3040 = vadd.f32 0.0, %v3039
        %v3041 = vpop.f32.mrf.mxu0
        %3042 = vdwg.mxu0
        %v3043 = vadd.f32 %v2451, %v2789
        %v3044 = vadd.f32 %v2452, %v2792
        %v3045 = vadd.f32 %v2453, %v2797
        %v3046 = vadd.f32 %v2454, %v2800
        %v3047 = vadd.f32 %v2455, %v2805
        %v3048 = vadd.f32 %v2456, %v2808
        %v3049 = vadd.f32 %v2457, %v2813
        %v3050 = vadd.f32 %v2458, %v2816
        %v3051 = vadd.f32 %v2459, %v2821
        %v3052 = vadd.f32 %v2460, %v2824
        %v3053 = vadd.f32 %v2461, %v2829
        %v3054 = vadd.f32 %v2462, %v2832
        %v3055 = vadd.f32 %v2463, %v2837
        %v3056 = vadd.f32 %v2464, %v2840
        %v3057 = vadd.f32 %v2465, %v2845
        %v3058 = vadd.f32 %v2466, %v2848
        %v3059 = vadd.f32 %v2467, %v2853
        %v3060 = vadd.f32 %v2468, %v2856
        %v3061 = vadd.f32 %v2469, %v2861
        %v3062 = vadd.f32 %v2470, %v2864
        %v3063 = vadd.f32 %v2471, %v2869
        %v3064 = vadd.f32 %v2472, %v2872
        %v3065 = vadd.f32 %v2473, %v2877
        %v3066 = vadd.f32 %v2474, %v2880
        %v3067 = vadd.f32 %v2475, %v2885
        %v3068 = vadd.f32 %v2476, %v2888
        %v3069 = vadd.f32 %v2477, %v2893
        %v3070 = vadd.f32 %v2478, %v2896
        %v3071 = vadd.f32 %v2479, %v2901
        %v3072 = vadd.f32 %v2480, %v2904
        %v3073 = vadd.f32 %v2481, %v2909
        %v3074 = vadd.f32 %v2482, %v2912
        %v3075 = vadd.f32 %v2483, %v2917
        %v3076 = vadd.f32 %v2484, %v2920
        %v3077 = vadd.f32 %v2485, %v2925
        %v3078 = vadd.f32 %v2486, %v2928
        %v3079 = vadd.f32 %v2487, %v2933
        %v3080 = vadd.f32 %v2488, %v2936
        %v3081 = vadd.f32 %v2489, %v2941
        %v3082 = vadd.f32 %v2490, %v2944
        %v3083 = vadd.f32 %v2491, %v2949
        %v3084 = vadd.f32 %v2492, %v2952
        %v3085 = vadd.f32 %v2493, %v2957
        %v3086 = vadd.f32 %v2494, %v2960
        %v3087 = vadd.f32 %v2495, %v2965
        %v3088 = vadd.f32 %v2496, %v2968
        %v3089 = vadd.f32 %v2497, %v2973
        %v3090 = vadd.f32 %v2498, %v2976
        %v3091 = vadd.f32 %v2499, %v2981
        %v3092 = vadd.f32 %v2500, %v2984
        %v3093 = vadd.f32 %v2501, %v2989
        %v3094 = vadd.f32 %v2502, %v2992
        %v3095 = vadd.f32 %v2503, %v2997
        %v3096 = vadd.f32 %v2504, %v3000
        %v3097 = vadd.f32 %v2505, %v3005
        %v3098 = vadd.f32 %v2506, %v3008
        %v3099 = vadd.f32 %v2507, %v3013
        %v3100 = vadd.f32 %v2508, %v3016
        %v3101 = vadd.f32 %v2509, %v3021
        %v3102 = vadd.f32 %v2510, %v3024
        %v3103 = vadd.f32 %v2511, %v3029
        %v3104 = vadd.f32 %v2512, %v3032
        %v3105 = vadd.f32 %v2513, %v3037
        %v3106 = vadd.f32 %v2514, %v3040
        %v3107 = vld [vmem:[%s3 + $0x14] sm:$0xf]
        %vm3108 = vcmask 1045504
        %v3109 = vrot.slane %v579, 2
        %v3110 = vrot.slane %v580, 2
        %v3111 = vsel %vm3108, %v3109, %v3110
        %v3112 = vrot.slane %v581, 2
        %v3113 = vsel %vm3108, %v3110, %v3112
        %v3114 = vrot.slane %v582, 2
        %v3115 = vsel %vm3108, %v3112, %v3114
        %v3116 = vrot.slane %v583, 2
        %v3117 = vsel %vm3108, %v3114, %v3116
        %v3118 = vrot.slane %v584, 2
        %v3119 = vsel %vm3108, %v3116, %v3118
        %v3120 = vrot.slane %v585, 2
        %v3121 = vsel %vm3108, %v3118, %v3120
        %v3122 = vrot.slane %v586, 2
        %v3123 = vsel %vm3108, %v3120, %v3122
        %v3124 = vrot.slane %v587, 2
        %v3125 = vsel %vm3108, %v3122, %v3124
        %v3126 = vrot.slane %v588, 2
        %v3127 = vsel %vm3108, %v3124, %v3126
        %v3128 = vrot.slane %v589, 2
        %v3129 = vsel %vm3108, %v3126, %v3128
        %v3130 = vrot.slane %v590, 2
        %v3131 = vsel %vm3108, %v3128, %v3130
        %v3132 = vrot.slane %v591, 2
        %v3133 = vsel %vm3108, %v3130, %v3132
        %v3134 = vrot.slane %v592, 2
        %v3135 = vsel %vm3108, %v3132, %v3134
        %v3136 = vrot.slane %v593, 2
        %v3137 = vsel %vm3108, %v3134, %v3136
        %v3138 = vrot.slane %v594, 2
        %v3139 = vsel %vm3108, %v3136, %v3138
        %v3140 = vrot.slane %v595, 2
        %v3141 = vsel %vm3108, %v3138, %v3140
        %v3142 = vrot.slane %v596, 2
        %v3143 = vsel %vm3108, %v3140, %v3142
        %v3144 = vrot.slane %v597, 2
        %v3145 = vsel %vm3108, %v3142, %v3144
        %v3146 = vrot.slane %v598, 2
        %v3147 = vsel %vm3108, %v3144, %v3146
        %v3148 = vrot.slane %v599, 2
        %v3149 = vsel %vm3108, %v3146, %v3148
        %v3150 = vrot.slane %v600, 2
        %v3151 = vsel %vm3108, %v3148, %v3150
        %v3152 = vrot.slane %v601, 2
        %v3153 = vsel %vm3108, %v3150, %v3152
        %v3154 = vrot.slane %v602, 2
        %v3155 = vsel %vm3108, %v3152, %v3154
        %v3156 = vrot.slane %v603, 2
        %v3157 = vsel %vm3108, %v3154, %v3156
        %v3158 = vrot.slane %v604, 2
        %v3159 = vsel %vm3108, %v3156, %v3158
        %v3160 = vrot.slane %v605, 2
        %v3161 = vsel %vm3108, %v3158, %v3160
        %v3162 = vrot.slane %v606, 2
        %v3163 = vsel %vm3108, %v3160, %v3162
        %v3164 = vrot.slane %v607, 2
        %v3165 = vsel %vm3108, %v3162, %v3164
        %v3166 = vrot.slane %v608, 2
        %v3167 = vsel %vm3108, %v3164, %v3166
        %v3168 = vrot.slane %v609, 2
        %v3169 = vsel %vm3108, %v3166, %v3168
        %v3170 = vrot.slane %v622, 2
        %v3171 = vsel %vm3108, %v3168, %v3170
        %v3172 = vrot.slane %v623, 2
        %v3173 = vsel %vm3108, %v3170, %v3172
        %v3175 = vsel %vm888, %v3111, 0
        %v3178 = vsel %vm888, %v3113, 0
        %v3181 = vsel %vm888, %v3115, 0
        %v3184 = vsel %vm888, %v3117, 0
        %v3187 = vsel %vm888, %v3119, 0
        %v3190 = vsel %vm888, %v3121, 0
        %v3193 = vsel %vm888, %v3123, 0
        %v3196 = vsel %vm888, %v3125, 0
        %v3199 = vsel %vm888, %v3127, 0
        %v3202 = vsel %vm888, %v3129, 0
        %v3205 = vsel %vm888, %v3131, 0
        %v3208 = vsel %vm888, %v3133, 0
        %v3211 = vsel %vm888, %v3135, 0
        %v3214 = vsel %vm888, %v3137, 0
        %v3217 = vsel %vm888, %v3139, 0
        %v3220 = vsel %vm888, %v3141, 0
        %v3223 = vsel %vm888, %v3143, 0
        %v3226 = vsel %vm888, %v3145, 0
        %v3229 = vsel %vm888, %v3147, 0
        %v3232 = vsel %vm888, %v3149, 0
        %v3235 = vsel %vm888, %v3151, 0
        %v3238 = vsel %vm888, %v3153, 0
        %v3241 = vsel %vm888, %v3155, 0
        %v3244 = vsel %vm888, %v3157, 0
        %v3247 = vsel %vm888, %v3159, 0
        %v3250 = vsel %vm888, %v3161, 0
        %v3253 = vsel %vm888, %v3163, 0
        %v3256 = vsel %vm888, %v3165, 0
        %v3259 = vsel %vm888, %v3167, 0
        %v3262 = vsel %vm888, %v3169, 0
        %v3265 = vsel %vm888, %v3171, 0
        %v3268 = vsel %vm888, %v3173, 0
        %v3271 = vsel %vm985, %v3107, 0
        %3273 = vmatprep.subr.bf16.mxu0 0
        %3274 = vmatpush1.bf16.msra.mxu0 0
        %3275 = vmatprep.subr.bf16.mxu0 0
        %3276 = vmatpush1.bf16.msra.mxu0 0
        %3277 = vmatprep.subr.bf16.mxu0 0
        %3278 = vmatpush1.bf16.msra.mxu0 0
        %3279 = vmatprep.subr.bf16.mxu0 0
        %3280 = vmatpush1.bf16.msra.mxu0 0
        %3281 = vmatprep.subr.bf16.mxu0 0
        %3282 = vmatpush1.bf16.msra.mxu0 0
        %3283 = vmatprep.subr.bf16.mxu0 0
        %3284 = vmatpush1.bf16.msra.mxu0 0
        %3285 = vmatprep.subr.bf16.mxu0 0
        %3286 = vmatpush1.bf16.msra.mxu0 0
        %3287 = vmatprep.subr.bf16.mxu0 0
        %3288 = vmatpush1.bf16.msra.mxu0 %v3271
        %3289 = vmatprep.subr.bf16.mxu0 0
        %3290 = vmatpush2.bf16.msra.mxu0 0
        %3291 = vmatprep.subr.bf16.mxu0 0
        %3292 = vmatpush2.bf16.msra.mxu0 0
        %3293 = vmatprep.subr.bf16.mxu0 0
        %3294 = vmatpush2.bf16.msra.mxu0 0
        %3295 = vmatprep.subr.bf16.mxu0 0
        %3296 = vmatpush2.bf16.msra.mxu0 0
        %3297 = vmatprep.subr.bf16.mxu0 0
        %3298 = vmatpush2.bf16.msra.mxu0 0
        %3299 = vmatprep.subr.bf16.mxu0 0
        %3300 = vmatpush2.bf16.msra.mxu0 0
        %3301 = vmatprep.subr.bf16.mxu0 0
        %3302 = vmatpush2.bf16.msra.mxu0 0
        %3303 = vmatprep.subr.bf16.mxu0 0
        %3304 = vmatpush2.bf16.msra.mxu0 0
        %3305 = vmatprep.mubr.bf16.mxu0 0
        %3306 = vmatmul.mubr.bf16.gmra.mxu0 %v3175
        %v3307 = vpop.f32.mrf.mxu0
        %v3308 = vadd.f32 0.0, %v3307
        %v3309 = vpop.f32.mrf.mxu0
        %v3310 = vpop.f32.mrf.mxu0
        %v3311 = vadd.f32 0.0, %v3310
        %v3312 = vpop.f32.mrf.mxu0
        %3313 = vmatprep.mubr.bf16.mxu0 0
        %3314 = vmatmul.mubr.bf16.gmra.mxu0 %v3178
        %v3315 = vpop.f32.mrf.mxu0
        %v3316 = vadd.f32 0.0, %v3315
        %v3317 = vpop.f32.mrf.mxu0
        %v3318 = vpop.f32.mrf.mxu0
        %v3319 = vadd.f32 0.0, %v3318
        %v3320 = vpop.f32.mrf.mxu0
        %3321 = vmatprep.mubr.bf16.mxu0 0
        %3322 = vmatmul.mubr.bf16.gmra.mxu0 %v3181
        %v3323 = vpop.f32.mrf.mxu0
        %v3324 = vadd.f32 0.0, %v3323
        %v3325 = vpop.f32.mrf.mxu0
        %v3326 = vpop.f32.mrf.mxu0
        %v3327 = vadd.f32 0.0, %v3326
        %v3328 = vpop.f32.mrf.mxu0
        %3329 = vmatprep.mubr.bf16.mxu0 0
        %3330 = vmatmul.mubr.bf16.gmra.mxu0 %v3184
        %v3331 = vpop.f32.mrf.mxu0
        %v3332 = vadd.f32 0.0, %v3331
        %v3333 = vpop.f32.mrf.mxu0
        %v3334 = vpop.f32.mrf.mxu0
        %v3335 = vadd.f32 0.0, %v3334
        %v3336 = vpop.f32.mrf.mxu0
        %3337 = vmatprep.mubr.bf16.mxu0 0
        %3338 = vmatmul.mubr.bf16.gmra.mxu0 %v3187
        %v3339 = vpop.f32.mrf.mxu0
        %v3340 = vadd.f32 0.0, %v3339
        %v3341 = vpop.f32.mrf.mxu0
        %v3342 = vpop.f32.mrf.mxu0
        %v3343 = vadd.f32 0.0, %v3342
        %v3344 = vpop.f32.mrf.mxu0
        %3345 = vmatprep.mubr.bf16.mxu0 0
        %3346 = vmatmul.mubr.bf16.gmra.mxu0 %v3190
        %v3347 = vpop.f32.mrf.mxu0
        %v3348 = vadd.f32 0.0, %v3347
        %v3349 = vpop.f32.mrf.mxu0
        %v3350 = vpop.f32.mrf.mxu0
        %v3351 = vadd.f32 0.0, %v3350
        %v3352 = vpop.f32.mrf.mxu0
        %3353 = vmatprep.mubr.bf16.mxu0 0
        %3354 = vmatmul.mubr.bf16.gmra.mxu0 %v3193
        %v3355 = vpop.f32.mrf.mxu0
        %v3356 = vadd.f32 0.0, %v3355
        %v3357 = vpop.f32.mrf.mxu0
        %v3358 = vpop.f32.mrf.mxu0
        %v3359 = vadd.f32 0.0, %v3358
        %v3360 = vpop.f32.mrf.mxu0
        %3361 = vmatprep.mubr.bf16.mxu0 0
        %3362 = vmatmul.mubr.bf16.gmra.mxu0 %v3196
        %v3363 = vpop.f32.mrf.mxu0
        %v3364 = vadd.f32 0.0, %v3363
        %v3365 = vpop.f32.mrf.mxu0
        %v3366 = vpop.f32.mrf.mxu0
        %v3367 = vadd.f32 0.0, %v3366
        %v3368 = vpop.f32.mrf.mxu0
        %3369 = vmatprep.mubr.bf16.mxu0 0
        %3370 = vmatmul.mubr.bf16.gmra.mxu0 %v3199
        %v3371 = vpop.f32.mrf.mxu0
        %v3372 = vadd.f32 0.0, %v3371
        %v3373 = vpop.f32.mrf.mxu0
        %v3374 = vpop.f32.mrf.mxu0
        %v3375 = vadd.f32 0.0, %v3374
        %v3376 = vpop.f32.mrf.mxu0
        %3377 = vmatprep.mubr.bf16.mxu0 0
        %3378 = vmatmul.mubr.bf16.gmra.mxu0 %v3202
        %v3379 = vpop.f32.mrf.mxu0
        %v3380 = vadd.f32 0.0, %v3379
        %v3381 = vpop.f32.mrf.mxu0
        %v3382 = vpop.f32.mrf.mxu0
        %v3383 = vadd.f32 0.0, %v3382
        %v3384 = vpop.f32.mrf.mxu0
        %3385 = vmatprep.mubr.bf16.mxu0 0
        %3386 = vmatmul.mubr.bf16.gmra.mxu0 %v3205
        %v3387 = vpop.f32.mrf.mxu0
        %v3388 = vadd.f32 0.0, %v3387
        %v3389 = vpop.f32.mrf.mxu0
        %v3390 = vpop.f32.mrf.mxu0
        %v3391 = vadd.f32 0.0, %v3390
        %v3392 = vpop.f32.mrf.mxu0
        %3393 = vmatprep.mubr.bf16.mxu0 0
        %3394 = vmatmul.mubr.bf16.gmra.mxu0 %v3208
        %v3395 = vpop.f32.mrf.mxu0
        %v3396 = vadd.f32 0.0, %v3395
        %v3397 = vpop.f32.mrf.mxu0
        %v3398 = vpop.f32.mrf.mxu0
        %v3399 = vadd.f32 0.0, %v3398
        %v3400 = vpop.f32.mrf.mxu0
        %3401 = vmatprep.mubr.bf16.mxu0 0
        %3402 = vmatmul.mubr.bf16.gmra.mxu0 %v3211
        %v3403 = vpop.f32.mrf.mxu0
        %v3404 = vadd.f32 0.0, %v3403
        %v3405 = vpop.f32.mrf.mxu0
        %v3406 = vpop.f32.mrf.mxu0
        %v3407 = vadd.f32 0.0, %v3406
        %v3408 = vpop.f32.mrf.mxu0
        %3409 = vmatprep.mubr.bf16.mxu0 0
        %3410 = vmatmul.mubr.bf16.gmra.mxu0 %v3214
        %v3411 = vpop.f32.mrf.mxu0
        %v3412 = vadd.f32 0.0, %v3411
        %v3413 = vpop.f32.mrf.mxu0
        %v3414 = vpop.f32.mrf.mxu0
        %v3415 = vadd.f32 0.0, %v3414
        %v3416 = vpop.f32.mrf.mxu0
        %3417 = vmatprep.mubr.bf16.mxu0 0
        %3418 = vmatmul.mubr.bf16.gmra.mxu0 %v3217
        %v3419 = vpop.f32.mrf.mxu0
        %v3420 = vadd.f32 0.0, %v3419
        %v3421 = vpop.f32.mrf.mxu0
        %v3422 = vpop.f32.mrf.mxu0
        %v3423 = vadd.f32 0.0, %v3422
        %v3424 = vpop.f32.mrf.mxu0
        %3425 = vmatprep.mubr.bf16.mxu0 0
        %3426 = vmatmul.mubr.bf16.gmra.mxu0 %v3220
        %v3427 = vpop.f32.mrf.mxu0
        %v3428 = vadd.f32 0.0, %v3427
        %v3429 = vpop.f32.mrf.mxu0
        %v3430 = vpop.f32.mrf.mxu0
        %v3431 = vadd.f32 0.0, %v3430
        %v3432 = vpop.f32.mrf.mxu0
        %3433 = vmatprep.mubr.bf16.mxu0 0
        %3434 = vmatmul.mubr.bf16.gmra.mxu0 %v3223
        %v3435 = vpop.f32.mrf.mxu0
        %v3436 = vadd.f32 0.0, %v3435
        %v3437 = vpop.f32.mrf.mxu0
        %v3438 = vpop.f32.mrf.mxu0
        %v3439 = vadd.f32 0.0, %v3438
        %v3440 = vpop.f32.mrf.mxu0
        %3441 = vmatprep.mubr.bf16.mxu0 0
        %3442 = vmatmul.mubr.bf16.gmra.mxu0 %v3226
        %v3443 = vpop.f32.mrf.mxu0
        %v3444 = vadd.f32 0.0, %v3443
        %v3445 = vpop.f32.mrf.mxu0
        %v3446 = vpop.f32.mrf.mxu0
        %v3447 = vadd.f32 0.0, %v3446
        %v3448 = vpop.f32.mrf.mxu0
        %3449 = vmatprep.mubr.bf16.mxu0 0
        %3450 = vmatmul.mubr.bf16.gmra.mxu0 %v3229
        %v3451 = vpop.f32.mrf.mxu0
        %v3452 = vadd.f32 0.0, %v3451
        %v3453 = vpop.f32.mrf.mxu0
        %v3454 = vpop.f32.mrf.mxu0
        %v3455 = vadd.f32 0.0, %v3454
        %v3456 = vpop.f32.mrf.mxu0
        %3457 = vmatprep.mubr.bf16.mxu0 0
        %3458 = vmatmul.mubr.bf16.gmra.mxu0 %v3232
        %v3459 = vpop.f32.mrf.mxu0
        %v3460 = vadd.f32 0.0, %v3459
        %v3461 = vpop.f32.mrf.mxu0
        %v3462 = vpop.f32.mrf.mxu0
        %v3463 = vadd.f32 0.0, %v3462
        %v3464 = vpop.f32.mrf.mxu0
        %3465 = vmatprep.mubr.bf16.mxu0 0
        %3466 = vmatmul.mubr.bf16.gmra.mxu0 %v3235
        %v3467 = vpop.f32.mrf.mxu0
        %v3468 = vadd.f32 0.0, %v3467
        %v3469 = vpop.f32.mrf.mxu0
        %v3470 = vpop.f32.mrf.mxu0
        %v3471 = vadd.f32 0.0, %v3470
        %v3472 = vpop.f32.mrf.mxu0
        %3473 = vmatprep.mubr.bf16.mxu0 0
        %3474 = vmatmul.mubr.bf16.gmra.mxu0 %v3238
        %v3475 = vpop.f32.mrf.mxu0
        %v3476 = vadd.f32 0.0, %v3475
        %v3477 = vpop.f32.mrf.mxu0
        %v3478 = vpop.f32.mrf.mxu0
        %v3479 = vadd.f32 0.0, %v3478
        %v3480 = vpop.f32.mrf.mxu0
        %3481 = vmatprep.mubr.bf16.mxu0 0
        %3482 = vmatmul.mubr.bf16.gmra.mxu0 %v3241
        %v3483 = vpop.f32.mrf.mxu0
        %v3484 = vadd.f32 0.0, %v3483
        %v3485 = vpop.f32.mrf.mxu0
        %v3486 = vpop.f32.mrf.mxu0
        %v3487 = vadd.f32 0.0, %v3486
        %v3488 = vpop.f32.mrf.mxu0
        %3489 = vmatprep.mubr.bf16.mxu0 0
        %3490 = vmatmul.mubr.bf16.gmra.mxu0 %v3244
        %v3491 = vpop.f32.mrf.mxu0
        %v3492 = vadd.f32 0.0, %v3491
        %v3493 = vpop.f32.mrf.mxu0
        %v3494 = vpop.f32.mrf.mxu0
        %v3495 = vadd.f32 0.0, %v3494
        %v3496 = vpop.f32.mrf.mxu0
        %3497 = vmatprep.mubr.bf16.mxu0 0
        %3498 = vmatmul.mubr.bf16.gmra.mxu0 %v3247
        %v3499 = vpop.f32.mrf.mxu0
        %v3500 = vadd.f32 0.0, %v3499
        %v3501 = vpop.f32.mrf.mxu0
        %v3502 = vpop.f32.mrf.mxu0
        %v3503 = vadd.f32 0.0, %v3502
        %v3504 = vpop.f32.mrf.mxu0
        %3505 = vmatprep.mubr.bf16.mxu0 0
        %3506 = vmatmul.mubr.bf16.gmra.mxu0 %v3250
        %v3507 = vpop.f32.mrf.mxu0
        %v3508 = vadd.f32 0.0, %v3507
        %v3509 = vpop.f32.mrf.mxu0
        %v3510 = vpop.f32.mrf.mxu0
        %v3511 = vadd.f32 0.0, %v3510
        %v3512 = vpop.f32.mrf.mxu0
        %3513 = vmatprep.mubr.bf16.mxu0 0
        %3514 = vmatmul.mubr.bf16.gmra.mxu0 %v3253
        %v3515 = vpop.f32.mrf.mxu0
        %v3516 = vadd.f32 0.0, %v3515
        %v3517 = vpop.f32.mrf.mxu0
        %v3518 = vpop.f32.mrf.mxu0
        %v3519 = vadd.f32 0.0, %v3518
        %v3520 = vpop.f32.mrf.mxu0
        %3521 = vmatprep.mubr.bf16.mxu0 0
        %3522 = vmatmul.mubr.bf16.gmra.mxu0 %v3256
        %v3523 = vpop.f32.mrf.mxu0
        %v3524 = vadd.f32 0.0, %v3523
        %v3525 = vpop.f32.mrf.mxu0
        %v3526 = vpop.f32.mrf.mxu0
        %v3527 = vadd.f32 0.0, %v3526
        %v3528 = vpop.f32.mrf.mxu0
        %3529 = vmatprep.mubr.bf16.mxu0 0
        %3530 = vmatmul.mubr.bf16.gmra.mxu0 %v3259
        %v3531 = vpop.f32.mrf.mxu0
        %v3532 = vadd.f32 0.0, %v3531
        %v3533 = vpop.f32.mrf.mxu0
        %v3534 = vpop.f32.mrf.mxu0
        %v3535 = vadd.f32 0.0, %v3534
        %v3536 = vpop.f32.mrf.mxu0
        %3537 = vmatprep.mubr.bf16.mxu0 0
        %3538 = vmatmul.mubr.bf16.gmra.mxu0 %v3262
        %v3539 = vpop.f32.mrf.mxu0
        %v3540 = vadd.f32 0.0, %v3539
        %v3541 = vpop.f32.mrf.mxu0
        %v3542 = vpop.f32.mrf.mxu0
        %v3543 = vadd.f32 0.0, %v3542
        %v3544 = vpop.f32.mrf.mxu0
        %3545 = vmatprep.mubr.bf16.mxu0 0
        %3546 = vmatmul.mubr.bf16.gmra.mxu0 %v3265
        %v3547 = vpop.f32.mrf.mxu0
        %v3548 = vadd.f32 0.0, %v3547
        %v3549 = vpop.f32.mrf.mxu0
        %v3550 = vpop.f32.mrf.mxu0
        %v3551 = vadd.f32 0.0, %v3550
        %v3552 = vpop.f32.mrf.mxu0
        %3553 = vmatprep.mubr.bf16.mxu0 0
        %3554 = vmatmul.mubr.bf16.gmra.mxu0 %v3268
        %v3555 = vpop.f32.mrf.mxu0
        %v3556 = vadd.f32 0.0, %v3555
        %v3557 = vpop.f32.mrf.mxu0
        %v3558 = vpop.f32.mrf.mxu0
        %v3559 = vadd.f32 0.0, %v3558
        %v3560 = vpop.f32.mrf.mxu0
        %3561 = vdwg.mxu0
        %v3562 = vadd.f32 %v3043, %v3308
        %v3563 = vadd.f32 %v3044, %v3311
        %v3564 = vadd.f32 %v3045, %v3316
        %v3565 = vadd.f32 %v3046, %v3319
        %v3566 = vadd.f32 %v3047, %v3324
        %v3567 = vadd.f32 %v3048, %v3327
        %v3568 = vadd.f32 %v3049, %v3332
        %v3569 = vadd.f32 %v3050, %v3335
        %v3570 = vadd.f32 %v3051, %v3340
        %v3571 = vadd.f32 %v3052, %v3343
        %v3572 = vadd.f32 %v3053, %v3348
        %v3573 = vadd.f32 %v3054, %v3351
        %v3574 = vadd.f32 %v3055, %v3356
        %v3575 = vadd.f32 %v3056, %v3359
        %v3576 = vadd.f32 %v3057, %v3364
        %v3577 = vadd.f32 %v3058, %v3367
        %v3578 = vadd.f32 %v3059, %v3372
        %v3579 = vadd.f32 %v3060, %v3375
        %v3580 = vadd.f32 %v3061, %v3380
        %v3581 = vadd.f32 %v3062, %v3383
        %v3582 = vadd.f32 %v3063, %v3388
        %v3583 = vadd.f32 %v3064, %v3391
        %v3584 = vadd.f32 %v3065, %v3396
        %v3585 = vadd.f32 %v3066, %v3399
        %v3586 = vadd.f32 %v3067, %v3404
        %v3587 = vadd.f32 %v3068, %v3407
        %v3588 = vadd.f32 %v3069, %v3412
        %v3589 = vadd.f32 %v3070, %v3415
        %v3590 = vadd.f32 %v3071, %v3420
        %v3591 = vadd.f32 %v3072, %v3423
        %v3592 = vadd.f32 %v3073, %v3428
        %v3593 = vadd.f32 %v3074, %v3431
        %v3594 = vadd.f32 %v3075, %v3436
        %v3595 = vadd.f32 %v3076, %v3439
        %v3596 = vadd.f32 %v3077, %v3444
        %v3597 = vadd.f32 %v3078, %v3447
        %v3598 = vadd.f32 %v3079, %v3452
        %v3599 = vadd.f32 %v3080, %v3455
        %v3600 = vadd.f32 %v3081, %v3460
        %v3601 = vadd.f32 %v3082, %v3463
        %v3602 = vadd.f32 %v3083, %v3468
        %v3603 = vadd.f32 %v3084, %v3471
        %v3604 = vadd.f32 %v3085, %v3476
        %v3605 = vadd.f32 %v3086, %v3479
        %v3606 = vadd.f32 %v3087, %v3484
        %v3607 = vadd.f32 %v3088, %v3487
        %v3608 = vadd.f32 %v3089, %v3492
        %v3609 = vadd.f32 %v3090, %v3495
        %v3610 = vadd.f32 %v3091, %v3500
        %v3611 = vadd.f32 %v3092, %v3503
        %v3612 = vadd.f32 %v3093, %v3508
        %v3613 = vadd.f32 %v3094, %v3511
        %v3614 = vadd.f32 %v3095, %v3516
        %v3615 = vadd.f32 %v3096, %v3519
        %v3616 = vadd.f32 %v3097, %v3524
        %v3617 = vadd.f32 %v3098, %v3527
        %v3618 = vadd.f32 %v3099, %v3532
        %v3619 = vadd.f32 %v3100, %v3535
        %v3620 = vadd.f32 %v3101, %v3540
        %v3621 = vadd.f32 %v3102, %v3543
        %v3622 = vadd.f32 %v3103, %v3548
        %v3623 = vadd.f32 %v3104, %v3551
        %v3624 = vadd.f32 %v3105, %v3556
        %v3625 = vadd.f32 %v3106, %v3559
        %v3626 = vld [vmem:[%s3 + $0x18] sm:$0xf]
        %v3627 = vrot.slane %v624, 2
        %v3628 = vsel %vm3108, %v3172, %v3627
        %v3630 = vsel %vm888, %v3628, 0
        %v3633 = vsel %vm985, %v3626, 0
        %3635 = vmatprep.subr.bf16.mxu0 0
        %3636 = vmatpush1.bf16.msra.mxu0 0
        %3637 = vmatprep.subr.bf16.mxu0 0
        %3638 = vmatpush1.bf16.msra.mxu0 0
        %3639 = vmatprep.subr.bf16.mxu0 0
        %3640 = vmatpush1.bf16.msra.mxu0 0
        %3641 = vmatprep.subr.bf16.mxu0 0
        %3642 = vmatpush1.bf16.msra.mxu0 0
        %3643 = vmatprep.subr.bf16.mxu0 0
        %3644 = vmatpush1.bf16.msra.mxu0 0
        %3645 = vmatprep.subr.bf16.mxu0 0
        %3646 = vmatpush1.bf16.msra.mxu0 0
        %3647 = vmatprep.subr.bf16.mxu0 0
        %3648 = vmatpush1.bf16.msra.mxu0 0
        %3649 = vmatprep.subr.bf16.mxu0 0
        %3650 = vmatpush1.bf16.msra.mxu0 %v3633
        %3651 = vmatprep.subr.bf16.mxu0 0
        %3652 = vmatpush2.bf16.msra.mxu0 0
        %3653 = vmatprep.subr.bf16.mxu0 0
        %3654 = vmatpush2.bf16.msra.mxu0 0
        %3655 = vmatprep.subr.bf16.mxu0 0
        %3656 = vmatpush2.bf16.msra.mxu0 0
        %3657 = vmatprep.subr.bf16.mxu0 0
        %3658 = vmatpush2.bf16.msra.mxu0 0
        %3659 = vmatprep.subr.bf16.mxu0 0
        %3660 = vmatpush2.bf16.msra.mxu0 0
        %3661 = vmatprep.subr.bf16.mxu0 0
        %3662 = vmatpush2.bf16.msra.mxu0 0
        %3663 = vmatprep.subr.bf16.mxu0 0
        %3664 = vmatpush2.bf16.msra.mxu0 0
        %3665 = vmatprep.subr.bf16.mxu0 0
        %3666 = vmatpush2.bf16.msra.mxu0 0
        %3667 = vmatprep.mubr.bf16.mxu0 0
        %3668 = vmatmul.mubr.bf16.gmra.mxu0 %v3178
        %v3669 = vpop.f32.mrf.mxu0
        %v3670 = vadd.f32 0.0, %v3669
        %v3671 = vpop.f32.mrf.mxu0
        %v3672 = vpop.f32.mrf.mxu0
        %v3673 = vadd.f32 0.0, %v3672
        %v3674 = vpop.f32.mrf.mxu0
        %3675 = vmatprep.mubr.bf16.mxu0 0
        %3676 = vmatmul.mubr.bf16.gmra.mxu0 %v3181
        %v3677 = vpop.f32.mrf.mxu0
        %v3678 = vadd.f32 0.0, %v3677
        %v3679 = vpop.f32.mrf.mxu0
        %v3680 = vpop.f32.mrf.mxu0
        %v3681 = vadd.f32 0.0, %v3680
        %v3682 = vpop.f32.mrf.mxu0
        %3683 = vmatprep.mubr.bf16.mxu0 0
        %3684 = vmatmul.mubr.bf16.gmra.mxu0 %v3184
        %v3685 = vpop.f32.mrf.mxu0
        %v3686 = vadd.f32 0.0, %v3685
        %v3687 = vpop.f32.mrf.mxu0
        %v3688 = vpop.f32.mrf.mxu0
        %v3689 = vadd.f32 0.0, %v3688
        %v3690 = vpop.f32.mrf.mxu0
        %3691 = vmatprep.mubr.bf16.mxu0 0
        %3692 = vmatmul.mubr.bf16.gmra.mxu0 %v3187
        %v3693 = vpop.f32.mrf.mxu0
        %v3694 = vadd.f32 0.0, %v3693
        %v3695 = vpop.f32.mrf.mxu0
        %v3696 = vpop.f32.mrf.mxu0
        %v3697 = vadd.f32 0.0, %v3696
        %v3698 = vpop.f32.mrf.mxu0
        %3699 = vmatprep.mubr.bf16.mxu0 0
        %3700 = vmatmul.mubr.bf16.gmra.mxu0 %v3190
        %v3701 = vpop.f32.mrf.mxu0
        %v3702 = vadd.f32 0.0, %v3701
        %v3703 = vpop.f32.mrf.mxu0
        %v3704 = vpop.f32.mrf.mxu0
        %v3705 = vadd.f32 0.0, %v3704
        %v3706 = vpop.f32.mrf.mxu0
        %3707 = vmatprep.mubr.bf16.mxu0 0
        %3708 = vmatmul.mubr.bf16.gmra.mxu0 %v3193
        %v3709 = vpop.f32.mrf.mxu0
        %v3710 = vadd.f32 0.0, %v3709
        %v3711 = vpop.f32.mrf.mxu0
        %v3712 = vpop.f32.mrf.mxu0
        %v3713 = vadd.f32 0.0, %v3712
        %v3714 = vpop.f32.mrf.mxu0
        %3715 = vmatprep.mubr.bf16.mxu0 0
        %3716 = vmatmul.mubr.bf16.gmra.mxu0 %v3196
        %v3717 = vpop.f32.mrf.mxu0
        %v3718 = vadd.f32 0.0, %v3717
        %v3719 = vpop.f32.mrf.mxu0
        %v3720 = vpop.f32.mrf.mxu0
        %v3721 = vadd.f32 0.0, %v3720
        %v3722 = vpop.f32.mrf.mxu0
        %3723 = vmatprep.mubr.bf16.mxu0 0
        %3724 = vmatmul.mubr.bf16.gmra.mxu0 %v3199
        %v3725 = vpop.f32.mrf.mxu0
        %v3726 = vadd.f32 0.0, %v3725
        %v3727 = vpop.f32.mrf.mxu0
        %v3728 = vpop.f32.mrf.mxu0
        %v3729 = vadd.f32 0.0, %v3728
        %v3730 = vpop.f32.mrf.mxu0
        %3731 = vmatprep.mubr.bf16.mxu0 0
        %3732 = vmatmul.mubr.bf16.gmra.mxu0 %v3202
        %v3733 = vpop.f32.mrf.mxu0
        %v3734 = vadd.f32 0.0, %v3733
        %v3735 = vpop.f32.mrf.mxu0
        %v3736 = vpop.f32.mrf.mxu0
        %v3737 = vadd.f32 0.0, %v3736
        %v3738 = vpop.f32.mrf.mxu0
        %3739 = vmatprep.mubr.bf16.mxu0 0
        %3740 = vmatmul.mubr.bf16.gmra.mxu0 %v3205
        %v3741 = vpop.f32.mrf.mxu0
        %v3742 = vadd.f32 0.0, %v3741
        %v3743 = vpop.f32.mrf.mxu0
        %v3744 = vpop.f32.mrf.mxu0
        %v3745 = vadd.f32 0.0, %v3744
        %v3746 = vpop.f32.mrf.mxu0
        %3747 = vmatprep.mubr.bf16.mxu0 0
        %3748 = vmatmul.mubr.bf16.gmra.mxu0 %v3208
        %v3749 = vpop.f32.mrf.mxu0
        %v3750 = vadd.f32 0.0, %v3749
        %v3751 = vpop.f32.mrf.mxu0
        %v3752 = vpop.f32.mrf.mxu0
        %v3753 = vadd.f32 0.0, %v3752
        %v3754 = vpop.f32.mrf.mxu0
        %3755 = vmatprep.mubr.bf16.mxu0 0
        %3756 = vmatmul.mubr.bf16.gmra.mxu0 %v3211
        %v3757 = vpop.f32.mrf.mxu0
        %v3758 = vadd.f32 0.0, %v3757
        %v3759 = vpop.f32.mrf.mxu0
        %v3760 = vpop.f32.mrf.mxu0
        %v3761 = vadd.f32 0.0, %v3760
        %v3762 = vpop.f32.mrf.mxu0
        %3763 = vmatprep.mubr.bf16.mxu0 0
        %3764 = vmatmul.mubr.bf16.gmra.mxu0 %v3214
        %v3765 = vpop.f32.mrf.mxu0
        %v3766 = vadd.f32 0.0, %v3765
        %v3767 = vpop.f32.mrf.mxu0
        %v3768 = vpop.f32.mrf.mxu0
        %v3769 = vadd.f32 0.0, %v3768
        %v3770 = vpop.f32.mrf.mxu0
        %3771 = vmatprep.mubr.bf16.mxu0 0
        %3772 = vmatmul.mubr.bf16.gmra.mxu0 %v3217
        %v3773 = vpop.f32.mrf.mxu0
        %v3774 = vadd.f32 0.0, %v3773
        %v3775 = vpop.f32.mrf.mxu0
        %v3776 = vpop.f32.mrf.mxu0
        %v3777 = vadd.f32 0.0, %v3776
        %v3778 = vpop.f32.mrf.mxu0
        %3779 = vmatprep.mubr.bf16.mxu0 0
        %3780 = vmatmul.mubr.bf16.gmra.mxu0 %v3220
        %v3781 = vpop.f32.mrf.mxu0
        %v3782 = vadd.f32 0.0, %v3781
        %v3783 = vpop.f32.mrf.mxu0
        %v3784 = vpop.f32.mrf.mxu0
        %v3785 = vadd.f32 0.0, %v3784
        %v3786 = vpop.f32.mrf.mxu0
        %3787 = vmatprep.mubr.bf16.mxu0 0
        %3788 = vmatmul.mubr.bf16.gmra.mxu0 %v3223
        %v3789 = vpop.f32.mrf.mxu0
        %v3790 = vadd.f32 0.0, %v3789
        %v3791 = vpop.f32.mrf.mxu0
        %v3792 = vpop.f32.mrf.mxu0
        %v3793 = vadd.f32 0.0, %v3792
        %v3794 = vpop.f32.mrf.mxu0
        %3795 = vmatprep.mubr.bf16.mxu0 0
        %3796 = vmatmul.mubr.bf16.gmra.mxu0 %v3226
        %v3797 = vpop.f32.mrf.mxu0
        %v3798 = vadd.f32 0.0, %v3797
        %v3799 = vpop.f32.mrf.mxu0
        %v3800 = vpop.f32.mrf.mxu0
        %v3801 = vadd.f32 0.0, %v3800
        %v3802 = vpop.f32.mrf.mxu0
        %3803 = vmatprep.mubr.bf16.mxu0 0
        %3804 = vmatmul.mubr.bf16.gmra.mxu0 %v3229
        %v3805 = vpop.f32.mrf.mxu0
        %v3806 = vadd.f32 0.0, %v3805
        %v3807 = vpop.f32.mrf.mxu0
        %v3808 = vpop.f32.mrf.mxu0
        %v3809 = vadd.f32 0.0, %v3808
        %v3810 = vpop.f32.mrf.mxu0
        %3811 = vmatprep.mubr.bf16.mxu0 0
        %3812 = vmatmul.mubr.bf16.gmra.mxu0 %v3232
        %v3813 = vpop.f32.mrf.mxu0
        %v3814 = vadd.f32 0.0, %v3813
        %v3815 = vpop.f32.mrf.mxu0
        %v3816 = vpop.f32.mrf.mxu0
        %v3817 = vadd.f32 0.0, %v3816
        %v3818 = vpop.f32.mrf.mxu0
        %3819 = vmatprep.mubr.bf16.mxu0 0
        %3820 = vmatmul.mubr.bf16.gmra.mxu0 %v3235
        %v3821 = vpop.f32.mrf.mxu0
        %v3822 = vadd.f32 0.0, %v3821
        %v3823 = vpop.f32.mrf.mxu0
        %v3824 = vpop.f32.mrf.mxu0
        %v3825 = vadd.f32 0.0, %v3824
        %v3826 = vpop.f32.mrf.mxu0
        %3827 = vmatprep.mubr.bf16.mxu0 0
        %3828 = vmatmul.mubr.bf16.gmra.mxu0 %v3238
        %v3829 = vpop.f32.mrf.mxu0
        %v3830 = vadd.f32 0.0, %v3829
        %v3831 = vpop.f32.mrf.mxu0
        %v3832 = vpop.f32.mrf.mxu0
        %v3833 = vadd.f32 0.0, %v3832
        %v3834 = vpop.f32.mrf.mxu0
        %3835 = vmatprep.mubr.bf16.mxu0 0
        %3836 = vmatmul.mubr.bf16.gmra.mxu0 %v3241
        %v3837 = vpop.f32.mrf.mxu0
        %v3838 = vadd.f32 0.0, %v3837
        %v3839 = vpop.f32.mrf.mxu0
        %v3840 = vpop.f32.mrf.mxu0
        %v3841 = vadd.f32 0.0, %v3840
        %v3842 = vpop.f32.mrf.mxu0
        %3843 = vmatprep.mubr.bf16.mxu0 0
        %3844 = vmatmul.mubr.bf16.gmra.mxu0 %v3244
        %v3845 = vpop.f32.mrf.mxu0
        %v3846 = vadd.f32 0.0, %v3845
        %v3847 = vpop.f32.mrf.mxu0
        %v3848 = vpop.f32.mrf.mxu0
        %v3849 = vadd.f32 0.0, %v3848
        %v3850 = vpop.f32.mrf.mxu0
        %3851 = vmatprep.mubr.bf16.mxu0 0
        %3852 = vmatmul.mubr.bf16.gmra.mxu0 %v3247
        %v3853 = vpop.f32.mrf.mxu0
        %v3854 = vadd.f32 0.0, %v3853
        %v3855 = vpop.f32.mrf.mxu0
        %v3856 = vpop.f32.mrf.mxu0
        %v3857 = vadd.f32 0.0, %v3856
        %v3858 = vpop.f32.mrf.mxu0
        %3859 = vmatprep.mubr.bf16.mxu0 0
        %3860 = vmatmul.mubr.bf16.gmra.mxu0 %v3250
        %v3861 = vpop.f32.mrf.mxu0
        %v3862 = vadd.f32 0.0, %v3861
        %v3863 = vpop.f32.mrf.mxu0
        %v3864 = vpop.f32.mrf.mxu0
        %v3865 = vadd.f32 0.0, %v3864
        %v3866 = vpop.f32.mrf.mxu0
        %3867 = vmatprep.mubr.bf16.mxu0 0
        %3868 = vmatmul.mubr.bf16.gmra.mxu0 %v3253
        %v3869 = vpop.f32.mrf.mxu0
        %v3870 = vadd.f32 0.0, %v3869
        %v3871 = vpop.f32.mrf.mxu0
        %v3872 = vpop.f32.mrf.mxu0
        %v3873 = vadd.f32 0.0, %v3872
        %v3874 = vpop.f32.mrf.mxu0
        %3875 = vmatprep.mubr.bf16.mxu0 0
        %3876 = vmatmul.mubr.bf16.gmra.mxu0 %v3256
        %v3877 = vpop.f32.mrf.mxu0
        %v3878 = vadd.f32 0.0, %v3877
        %v3879 = vpop.f32.mrf.mxu0
        %v3880 = vpop.f32.mrf.mxu0
        %v3881 = vadd.f32 0.0, %v3880
        %v3882 = vpop.f32.mrf.mxu0
        %3883 = vmatprep.mubr.bf16.mxu0 0
        %3884 = vmatmul.mubr.bf16.gmra.mxu0 %v3259
        %v3885 = vpop.f32.mrf.mxu0
        %v3886 = vadd.f32 0.0, %v3885
        %v3887 = vpop.f32.mrf.mxu0
        %v3888 = vpop.f32.mrf.mxu0
        %v3889 = vadd.f32 0.0, %v3888
        %v3890 = vpop.f32.mrf.mxu0
        %3891 = vmatprep.mubr.bf16.mxu0 0
        %3892 = vmatmul.mubr.bf16.gmra.mxu0 %v3262
        %v3893 = vpop.f32.mrf.mxu0
        %v3894 = vadd.f32 0.0, %v3893
        %v3895 = vpop.f32.mrf.mxu0
        %v3896 = vpop.f32.mrf.mxu0
        %v3897 = vadd.f32 0.0, %v3896
        %v3898 = vpop.f32.mrf.mxu0
        %3899 = vmatprep.mubr.bf16.mxu0 0
        %3900 = vmatmul.mubr.bf16.gmra.mxu0 %v3265
        %v3901 = vpop.f32.mrf.mxu0
        %v3902 = vadd.f32 0.0, %v3901
        %v3903 = vpop.f32.mrf.mxu0
        %v3904 = vpop.f32.mrf.mxu0
        %v3905 = vadd.f32 0.0, %v3904
        %v3906 = vpop.f32.mrf.mxu0
        %3907 = vmatprep.mubr.bf16.mxu0 0
        %3908 = vmatmul.mubr.bf16.gmra.mxu0 %v3268
        %v3909 = vpop.f32.mrf.mxu0
        %v3910 = vadd.f32 0.0, %v3909
        %v3911 = vpop.f32.mrf.mxu0
        %v3912 = vpop.f32.mrf.mxu0
        %v3913 = vadd.f32 0.0, %v3912
        %v3914 = vpop.f32.mrf.mxu0
        %3915 = vmatprep.mubr.bf16.mxu0 0
        %3916 = vmatmul.mubr.bf16.gmra.mxu0 %v3630
        %v3917 = vpop.f32.mrf.mxu0
        %v3918 = vadd.f32 0.0, %v3917
        %v3919 = vpop.f32.mrf.mxu0
        %v3920 = vpop.f32.mrf.mxu0
        %v3921 = vadd.f32 0.0, %v3920
        %v3922 = vpop.f32.mrf.mxu0
        %3923 = vdwg.mxu0
        %v3924 = vadd.f32 %v3562, %v3670
        %v3925 = vadd.f32 %v3563, %v3673
        %v3926 = vadd.f32 %v3564, %v3678
        %v3927 = vadd.f32 %v3565, %v3681
        %v3928 = vadd.f32 %v3566, %v3686
        %v3929 = vadd.f32 %v3567, %v3689
        %v3930 = vadd.f32 %v3568, %v3694
        %v3931 = vadd.f32 %v3569, %v3697
        %v3932 = vadd.f32 %v3570, %v3702
        %v3933 = vadd.f32 %v3571, %v3705
        %v3934 = vadd.f32 %v3572, %v3710
        %v3935 = vadd.f32 %v3573, %v3713
        %v3936 = vadd.f32 %v3574, %v3718
        %v3937 = vadd.f32 %v3575, %v3721
        %v3938 = vadd.f32 %v3576, %v3726
        %v3939 = vadd.f32 %v3577, %v3729
        %v3940 = vadd.f32 %v3578, %v3734
        %v3941 = vadd.f32 %v3579, %v3737
        %v3942 = vadd.f32 %v3580, %v3742
        %v3943 = vadd.f32 %v3581, %v3745
        %v3944 = vadd.f32 %v3582, %v3750
        %v3945 = vadd.f32 %v3583, %v3753
        %v3946 = vadd.f32 %v3584, %v3758
        %v3947 = vadd.f32 %v3585, %v3761
        %v3948 = vadd.f32 %v3586, %v3766
        %v3949 = vadd.f32 %v3587, %v3769
        %v3950 = vadd.f32 %v3588, %v3774
        %v3951 = vadd.f32 %v3589, %v3777
        %v3952 = vadd.f32 %v3590, %v3782
        %v3953 = vadd.f32 %v3591, %v3785
        %v3954 = vadd.f32 %v3592, %v3790
        %v3955 = vadd.f32 %v3593, %v3793
        %v3956 = vadd.f32 %v3594, %v3798
        %v3957 = vadd.f32 %v3595, %v3801
        %v3958 = vadd.f32 %v3596, %v3806
        %v3959 = vadd.f32 %v3597, %v3809
        %v3960 = vadd.f32 %v3598, %v3814
        %v3961 = vadd.f32 %v3599, %v3817
        %v3962 = vadd.f32 %v3600, %v3822
        %v3963 = vadd.f32 %v3601, %v3825
        %v3964 = vadd.f32 %v3602, %v3830
        %v3965 = vadd.f32 %v3603, %v3833
        %v3966 = vadd.f32 %v3604, %v3838
        %v3967 = vadd.f32 %v3605, %v3841
        %v3968 = vadd.f32 %v3606, %v3846
        %v3969 = vadd.f32 %v3607, %v3849
        %v3970 = vadd.f32 %v3608, %v3854
        %v3971 = vadd.f32 %v3609, %v3857
        %v3972 = vadd.f32 %v3610, %v3862
        %v3973 = vadd.f32 %v3611, %v3865
        %v3974 = vadd.f32 %v3612, %v3870
        %v3975 = vadd.f32 %v3613, %v3873
        %v3976 = vadd.f32 %v3614, %v3878
        %v3977 = vadd.f32 %v3615, %v3881
        %v3978 = vadd.f32 %v3616, %v3886
        %v3979 = vadd.f32 %v3617, %v3889
        %v3980 = vadd.f32 %v3618, %v3894
        %v3981 = vadd.f32 %v3619, %v3897
        %v3982 = vadd.f32 %v3620, %v3902
        %v3983 = vadd.f32 %v3621, %v3905
        %v3984 = vadd.f32 %v3622, %v3910
        %v3985 = vadd.f32 %v3623, %v3913
        %v3986 = vadd.f32 %v3624, %v3918
        %v3987 = vadd.f32 %v3625, %v3921
        %v3988 = vld [vmem:[%s3 + $0x1c] sm:$0xf]
        %vm3989 = vsmask.f32 5376
        %v3990 = vrot.slane %v648, 2
        %v3991 = vrot.slane %v644, 3
        %v3992 = vor.u32 %v3990, %v3991
        %v3993 = vrot.slane %v656, 2
        %v3994 = vrot.slane %v652, 3
        %v3995 = vor.u32 %v3993, %v3994
        %v3996 = vsel %vm3989, %v3992, %v3995
        %v3997 = vrot.slane %v664, 2
        %v3998 = vrot.slane %v660, 3
        %v3999 = vor.u32 %v3997, %v3998
        %v4000 = vsel %vm3989, %v3995, %v3999
        %v4001 = vrot.slane %v672, 2
        %v4002 = vrot.slane %v668, 3
        %v4003 = vor.u32 %v4001, %v4002
        %v4004 = vsel %vm3989, %v3999, %v4003
        %v4005 = vrot.slane %v680, 2
        %v4006 = vrot.slane %v676, 3
        %v4007 = vor.u32 %v4005, %v4006
        %v4008 = vsel %vm3989, %v4003, %v4007
        %v4009 = vrot.slane %v688, 2
        %v4010 = vrot.slane %v684, 3
        %v4011 = vor.u32 %v4009, %v4010
        %v4012 = vsel %vm3989, %v4007, %v4011
        %v4013 = vrot.slane %v696, 2
        %v4014 = vrot.slane %v692, 3
        %v4015 = vor.u32 %v4013, %v4014
        %v4016 = vsel %vm3989, %v4011, %v4015
        %v4017 = vrot.slane %v704, 2
        %v4018 = vrot.slane %v700, 3
        %v4019 = vor.u32 %v4017, %v4018
        %v4020 = vsel %vm3989, %v4015, %v4019
        %v4021 = vrot.slane %v712, 2
        %v4022 = vrot.slane %v708, 3
        %v4023 = vor.u32 %v4021, %v4022
        %v4024 = vsel %vm3989, %v4019, %v4023
        %v4025 = vrot.slane %v720, 2
        %v4026 = vrot.slane %v716, 3
        %v4027 = vor.u32 %v4025, %v4026
        %v4028 = vsel %vm3989, %v4023, %v4027
        %v4029 = vrot.slane %v728, 2
        %v4030 = vrot.slane %v724, 3
        %v4031 = vor.u32 %v4029, %v4030
        %v4032 = vsel %vm3989, %v4027, %v4031
        %v4033 = vrot.slane %v736, 2
        %v4034 = vrot.slane %v732, 3
        %v4035 = vor.u32 %v4033, %v4034
        %v4036 = vsel %vm3989, %v4031, %v4035
        %v4037 = vrot.slane %v744, 2
        %v4038 = vrot.slane %v740, 3
        %v4039 = vor.u32 %v4037, %v4038
        %v4040 = vsel %vm3989, %v4035, %v4039
        %v4041 = vrot.slane %v752, 2
        %v4042 = vrot.slane %v748, 3
        %v4043 = vor.u32 %v4041, %v4042
        %v4044 = vsel %vm3989, %v4039, %v4043
        %v4045 = vrot.slane %v760, 2
        %v4046 = vrot.slane %v756, 3
        %v4047 = vor.u32 %v4045, %v4046
        %v4048 = vsel %vm3989, %v4043, %v4047
        %v4049 = vrot.slane %v768, 2
        %v4050 = vrot.slane %v764, 3
        %v4051 = vor.u32 %v4049, %v4050
        %v4052 = vsel %vm3989, %v4047, %v4051
        %v4053 = vrot.slane %v776, 2
        %v4054 = vrot.slane %v772, 3
        %v4055 = vor.u32 %v4053, %v4054
        %v4056 = vsel %vm3989, %v4051, %v4055
        %v4057 = vrot.slane %v784, 2
        %v4058 = vrot.slane %v780, 3
        %v4059 = vor.u32 %v4057, %v4058
        %v4060 = vsel %vm3989, %v4055, %v4059
        %v4061 = vrot.slane %v792, 2
        %v4062 = vrot.slane %v788, 3
        %v4063 = vor.u32 %v4061, %v4062
        %v4064 = vsel %vm3989, %v4059, %v4063
        %v4065 = vrot.slane %v800, 2
        %v4066 = vrot.slane %v796, 3
        %v4067 = vor.u32 %v4065, %v4066
        %v4068 = vsel %vm3989, %v4063, %v4067
        %v4069 = vrot.slane %v808, 2
        %v4070 = vrot.slane %v804, 3
        %v4071 = vor.u32 %v4069, %v4070
        %v4072 = vsel %vm3989, %v4067, %v4071
        %v4073 = vrot.slane %v816, 2
        %v4074 = vrot.slane %v812, 3
        %v4075 = vor.u32 %v4073, %v4074
        %v4076 = vsel %vm3989, %v4071, %v4075
        %v4077 = vrot.slane %v824, 2
        %v4078 = vrot.slane %v820, 3
        %v4079 = vor.u32 %v4077, %v4078
        %v4080 = vsel %vm3989, %v4075, %v4079
        %v4081 = vrot.slane %v832, 2
        %v4082 = vrot.slane %v828, 3
        %v4083 = vor.u32 %v4081, %v4082
        %v4084 = vsel %vm3989, %v4079, %v4083
        %v4085 = vrot.slane %v840, 2
        %v4086 = vrot.slane %v836, 3
        %v4087 = vor.u32 %v4085, %v4086
        %v4088 = vsel %vm3989, %v4083, %v4087
        %v4089 = vrot.slane %v848, 2
        %v4090 = vrot.slane %v844, 3
        %v4091 = vor.u32 %v4089, %v4090
        %v4092 = vsel %vm3989, %v4087, %v4091
        %v4093 = vrot.slane %v856, 2
        %v4094 = vrot.slane %v852, 3
        %v4095 = vor.u32 %v4093, %v4094
        %v4096 = vsel %vm3989, %v4091, %v4095
        %v4097 = vrot.slane %v864, 2
        %v4098 = vrot.slane %v860, 3
        %v4099 = vor.u32 %v4097, %v4098
        %v4100 = vsel %vm3989, %v4095, %v4099
        %v4101 = vrot.slane %v872, 2
        %v4102 = vrot.slane %v868, 3
        %v4103 = vor.u32 %v4101, %v4102
        %v4104 = vsel %vm3989, %v4099, %v4103
        %v4105 = vrot.slane %v880, 2
        %v4106 = vrot.slane %v876, 3
        %v4107 = vor.u32 %v4105, %v4106
        %v4108 = vsel %vm3989, %v4103, %v4107
        %v4109 = vrot.slane %v2640, 2
        %v4110 = vrot.slane %v884, 3
        %v4111 = vor.u32 %v4109, %v4110
        %v4112 = vsel %vm3989, %v4107, %v4111
        %v4113 = vrot.slane %v2647, 2
        %v4114 = vrot.slane %v2650, 3
        %v4115 = vor.u32 %v4113, %v4114
        %v4116 = vsel %vm3989, %v4111, %v4115
        %v4118 = vshrl.u32 %v624, 16
        %v4120 = vrot.slane %v4118, 2
        %v4121 = vshll.u32 %v624, 16
        %v4123 = vrot.slane %v4121, 3
        %v4124 = vor.u32 %v4120, %v4123
        %v4125 = vsel %vm3989, %v4115, %v4124
        %v4127 = vsel %vm888, %v3996, 0
        %v4130 = vsel %vm888, %v4000, 0
        %v4133 = vsel %vm888, %v4004, 0
        %v4136 = vsel %vm888, %v4008, 0
        %v4139 = vsel %vm888, %v4012, 0
        %v4142 = vsel %vm888, %v4016, 0
        %v4145 = vsel %vm888, %v4020, 0
        %v4148 = vsel %vm888, %v4024, 0
        %v4151 = vsel %vm888, %v4028, 0
        %v4154 = vsel %vm888, %v4032, 0
        %v4157 = vsel %vm888, %v4036, 0
        %v4160 = vsel %vm888, %v4040, 0
        %v4163 = vsel %vm888, %v4044, 0
        %v4166 = vsel %vm888, %v4048, 0
        %v4169 = vsel %vm888, %v4052, 0
        %v4172 = vsel %vm888, %v4056, 0
        %v4175 = vsel %vm888, %v4060, 0
        %v4178 = vsel %vm888, %v4064, 0
        %v4181 = vsel %vm888, %v4068, 0
        %v4184 = vsel %vm888, %v4072, 0
        %v4187 = vsel %vm888, %v4076, 0
        %v4190 = vsel %vm888, %v4080, 0
        %v4193 = vsel %vm888, %v4084, 0
        %v4196 = vsel %vm888, %v4088, 0
        %v4199 = vsel %vm888, %v4092, 0
        %v4202 = vsel %vm888, %v4096, 0
        %v4205 = vsel %vm888, %v4100, 0
        %v4208 = vsel %vm888, %v4104, 0
        %v4211 = vsel %vm888, %v4108, 0
        %v4214 = vsel %vm888, %v4112, 0
        %v4217 = vsel %vm888, %v4116, 0
        %v4220 = vsel %vm888, %v4125, 0
        %v4223 = vsel %vm985, %v3988, 0
        %4225 = vmatprep.subr.bf16.mxu0 0
        %4226 = vmatpush1.bf16.msra.mxu0 0
        %4227 = vmatprep.subr.bf16.mxu0 0
        %4228 = vmatpush1.bf16.msra.mxu0 0
        %4229 = vmatprep.subr.bf16.mxu0 0
        %4230 = vmatpush1.bf16.msra.mxu0 0
        %4231 = vmatprep.subr.bf16.mxu0 0
        %4232 = vmatpush1.bf16.msra.mxu0 0
        %4233 = vmatprep.subr.bf16.mxu0 0
        %4234 = vmatpush1.bf16.msra.mxu0 0
        %4235 = vmatprep.subr.bf16.mxu0 0
        %4236 = vmatpush1.bf16.msra.mxu0 0
        %4237 = vmatprep.subr.bf16.mxu0 0
        %4238 = vmatpush1.bf16.msra.mxu0 0
        %4239 = vmatprep.subr.bf16.mxu0 0
        %4240 = vmatpush1.bf16.msra.mxu0 %v4223
        %4241 = vmatprep.subr.bf16.mxu0 0
        %4242 = vmatpush2.bf16.msra.mxu0 0
        %4243 = vmatprep.subr.bf16.mxu0 0
        %4244 = vmatpush2.bf16.msra.mxu0 0
        %4245 = vmatprep.subr.bf16.mxu0 0
        %4246 = vmatpush2.bf16.msra.mxu0 0
        %4247 = vmatprep.subr.bf16.mxu0 0
        %4248 = vmatpush2.bf16.msra.mxu0 0
        %4249 = vmatprep.subr.bf16.mxu0 0
        %4250 = vmatpush2.bf16.msra.mxu0 0
        %4251 = vmatprep.subr.bf16.mxu0 0
        %4252 = vmatpush2.bf16.msra.mxu0 0
        %4253 = vmatprep.subr.bf16.mxu0 0
        %4254 = vmatpush2.bf16.msra.mxu0 0
        %4255 = vmatprep.subr.bf16.mxu0 0
        %4256 = vmatpush2.bf16.msra.mxu0 0
        %4257 = vmatprep.mubr.bf16.mxu0 0
        %4258 = vmatmul.mubr.bf16.gmra.mxu0 %v4127
        %v4259 = vpop.f32.mrf.mxu0
        %v4260 = vadd.f32 0.0, %v4259
        %v4261 = vpop.f32.mrf.mxu0
        %v4262 = vpop.f32.mrf.mxu0
        %v4263 = vadd.f32 0.0, %v4262
        %v4264 = vpop.f32.mrf.mxu0
        %4265 = vmatprep.mubr.bf16.mxu0 0
        %4266 = vmatmul.mubr.bf16.gmra.mxu0 %v4130
        %v4267 = vpop.f32.mrf.mxu0
        %v4268 = vadd.f32 0.0, %v4267
        %v4269 = vpop.f32.mrf.mxu0
        %v4270 = vpop.f32.mrf.mxu0
        %v4271 = vadd.f32 0.0, %v4270
        %v4272 = vpop.f32.mrf.mxu0
        %4273 = vmatprep.mubr.bf16.mxu0 0
        %4274 = vmatmul.mubr.bf16.gmra.mxu0 %v4133
        %v4275 = vpop.f32.mrf.mxu0
        %v4276 = vadd.f32 0.0, %v4275
        %v4277 = vpop.f32.mrf.mxu0
        %v4278 = vpop.f32.mrf.mxu0
        %v4279 = vadd.f32 0.0, %v4278
        %v4280 = vpop.f32.mrf.mxu0
        %4281 = vmatprep.mubr.bf16.mxu0 0
        %4282 = vmatmul.mubr.bf16.gmra.mxu0 %v4136
        %v4283 = vpop.f32.mrf.mxu0
        %v4284 = vadd.f32 0.0, %v4283
        %v4285 = vpop.f32.mrf.mxu0
        %v4286 = vpop.f32.mrf.mxu0
        %v4287 = vadd.f32 0.0, %v4286
        %v4288 = vpop.f32.mrf.mxu0
        %4289 = vmatprep.mubr.bf16.mxu0 0
        %4290 = vmatmul.mubr.bf16.gmra.mxu0 %v4139
        %v4291 = vpop.f32.mrf.mxu0
        %v4292 = vadd.f32 0.0, %v4291
        %v4293 = vpop.f32.mrf.mxu0
        %v4294 = vpop.f32.mrf.mxu0
        %v4295 = vadd.f32 0.0, %v4294
        %v4296 = vpop.f32.mrf.mxu0
        %4297 = vmatprep.mubr.bf16.mxu0 0
        %4298 = vmatmul.mubr.bf16.gmra.mxu0 %v4142
        %v4299 = vpop.f32.mrf.mxu0
        %v4300 = vadd.f32 0.0, %v4299
        %v4301 = vpop.f32.mrf.mxu0
        %v4302 = vpop.f32.mrf.mxu0
        %v4303 = vadd.f32 0.0, %v4302
        %v4304 = vpop.f32.mrf.mxu0
        %4305 = vmatprep.mubr.bf16.mxu0 0
        %4306 = vmatmul.mubr.bf16.gmra.mxu0 %v4145
        %v4307 = vpop.f32.mrf.mxu0
        %v4308 = vadd.f32 0.0, %v4307
        %v4309 = vpop.f32.mrf.mxu0
        %v4310 = vpop.f32.mrf.mxu0
        %v4311 = vadd.f32 0.0, %v4310
        %v4312 = vpop.f32.mrf.mxu0
        %4313 = vmatprep.mubr.bf16.mxu0 0
        %4314 = vmatmul.mubr.bf16.gmra.mxu0 %v4148
        %v4315 = vpop.f32.mrf.mxu0
        %v4316 = vadd.f32 0.0, %v4315
        %v4317 = vpop.f32.mrf.mxu0
        %v4318 = vpop.f32.mrf.mxu0
        %v4319 = vadd.f32 0.0, %v4318
        %v4320 = vpop.f32.mrf.mxu0
        %4321 = vmatprep.mubr.bf16.mxu0 0
        %4322 = vmatmul.mubr.bf16.gmra.mxu0 %v4151
        %v4323 = vpop.f32.mrf.mxu0
        %v4324 = vadd.f32 0.0, %v4323
        %v4325 = vpop.f32.mrf.mxu0
        %v4326 = vpop.f32.mrf.mxu0
        %v4327 = vadd.f32 0.0, %v4326
        %v4328 = vpop.f32.mrf.mxu0
        %4329 = vmatprep.mubr.bf16.mxu0 0
        %4330 = vmatmul.mubr.bf16.gmra.mxu0 %v4154
        %v4331 = vpop.f32.mrf.mxu0
        %v4332 = vadd.f32 0.0, %v4331
        %v4333 = vpop.f32.mrf.mxu0
        %v4334 = vpop.f32.mrf.mxu0
        %v4335 = vadd.f32 0.0, %v4334
        %v4336 = vpop.f32.mrf.mxu0
        %4337 = vmatprep.mubr.bf16.mxu0 0
        %4338 = vmatmul.mubr.bf16.gmra.mxu0 %v4157
        %v4339 = vpop.f32.mrf.mxu0
        %v4340 = vadd.f32 0.0, %v4339
        %v4341 = vpop.f32.mrf.mxu0
        %v4342 = vpop.f32.mrf.mxu0
        %v4343 = vadd.f32 0.0, %v4342
        %v4344 = vpop.f32.mrf.mxu0
        %4345 = vmatprep.mubr.bf16.mxu0 0
        %4346 = vmatmul.mubr.bf16.gmra.mxu0 %v4160
        %v4347 = vpop.f32.mrf.mxu0
        %v4348 = vadd.f32 0.0, %v4347
        %v4349 = vpop.f32.mrf.mxu0
        %v4350 = vpop.f32.mrf.mxu0
        %v4351 = vadd.f32 0.0, %v4350
        %v4352 = vpop.f32.mrf.mxu0
        %4353 = vmatprep.mubr.bf16.mxu0 0
        %4354 = vmatmul.mubr.bf16.gmra.mxu0 %v4163
        %v4355 = vpop.f32.mrf.mxu0
        %v4356 = vadd.f32 0.0, %v4355
        %v4357 = vpop.f32.mrf.mxu0
        %v4358 = vpop.f32.mrf.mxu0
        %v4359 = vadd.f32 0.0, %v4358
        %v4360 = vpop.f32.mrf.mxu0
        %4361 = vmatprep.mubr.bf16.mxu0 0
        %4362 = vmatmul.mubr.bf16.gmra.mxu0 %v4166
        %v4363 = vpop.f32.mrf.mxu0
        %v4364 = vadd.f32 0.0, %v4363
        %v4365 = vpop.f32.mrf.mxu0
        %v4366 = vpop.f32.mrf.mxu0
        %v4367 = vadd.f32 0.0, %v4366
        %v4368 = vpop.f32.mrf.mxu0
        %4369 = vmatprep.mubr.bf16.mxu0 0
        %4370 = vmatmul.mubr.bf16.gmra.mxu0 %v4169
        %v4371 = vpop.f32.mrf.mxu0
        %v4372 = vadd.f32 0.0, %v4371
        %v4373 = vpop.f32.mrf.mxu0
        %v4374 = vpop.f32.mrf.mxu0
        %v4375 = vadd.f32 0.0, %v4374
        %v4376 = vpop.f32.mrf.mxu0
        %4377 = vmatprep.mubr.bf16.mxu0 0
        %4378 = vmatmul.mubr.bf16.gmra.mxu0 %v4172
        %v4379 = vpop.f32.mrf.mxu0
        %v4380 = vadd.f32 0.0, %v4379
        %v4381 = vpop.f32.mrf.mxu0
        %v4382 = vpop.f32.mrf.mxu0
        %v4383 = vadd.f32 0.0, %v4382
        %v4384 = vpop.f32.mrf.mxu0
        %4385 = vmatprep.mubr.bf16.mxu0 0
        %4386 = vmatmul.mubr.bf16.gmra.mxu0 %v4175
        %v4387 = vpop.f32.mrf.mxu0
        %v4388 = vadd.f32 0.0, %v4387
        %v4389 = vpop.f32.mrf.mxu0
        %v4390 = vpop.f32.mrf.mxu0
        %v4391 = vadd.f32 0.0, %v4390
        %v4392 = vpop.f32.mrf.mxu0
        %4393 = vmatprep.mubr.bf16.mxu0 0
        %4394 = vmatmul.mubr.bf16.gmra.mxu0 %v4178
        %v4395 = vpop.f32.mrf.mxu0
        %v4396 = vadd.f32 0.0, %v4395
        %v4397 = vpop.f32.mrf.mxu0
        %v4398 = vpop.f32.mrf.mxu0
        %v4399 = vadd.f32 0.0, %v4398
        %v4400 = vpop.f32.mrf.mxu0
        %4401 = vmatprep.mubr.bf16.mxu0 0
        %4402 = vmatmul.mubr.bf16.gmra.mxu0 %v4181
        %v4403 = vpop.f32.mrf.mxu0
        %v4404 = vadd.f32 0.0, %v4403
        %v4405 = vpop.f32.mrf.mxu0
        %v4406 = vpop.f32.mrf.mxu0
        %v4407 = vadd.f32 0.0, %v4406
        %v4408 = vpop.f32.mrf.mxu0
        %4409 = vmatprep.mubr.bf16.mxu0 0
        %4410 = vmatmul.mubr.bf16.gmra.mxu0 %v4184
        %v4411 = vpop.f32.mrf.mxu0
        %v4412 = vadd.f32 0.0, %v4411
        %v4413 = vpop.f32.mrf.mxu0
        %v4414 = vpop.f32.mrf.mxu0
        %v4415 = vadd.f32 0.0, %v4414
        %v4416 = vpop.f32.mrf.mxu0
        %4417 = vmatprep.mubr.bf16.mxu0 0
        %4418 = vmatmul.mubr.bf16.gmra.mxu0 %v4187
        %v4419 = vpop.f32.mrf.mxu0
        %v4420 = vadd.f32 0.0, %v4419
        %v4421 = vpop.f32.mrf.mxu0
        %v4422 = vpop.f32.mrf.mxu0
        %v4423 = vadd.f32 0.0, %v4422
        %v4424 = vpop.f32.mrf.mxu0
        %4425 = vmatprep.mubr.bf16.mxu0 0
        %4426 = vmatmul.mubr.bf16.gmra.mxu0 %v4190
        %v4427 = vpop.f32.mrf.mxu0
        %v4428 = vadd.f32 0.0, %v4427
        %v4429 = vpop.f32.mrf.mxu0
        %v4430 = vpop.f32.mrf.mxu0
        %v4431 = vadd.f32 0.0, %v4430
        %v4432 = vpop.f32.mrf.mxu0
        %4433 = vmatprep.mubr.bf16.mxu0 0
        %4434 = vmatmul.mubr.bf16.gmra.mxu0 %v4193
        %v4435 = vpop.f32.mrf.mxu0
        %v4436 = vadd.f32 0.0, %v4435
        %v4437 = vpop.f32.mrf.mxu0
        %v4438 = vpop.f32.mrf.mxu0
        %v4439 = vadd.f32 0.0, %v4438
        %v4440 = vpop.f32.mrf.mxu0
        %4441 = vmatprep.mubr.bf16.mxu0 0
        %4442 = vmatmul.mubr.bf16.gmra.mxu0 %v4196
        %v4443 = vpop.f32.mrf.mxu0
        %v4444 = vadd.f32 0.0, %v4443
        %v4445 = vpop.f32.mrf.mxu0
        %v4446 = vpop.f32.mrf.mxu0
        %v4447 = vadd.f32 0.0, %v4446
        %v4448 = vpop.f32.mrf.mxu0
        %4449 = vmatprep.mubr.bf16.mxu0 0
        %4450 = vmatmul.mubr.bf16.gmra.mxu0 %v4199
        %v4451 = vpop.f32.mrf.mxu0
        %v4452 = vadd.f32 0.0, %v4451
        %v4453 = vpop.f32.mrf.mxu0
        %v4454 = vpop.f32.mrf.mxu0
        %v4455 = vadd.f32 0.0, %v4454
        %v4456 = vpop.f32.mrf.mxu0
        %4457 = vmatprep.mubr.bf16.mxu0 0
        %4458 = vmatmul.mubr.bf16.gmra.mxu0 %v4202
        %v4459 = vpop.f32.mrf.mxu0
        %v4460 = vadd.f32 0.0, %v4459
        %v4461 = vpop.f32.mrf.mxu0
        %v4462 = vpop.f32.mrf.mxu0
        %v4463 = vadd.f32 0.0, %v4462
        %v4464 = vpop.f32.mrf.mxu0
        %4465 = vmatprep.mubr.bf16.mxu0 0
        %4466 = vmatmul.mubr.bf16.gmra.mxu0 %v4205
        %v4467 = vpop.f32.mrf.mxu0
        %v4468 = vadd.f32 0.0, %v4467
        %v4469 = vpop.f32.mrf.mxu0
        %v4470 = vpop.f32.mrf.mxu0
        %v4471 = vadd.f32 0.0, %v4470
        %v4472 = vpop.f32.mrf.mxu0
        %4473 = vmatprep.mubr.bf16.mxu0 0
        %4474 = vmatmul.mubr.bf16.gmra.mxu0 %v4208
        %v4475 = vpop.f32.mrf.mxu0
        %v4476 = vadd.f32 0.0, %v4475
        %v4477 = vpop.f32.mrf.mxu0
        %v4478 = vpop.f32.mrf.mxu0
        %v4479 = vadd.f32 0.0, %v4478
        %v4480 = vpop.f32.mrf.mxu0
        %4481 = vmatprep.mubr.bf16.mxu0 0
        %4482 = vmatmul.mubr.bf16.gmra.mxu0 %v4211
        %v4483 = vpop.f32.mrf.mxu0
        %v4484 = vadd.f32 0.0, %v4483
        %v4485 = vpop.f32.mrf.mxu0
        %v4486 = vpop.f32.mrf.mxu0
        %v4487 = vadd.f32 0.0, %v4486
        %v4488 = vpop.f32.mrf.mxu0
        %4489 = vmatprep.mubr.bf16.mxu0 0
        %4490 = vmatmul.mubr.bf16.gmra.mxu0 %v4214
        %v4491 = vpop.f32.mrf.mxu0
        %v4492 = vadd.f32 0.0, %v4491
        %v4493 = vpop.f32.mrf.mxu0
        %v4494 = vpop.f32.mrf.mxu0
        %v4495 = vadd.f32 0.0, %v4494
        %v4496 = vpop.f32.mrf.mxu0
        %4497 = vmatprep.mubr.bf16.mxu0 0
        %4498 = vmatmul.mubr.bf16.gmra.mxu0 %v4217
        %v4499 = vpop.f32.mrf.mxu0
        %v4500 = vadd.f32 0.0, %v4499
        %v4501 = vpop.f32.mrf.mxu0
        %v4502 = vpop.f32.mrf.mxu0
        %v4503 = vadd.f32 0.0, %v4502
        %v4504 = vpop.f32.mrf.mxu0
        %4505 = vmatprep.mubr.bf16.mxu0 0
        %4506 = vmatmul.mubr.bf16.gmra.mxu0 %v4220
        %v4507 = vpop.f32.mrf.mxu0
        %v4508 = vadd.f32 0.0, %v4507
        %v4509 = vpop.f32.mrf.mxu0
        %v4510 = vpop.f32.mrf.mxu0
        %v4511 = vadd.f32 0.0, %v4510
        %v4512 = vpop.f32.mrf.mxu0
        %4513 = vdwg.mxu0
        %v4514 = vadd.f32 %v3924, %v4260
        %v4515 = vadd.f32 %v3925, %v4263
        %v4516 = vadd.f32 %v3926, %v4268
        %v4517 = vadd.f32 %v3927, %v4271
        %v4518 = vadd.f32 %v3928, %v4276
        %v4519 = vadd.f32 %v3929, %v4279
        %v4520 = vadd.f32 %v3930, %v4284
        %v4521 = vadd.f32 %v3931, %v4287
        %v4522 = vadd.f32 %v3932, %v4292
        %v4523 = vadd.f32 %v3933, %v4295
        %v4524 = vadd.f32 %v3934, %v4300
        %v4525 = vadd.f32 %v3935, %v4303
        %v4526 = vadd.f32 %v3936, %v4308
        %v4527 = vadd.f32 %v3937, %v4311
        %v4528 = vadd.f32 %v3938, %v4316
        %v4529 = vadd.f32 %v3939, %v4319
        %v4530 = vadd.f32 %v3940, %v4324
        %v4531 = vadd.f32 %v3941, %v4327
        %v4532 = vadd.f32 %v3942, %v4332
        %v4533 = vadd.f32 %v3943, %v4335
        %v4534 = vadd.f32 %v3944, %v4340
        %v4535 = vadd.f32 %v3945, %v4343
        %v4536 = vadd.f32 %v3946, %v4348
        %v4537 = vadd.f32 %v3947, %v4351
        %v4538 = vadd.f32 %v3948, %v4356
        %v4539 = vadd.f32 %v3949, %v4359
        %v4540 = vadd.f32 %v3950, %v4364
        %v4541 = vadd.f32 %v3951, %v4367
        %v4542 = vadd.f32 %v3952, %v4372
        %v4543 = vadd.f32 %v3953, %v4375
        %v4544 = vadd.f32 %v3954, %v4380
        %v4545 = vadd.f32 %v3955, %v4383
        %v4546 = vadd.f32 %v3956, %v4388
        %v4547 = vadd.f32 %v3957, %v4391
        %v4548 = vadd.f32 %v3958, %v4396
        %v4549 = vadd.f32 %v3959, %v4399
        %v4550 = vadd.f32 %v3960, %v4404
        %v4551 = vadd.f32 %v3961, %v4407
        %v4552 = vadd.f32 %v3962, %v4412
        %v4553 = vadd.f32 %v3963, %v4415
        %v4554 = vadd.f32 %v3964, %v4420
        %v4555 = vadd.f32 %v3965, %v4423
        %v4556 = vadd.f32 %v3966, %v4428
        %v4557 = vadd.f32 %v3967, %v4431
        %v4558 = vadd.f32 %v3968, %v4436
        %v4559 = vadd.f32 %v3969, %v4439
        %v4560 = vadd.f32 %v3970, %v4444
        %v4561 = vadd.f32 %v3971, %v4447
        %v4562 = vadd.f32 %v3972, %v4452
        %v4563 = vadd.f32 %v3973, %v4455
        %v4564 = vadd.f32 %v3974, %v4460
        %v4565 = vadd.f32 %v3975, %v4463
        %v4566 = vadd.f32 %v3976, %v4468
        %v4567 = vadd.f32 %v3977, %v4471
        %v4568 = vadd.f32 %v3978, %v4476
        %v4569 = vadd.f32 %v3979, %v4479
        %v4570 = vadd.f32 %v3980, %v4484
        %v4571 = vadd.f32 %v3981, %v4487
        %v4572 = vadd.f32 %v3982, %v4492
        %v4573 = vadd.f32 %v3983, %v4495
        %v4574 = vadd.f32 %v3984, %v4500
        %v4575 = vadd.f32 %v3985, %v4503
        %v4576 = vadd.f32 %v3986, %v4508
        %v4577 = vadd.f32 %v3987, %v4511
        %v4578 = vld [vmem:[%s3 + $0x20] sm:$0xf]
        %vm4579 = vcmask 1044480
        %v4580 = vrot.slane %v580, 3
        %v4581 = vrot.slane %v581, 3
        %v4582 = vsel %vm4579, %v4580, %v4581
        %v4583 = vrot.slane %v582, 3
        %v4584 = vsel %vm4579, %v4581, %v4583
        %v4585 = vrot.slane %v583, 3
        %v4586 = vsel %vm4579, %v4583, %v4585
        %v4587 = vrot.slane %v584, 3
        %v4588 = vsel %vm4579, %v4585, %v4587
        %v4589 = vrot.slane %v585, 3
        %v4590 = vsel %vm4579, %v4587, %v4589
        %v4591 = vrot.slane %v586, 3
        %v4592 = vsel %vm4579, %v4589, %v4591
        %v4593 = vrot.slane %v587, 3
        %v4594 = vsel %vm4579, %v4591, %v4593
        %v4595 = vrot.slane %v588, 3
        %v4596 = vsel %vm4579, %v4593, %v4595
        %v4597 = vrot.slane %v589, 3
        %v4598 = vsel %vm4579, %v4595, %v4597
        %v4599 = vrot.slane %v590, 3
        %v4600 = vsel %vm4579, %v4597, %v4599
        %v4601 = vrot.slane %v591, 3
        %v4602 = vsel %vm4579, %v4599, %v4601
        %v4603 = vrot.slane %v592, 3
        %v4604 = vsel %vm4579, %v4601, %v4603
        %v4605 = vrot.slane %v593, 3
        %v4606 = vsel %vm4579, %v4603, %v4605
        %v4607 = vrot.slane %v594, 3
        %v4608 = vsel %vm4579, %v4605, %v4607
        %v4609 = vrot.slane %v595, 3
        %v4610 = vsel %vm4579, %v4607, %v4609
        %v4611 = vrot.slane %v596, 3
        %v4612 = vsel %vm4579, %v4609, %v4611
        %v4613 = vrot.slane %v597, 3
        %v4614 = vsel %vm4579, %v4611, %v4613
        %v4615 = vrot.slane %v598, 3
        %v4616 = vsel %vm4579, %v4613, %v4615
        %v4617 = vrot.slane %v599, 3
        %v4618 = vsel %vm4579, %v4615, %v4617
        %v4619 = vrot.slane %v600, 3
        %v4620 = vsel %vm4579, %v4617, %v4619
        %v4621 = vrot.slane %v601, 3
        %v4622 = vsel %vm4579, %v4619, %v4621
        %v4623 = vrot.slane %v602, 3
        %v4624 = vsel %vm4579, %v4621, %v4623
        %v4625 = vrot.slane %v603, 3
        %v4626 = vsel %vm4579, %v4623, %v4625
        %v4627 = vrot.slane %v604, 3
        %v4628 = vsel %vm4579, %v4625, %v4627
        %v4629 = vrot.slane %v605, 3
        %v4630 = vsel %vm4579, %v4627, %v4629
        %v4631 = vrot.slane %v606, 3
        %v4632 = vsel %vm4579, %v4629, %v4631
        %v4633 = vrot.slane %v607, 3
        %v4634 = vsel %vm4579, %v4631, %v4633
        %v4635 = vrot.slane %v608, 3
        %v4636 = vsel %vm4579, %v4633, %v4635
        %v4637 = vrot.slane %v609, 3
        %v4638 = vsel %vm4579, %v4635, %v4637
        %v4639 = vrot.slane %v622, 3
        %v4640 = vsel %vm4579, %v4637, %v4639
        %v4641 = vrot.slane %v623, 3
        %v4642 = vsel %vm4579, %v4639, %v4641
        %v4643 = vrot.slane %v624, 3
        %v4644 = vsel %vm4579, %v4641, %v4643
        %v4646 = vsel %vm888, %v4582, 0
        %v4649 = vsel %vm888, %v4584, 0
        %v4652 = vsel %vm888, %v4586, 0
        %v4655 = vsel %vm888, %v4588, 0
        %v4658 = vsel %vm888, %v4590, 0
        %v4661 = vsel %vm888, %v4592, 0
        %v4664 = vsel %vm888, %v4594, 0
        %v4667 = vsel %vm888, %v4596, 0
        %v4670 = vsel %vm888, %v4598, 0
        %v4673 = vsel %vm888, %v4600, 0
        %v4676 = vsel %vm888, %v4602, 0
        %v4679 = vsel %vm888, %v4604, 0
        %v4682 = vsel %vm888, %v4606, 0
        %v4685 = vsel %vm888, %v4608, 0
        %v4688 = vsel %vm888, %v4610, 0
        %v4691 = vsel %vm888, %v4612, 0
        %v4694 = vsel %vm888, %v4614, 0
        %v4697 = vsel %vm888, %v4616, 0
        %v4700 = vsel %vm888, %v4618, 0
        %v4703 = vsel %vm888, %v4620, 0
        %v4706 = vsel %vm888, %v4622, 0
        %v4709 = vsel %vm888, %v4624, 0
        %v4712 = vsel %vm888, %v4626, 0
        %v4715 = vsel %vm888, %v4628, 0
        %v4718 = vsel %vm888, %v4630, 0
        %v4721 = vsel %vm888, %v4632, 0
        %v4724 = vsel %vm888, %v4634, 0
        %v4727 = vsel %vm888, %v4636, 0
        %v4730 = vsel %vm888, %v4638, 0
        %v4733 = vsel %vm888, %v4640, 0
        %v4736 = vsel %vm888, %v4642, 0
        %v4739 = vsel %vm888, %v4644, 0
        %v4742 = vsel %vm985, %v4578, 0
        %4744 = vmatprep.subr.bf16.mxu0 0
        %4745 = vmatpush1.bf16.msra.mxu0 0
        %4746 = vmatprep.subr.bf16.mxu0 0
        %4747 = vmatpush1.bf16.msra.mxu0 0
        %4748 = vmatprep.subr.bf16.mxu0 0
        %4749 = vmatpush1.bf16.msra.mxu0 0
        %4750 = vmatprep.subr.bf16.mxu0 0
        %4751 = vmatpush1.bf16.msra.mxu0 0
        %4752 = vmatprep.subr.bf16.mxu0 0
        %4753 = vmatpush1.bf16.msra.mxu0 0
        %4754 = vmatprep.subr.bf16.mxu0 0
        %4755 = vmatpush1.bf16.msra.mxu0 0
        %4756 = vmatprep.subr.bf16.mxu0 0
        %4757 = vmatpush1.bf16.msra.mxu0 0
        %4758 = vmatprep.subr.bf16.mxu0 0
        %4759 = vmatpush1.bf16.msra.mxu0 %v4742
        %4760 = vmatprep.subr.bf16.mxu0 0
        %4761 = vmatpush2.bf16.msra.mxu0 0
        %4762 = vmatprep.subr.bf16.mxu0 0
        %4763 = vmatpush2.bf16.msra.mxu0 0
        %4764 = vmatprep.subr.bf16.mxu0 0
        %4765 = vmatpush2.bf16.msra.mxu0 0
        %4766 = vmatprep.subr.bf16.mxu0 0
        %4767 = vmatpush2.bf16.msra.mxu0 0
        %4768 = vmatprep.subr.bf16.mxu0 0
        %4769 = vmatpush2.bf16.msra.mxu0 0
        %4770 = vmatprep.subr.bf16.mxu0 0
        %4771 = vmatpush2.bf16.msra.mxu0 0
        %4772 = vmatprep.subr.bf16.mxu0 0
        %4773 = vmatpush2.bf16.msra.mxu0 0
        %4774 = vmatprep.subr.bf16.mxu0 0
        %4775 = vmatpush2.bf16.msra.mxu0 0
        %4776 = vmatprep.mubr.bf16.mxu0 0
        %4777 = vmatmul.mubr.bf16.gmra.mxu0 %v4646
        %v4778 = vpop.f32.mrf.mxu0
        %v4779 = vadd.f32 0.0, %v4778
        %v4780 = vpop.f32.mrf.mxu0
        %v4781 = vpop.f32.mrf.mxu0
        %v4782 = vadd.f32 0.0, %v4781
        %v4783 = vpop.f32.mrf.mxu0
        %4784 = vmatprep.mubr.bf16.mxu0 0
        %4785 = vmatmul.mubr.bf16.gmra.mxu0 %v4649
        %v4786 = vpop.f32.mrf.mxu0
        %v4787 = vadd.f32 0.0, %v4786
        %v4788 = vpop.f32.mrf.mxu0
        %v4789 = vpop.f32.mrf.mxu0
        %v4790 = vadd.f32 0.0, %v4789
        %v4791 = vpop.f32.mrf.mxu0
        %4792 = vmatprep.mubr.bf16.mxu0 0
        %4793 = vmatmul.mubr.bf16.gmra.mxu0 %v4652
        %v4794 = vpop.f32.mrf.mxu0
        %v4795 = vadd.f32 0.0, %v4794
        %v4796 = vpop.f32.mrf.mxu0
        %v4797 = vpop.f32.mrf.mxu0
        %v4798 = vadd.f32 0.0, %v4797
        %v4799 = vpop.f32.mrf.mxu0
        %4800 = vmatprep.mubr.bf16.mxu0 0
        %4801 = vmatmul.mubr.bf16.gmra.mxu0 %v4655
        %v4802 = vpop.f32.mrf.mxu0
        %v4803 = vadd.f32 0.0, %v4802
        %v4804 = vpop.f32.mrf.mxu0
        %v4805 = vpop.f32.mrf.mxu0
        %v4806 = vadd.f32 0.0, %v4805
        %v4807 = vpop.f32.mrf.mxu0
        %4808 = vmatprep.mubr.bf16.mxu0 0
        %4809 = vmatmul.mubr.bf16.gmra.mxu0 %v4658
        %v4810 = vpop.f32.mrf.mxu0
        %v4811 = vadd.f32 0.0, %v4810
        %v4812 = vpop.f32.mrf.mxu0
        %v4813 = vpop.f32.mrf.mxu0
        %v4814 = vadd.f32 0.0, %v4813
        %v4815 = vpop.f32.mrf.mxu0
        %4816 = vmatprep.mubr.bf16.mxu0 0
        %4817 = vmatmul.mubr.bf16.gmra.mxu0 %v4661
        %v4818 = vpop.f32.mrf.mxu0
        %v4819 = vadd.f32 0.0, %v4818
        %v4820 = vpop.f32.mrf.mxu0
        %v4821 = vpop.f32.mrf.mxu0
        %v4822 = vadd.f32 0.0, %v4821
        %v4823 = vpop.f32.mrf.mxu0
        %4824 = vmatprep.mubr.bf16.mxu0 0
        %4825 = vmatmul.mubr.bf16.gmra.mxu0 %v4664
        %v4826 = vpop.f32.mrf.mxu0
        %v4827 = vadd.f32 0.0, %v4826
        %v4828 = vpop.f32.mrf.mxu0
        %v4829 = vpop.f32.mrf.mxu0
        %v4830 = vadd.f32 0.0, %v4829
        %v4831 = vpop.f32.mrf.mxu0
        %4832 = vmatprep.mubr.bf16.mxu0 0
        %4833 = vmatmul.mubr.bf16.gmra.mxu0 %v4667
        %v4834 = vpop.f32.mrf.mxu0
        %v4835 = vadd.f32 0.0, %v4834
        %v4836 = vpop.f32.mrf.mxu0
        %v4837 = vpop.f32.mrf.mxu0
        %v4838 = vadd.f32 0.0, %v4837
        %v4839 = vpop.f32.mrf.mxu0
        %4840 = vmatprep.mubr.bf16.mxu0 0
        %4841 = vmatmul.mubr.bf16.gmra.mxu0 %v4670
        %v4842 = vpop.f32.mrf.mxu0
        %v4843 = vadd.f32 0.0, %v4842
        %v4844 = vpop.f32.mrf.mxu0
        %v4845 = vpop.f32.mrf.mxu0
        %v4846 = vadd.f32 0.0, %v4845
        %v4847 = vpop.f32.mrf.mxu0
        %4848 = vmatprep.mubr.bf16.mxu0 0
        %4849 = vmatmul.mubr.bf16.gmra.mxu0 %v4673
        %v4850 = vpop.f32.mrf.mxu0
        %v4851 = vadd.f32 0.0, %v4850
        %v4852 = vpop.f32.mrf.mxu0
        %v4853 = vpop.f32.mrf.mxu0
        %v4854 = vadd.f32 0.0, %v4853
        %v4855 = vpop.f32.mrf.mxu0
        %4856 = vmatprep.mubr.bf16.mxu0 0
        %4857 = vmatmul.mubr.bf16.gmra.mxu0 %v4676
        %v4858 = vpop.f32.mrf.mxu0
        %v4859 = vadd.f32 0.0, %v4858
        %v4860 = vpop.f32.mrf.mxu0
        %v4861 = vpop.f32.mrf.mxu0
        %v4862 = vadd.f32 0.0, %v4861
        %v4863 = vpop.f32.mrf.mxu0
        %4864 = vmatprep.mubr.bf16.mxu0 0
        %4865 = vmatmul.mubr.bf16.gmra.mxu0 %v4679
        %v4866 = vpop.f32.mrf.mxu0
        %v4867 = vadd.f32 0.0, %v4866
        %v4868 = vpop.f32.mrf.mxu0
        %v4869 = vpop.f32.mrf.mxu0
        %v4870 = vadd.f32 0.0, %v4869
        %v4871 = vpop.f32.mrf.mxu0
        %4872 = vmatprep.mubr.bf16.mxu0 0
        %4873 = vmatmul.mubr.bf16.gmra.mxu0 %v4682
        %v4874 = vpop.f32.mrf.mxu0
        %v4875 = vadd.f32 0.0, %v4874
        %v4876 = vpop.f32.mrf.mxu0
        %v4877 = vpop.f32.mrf.mxu0
        %v4878 = vadd.f32 0.0, %v4877
        %v4879 = vpop.f32.mrf.mxu0
        %4880 = vmatprep.mubr.bf16.mxu0 0
        %4881 = vmatmul.mubr.bf16.gmra.mxu0 %v4685
        %v4882 = vpop.f32.mrf.mxu0
        %v4883 = vadd.f32 0.0, %v4882
        %v4884 = vpop.f32.mrf.mxu0
        %v4885 = vpop.f32.mrf.mxu0
        %v4886 = vadd.f32 0.0, %v4885
        %v4887 = vpop.f32.mrf.mxu0
        %4888 = vmatprep.mubr.bf16.mxu0 0
        %4889 = vmatmul.mubr.bf16.gmra.mxu0 %v4688
        %v4890 = vpop.f32.mrf.mxu0
        %v4891 = vadd.f32 0.0, %v4890
        %v4892 = vpop.f32.mrf.mxu0
        %v4893 = vpop.f32.mrf.mxu0
        %v4894 = vadd.f32 0.0, %v4893
        %v4895 = vpop.f32.mrf.mxu0
        %4896 = vmatprep.mubr.bf16.mxu0 0
        %4897 = vmatmul.mubr.bf16.gmra.mxu0 %v4691
        %v4898 = vpop.f32.mrf.mxu0
        %v4899 = vadd.f32 0.0, %v4898
        %v4900 = vpop.f32.mrf.mxu0
        %v4901 = vpop.f32.mrf.mxu0
        %v4902 = vadd.f32 0.0, %v4901
        %v4903 = vpop.f32.mrf.mxu0
        %4904 = vmatprep.mubr.bf16.mxu0 0
        %4905 = vmatmul.mubr.bf16.gmra.mxu0 %v4694
        %v4906 = vpop.f32.mrf.mxu0
        %v4907 = vadd.f32 0.0, %v4906
        %v4908 = vpop.f32.mrf.mxu0
        %v4909 = vpop.f32.mrf.mxu0
        %v4910 = vadd.f32 0.0, %v4909
        %v4911 = vpop.f32.mrf.mxu0
        %4912 = vmatprep.mubr.bf16.mxu0 0
        %4913 = vmatmul.mubr.bf16.gmra.mxu0 %v4697
        %v4914 = vpop.f32.mrf.mxu0
        %v4915 = vadd.f32 0.0, %v4914
        %v4916 = vpop.f32.mrf.mxu0
        %v4917 = vpop.f32.mrf.mxu0
        %v4918 = vadd.f32 0.0, %v4917
        %v4919 = vpop.f32.mrf.mxu0
        %4920 = vmatprep.mubr.bf16.mxu0 0
        %4921 = vmatmul.mubr.bf16.gmra.mxu0 %v4700
        %v4922 = vpop.f32.mrf.mxu0
        %v4923 = vadd.f32 0.0, %v4922
        %v4924 = vpop.f32.mrf.mxu0
        %v4925 = vpop.f32.mrf.mxu0
        %v4926 = vadd.f32 0.0, %v4925
        %v4927 = vpop.f32.mrf.mxu0
        %4928 = vmatprep.mubr.bf16.mxu0 0
        %4929 = vmatmul.mubr.bf16.gmra.mxu0 %v4703
        %v4930 = vpop.f32.mrf.mxu0
        %v4931 = vadd.f32 0.0, %v4930
        %v4932 = vpop.f32.mrf.mxu0
        %v4933 = vpop.f32.mrf.mxu0
        %v4934 = vadd.f32 0.0, %v4933
        %v4935 = vpop.f32.mrf.mxu0
        %4936 = vmatprep.mubr.bf16.mxu0 0
        %4937 = vmatmul.mubr.bf16.gmra.mxu0 %v4706
        %v4938 = vpop.f32.mrf.mxu0
        %v4939 = vadd.f32 0.0, %v4938
        %v4940 = vpop.f32.mrf.mxu0
        %v4941 = vpop.f32.mrf.mxu0
        %v4942 = vadd.f32 0.0, %v4941
        %v4943 = vpop.f32.mrf.mxu0
        %4944 = vmatprep.mubr.bf16.mxu0 0
        %4945 = vmatmul.mubr.bf16.gmra.mxu0 %v4709
        %v4946 = vpop.f32.mrf.mxu0
        %v4947 = vadd.f32 0.0, %v4946
        %v4948 = vpop.f32.mrf.mxu0
        %v4949 = vpop.f32.mrf.mxu0
        %v4950 = vadd.f32 0.0, %v4949
        %v4951 = vpop.f32.mrf.mxu0
        %4952 = vmatprep.mubr.bf16.mxu0 0
        %4953 = vmatmul.mubr.bf16.gmra.mxu0 %v4712
        %v4954 = vpop.f32.mrf.mxu0
        %v4955 = vadd.f32 0.0, %v4954
        %v4956 = vpop.f32.mrf.mxu0
        %v4957 = vpop.f32.mrf.mxu0
        %v4958 = vadd.f32 0.0, %v4957
        %v4959 = vpop.f32.mrf.mxu0
        %4960 = vmatprep.mubr.bf16.mxu0 0
        %4961 = vmatmul.mubr.bf16.gmra.mxu0 %v4715
        %v4962 = vpop.f32.mrf.mxu0
        %v4963 = vadd.f32 0.0, %v4962
        %v4964 = vpop.f32.mrf.mxu0
        %v4965 = vpop.f32.mrf.mxu0
        %v4966 = vadd.f32 0.0, %v4965
        %v4967 = vpop.f32.mrf.mxu0
        %4968 = vmatprep.mubr.bf16.mxu0 0
        %4969 = vmatmul.mubr.bf16.gmra.mxu0 %v4718
        %v4970 = vpop.f32.mrf.mxu0
        %v4971 = vadd.f32 0.0, %v4970
        %v4972 = vpop.f32.mrf.mxu0
        %v4973 = vpop.f32.mrf.mxu0
        %v4974 = vadd.f32 0.0, %v4973
        %v4975 = vpop.f32.mrf.mxu0
        %4976 = vmatprep.mubr.bf16.mxu0 0
        %4977 = vmatmul.mubr.bf16.gmra.mxu0 %v4721
        %v4978 = vpop.f32.mrf.mxu0
        %v4979 = vadd.f32 0.0, %v4978
        %v4980 = vpop.f32.mrf.mxu0
        %v4981 = vpop.f32.mrf.mxu0
        %v4982 = vadd.f32 0.0, %v4981
        %v4983 = vpop.f32.mrf.mxu0
        %4984 = vmatprep.mubr.bf16.mxu0 0
        %4985 = vmatmul.mubr.bf16.gmra.mxu0 %v4724
        %v4986 = vpop.f32.mrf.mxu0
        %v4987 = vadd.f32 0.0, %v4986
        %v4988 = vpop.f32.mrf.mxu0
        %v4989 = vpop.f32.mrf.mxu0
        %v4990 = vadd.f32 0.0, %v4989
        %v4991 = vpop.f32.mrf.mxu0
        %4992 = vmatprep.mubr.bf16.mxu0 0
        %4993 = vmatmul.mubr.bf16.gmra.mxu0 %v4727
        %v4994 = vpop.f32.mrf.mxu0
        %v4995 = vadd.f32 0.0, %v4994
        %v4996 = vpop.f32.mrf.mxu0
        %v4997 = vpop.f32.mrf.mxu0
        %v4998 = vadd.f32 0.0, %v4997
        %v4999 = vpop.f32.mrf.mxu0
        %5000 = vmatprep.mubr.bf16.mxu0 0
        %5001 = vmatmul.mubr.bf16.gmra.mxu0 %v4730
        %v5002 = vpop.f32.mrf.mxu0
        %v5003 = vadd.f32 0.0, %v5002
        %v5004 = vpop.f32.mrf.mxu0
        %v5005 = vpop.f32.mrf.mxu0
        %v5006 = vadd.f32 0.0, %v5005
        %v5007 = vpop.f32.mrf.mxu0
        %5008 = vmatprep.mubr.bf16.mxu0 0
        %5009 = vmatmul.mubr.bf16.gmra.mxu0 %v4733
        %v5010 = vpop.f32.mrf.mxu0
        %v5011 = vadd.f32 0.0, %v5010
        %v5012 = vpop.f32.mrf.mxu0
        %v5013 = vpop.f32.mrf.mxu0
        %v5014 = vadd.f32 0.0, %v5013
        %v5015 = vpop.f32.mrf.mxu0
        %5016 = vmatprep.mubr.bf16.mxu0 0
        %5017 = vmatmul.mubr.bf16.gmra.mxu0 %v4736
        %v5018 = vpop.f32.mrf.mxu0
        %v5019 = vadd.f32 0.0, %v5018
        %v5020 = vpop.f32.mrf.mxu0
        %v5021 = vpop.f32.mrf.mxu0
        %v5022 = vadd.f32 0.0, %v5021
        %v5023 = vpop.f32.mrf.mxu0
        %5024 = vmatprep.mubr.bf16.mxu0 0
        %5025 = vmatmul.mubr.bf16.gmra.mxu0 %v4739
        %v5026 = vpop.f32.mrf.mxu0
        %v5027 = vadd.f32 0.0, %v5026
        %v5028 = vpop.f32.mrf.mxu0
        %v5029 = vpop.f32.mrf.mxu0
        %v5030 = vadd.f32 0.0, %v5029
        %v5031 = vpop.f32.mrf.mxu0
        %5032 = vdwg.mxu0
        %v5033 = vadd.f32 %v4514, %v4779
        %v5034 = vadd.f32 %v4515, %v4782
        %v5035 = vadd.f32 %v4516, %v4787
        %v5036 = vadd.f32 %v4517, %v4790
        %v5037 = vadd.f32 %v4518, %v4795
        %v5038 = vadd.f32 %v4519, %v4798
        %v5039 = vadd.f32 %v4520, %v4803
        %v5040 = vadd.f32 %v4521, %v4806
        %v5041 = vadd.f32 %v4522, %v4811
        %v5042 = vadd.f32 %v4523, %v4814
        %v5043 = vadd.f32 %v4524, %v4819
        %v5044 = vadd.f32 %v4525, %v4822
        %v5045 = vadd.f32 %v4526, %v4827
        %v5046 = vadd.f32 %v4527, %v4830
        %v5047 = vadd.f32 %v4528, %v4835
        %v5048 = vadd.f32 %v4529, %v4838
        %v5049 = vadd.f32 %v4530, %v4843
        %v5050 = vadd.f32 %v4531, %v4846
        %v5051 = vadd.f32 %v4532, %v4851
        %v5052 = vadd.f32 %v4533, %v4854
        %v5053 = vadd.f32 %v4534, %v4859
        %v5054 = vadd.f32 %v4535, %v4862
        %v5055 = vadd.f32 %v4536, %v4867
        %v5056 = vadd.f32 %v4537, %v4870
        %v5057 = vadd.f32 %v4538, %v4875
        %v5058 = vadd.f32 %v4539, %v4878
        %v5059 = vadd.f32 %v4540, %v4883
        %v5060 = vadd.f32 %v4541, %v4886
        %v5061 = vadd.f32 %v4542, %v4891
        %v5062 = vadd.f32 %v4543, %v4894
        %v5063 = vadd.f32 %v4544, %v4899
        %v5064 = vadd.f32 %v4545, %v4902
        %v5065 = vadd.f32 %v4546, %v4907
        %v5066 = vadd.f32 %v4547, %v4910
        %v5067 = vadd.f32 %v4548, %v4915
        %v5068 = vadd.f32 %v4549, %v4918
        %v5069 = vadd.f32 %v4550, %v4923
        %v5070 = vadd.f32 %v4551, %v4926
        %v5071 = vadd.f32 %v4552, %v4931
        %v5072 = vadd.f32 %v4553, %v4934
        %v5073 = vadd.f32 %v4554, %v4939
        %v5074 = vadd.f32 %v4555, %v4942
        %v5075 = vadd.f32 %v4556, %v4947
        %v5076 = vadd.f32 %v4557, %v4950
        %v5077 = vadd.f32 %v4558, %v4955
        %v5078 = vadd.f32 %v4559, %v4958
        %v5079 = vadd.f32 %v4560, %v4963
        %v5080 = vadd.f32 %v4561, %v4966
        %v5081 = vadd.f32 %v4562, %v4971
        %v5082 = vadd.f32 %v4563, %v4974
        %v5083 = vadd.f32 %v4564, %v4979
        %v5084 = vadd.f32 %v4565, %v4982
        %v5085 = vadd.f32 %v4566, %v4987
        %v5086 = vadd.f32 %v4567, %v4990
        %v5087 = vadd.f32 %v4568, %v4995
        %v5088 = vadd.f32 %v4569, %v4998
        %v5089 = vadd.f32 %v4570, %v5003
        %v5090 = vadd.f32 %v4571, %v5006
        %v5091 = vadd.f32 %v4572, %v5011
        %v5092 = vadd.f32 %v4573, %v5014
        %v5093 = vadd.f32 %v4574, %v5019
        %v5094 = vadd.f32 %v4575, %v5022
        %v5095 = vadd.f32 %v4576, %v5027
        %v5096 = vadd.f32 %v4577, %v5030
        %5098 = vset.pattern.permute.xlu0 0
        %5099 = vperm.xlu0 %5098, %v316
        %v5100 = vpop.permute.xlu0 %5099
        %5103 = vset.pattern.permute.xlu0 0
        %5104 = vperm.xlu0 %5103, %v317
        %v5105 = vpop.permute.xlu0 %5104
        %5108 = vset.pattern.permute.xlu0 0
        %5109 = vperm.xlu0 %5108, %v318
        %v5110 = vpop.permute.xlu0 %5109
        %5113 = vset.pattern.permute.xlu0 0
        %5114 = vperm.xlu0 %5113, %v319
        %v5115 = vpop.permute.xlu0 %5114
        %5118 = vset.pattern.permute.xlu0 0
        %5119 = vperm.xlu0 %5118, %v320
        %v5120 = vpop.permute.xlu0 %5119
        %5123 = vset.pattern.permute.xlu0 0
        %5124 = vperm.xlu0 %5123, %v321
        %v5125 = vpop.permute.xlu0 %5124
        %5128 = vset.pattern.permute.xlu0 0
        %5129 = vperm.xlu0 %5128, %v322
        %v5130 = vpop.permute.xlu0 %5129
        %5133 = vset.pattern.permute.xlu0 0
        %5134 = vperm.xlu0 %5133, %v323
        %v5135 = vpop.permute.xlu0 %5134
        %5138 = vset.pattern.permute.xlu0 0
        %5139 = vperm.xlu0 %5138, %v324
        %v5140 = vpop.permute.xlu0 %5139
        %5143 = vset.pattern.permute.xlu0 0
        %5144 = vperm.xlu0 %5143, %v325
        %v5145 = vpop.permute.xlu0 %5144
        %5148 = vset.pattern.permute.xlu0 0
        %5149 = vperm.xlu0 %5148, %v326
        %v5150 = vpop.permute.xlu0 %5149
        %5153 = vset.pattern.permute.xlu0 0
        %5154 = vperm.xlu0 %5153, %v327
        %v5155 = vpop.permute.xlu0 %5154
        %5158 = vset.pattern.permute.xlu0 0
        %5159 = vperm.xlu0 %5158, %v328
        %v5160 = vpop.permute.xlu0 %5159
        %5163 = vset.pattern.permute.xlu0 0
        %5164 = vperm.xlu0 %5163, %v329
        %v5165 = vpop.permute.xlu0 %5164
        %5168 = vset.pattern.permute.xlu0 0
        %5169 = vperm.xlu0 %5168, %v330
        %v5170 = vpop.permute.xlu0 %5169
        %5173 = vset.pattern.permute.xlu0 0
        %5174 = vperm.xlu0 %5173, %v331
        %v5175 = vpop.permute.xlu0 %5174
        %5178 = vset.pattern.permute.xlu0 0
        %5179 = vperm.xlu0 %5178, %v332
        %v5180 = vpop.permute.xlu0 %5179
        %5183 = vset.pattern.permute.xlu0 0
        %5184 = vperm.xlu0 %5183, %v333
        %v5185 = vpop.permute.xlu0 %5184
        %5188 = vset.pattern.permute.xlu0 0
        %5189 = vperm.xlu0 %5188, %v334
        %v5190 = vpop.permute.xlu0 %5189
        %5193 = vset.pattern.permute.xlu0 0
        %5194 = vperm.xlu0 %5193, %v335
        %v5195 = vpop.permute.xlu0 %5194
        %5198 = vset.pattern.permute.xlu0 0
        %5199 = vperm.xlu0 %5198, %v336
        %v5200 = vpop.permute.xlu0 %5199
        %5203 = vset.pattern.permute.xlu0 0
        %5204 = vperm.xlu0 %5203, %v337
        %v5205 = vpop.permute.xlu0 %5204
        %5208 = vset.pattern.permute.xlu0 0
        %5209 = vperm.xlu0 %5208, %v338
        %v5210 = vpop.permute.xlu0 %5209
        %5213 = vset.pattern.permute.xlu0 0
        %5214 = vperm.xlu0 %5213, %v339
        %v5215 = vpop.permute.xlu0 %5214
        %5218 = vset.pattern.permute.xlu0 0
        %5219 = vperm.xlu0 %5218, %v340
        %v5220 = vpop.permute.xlu0 %5219
        %5223 = vset.pattern.permute.xlu0 0
        %5224 = vperm.xlu0 %5223, %v341
        %v5225 = vpop.permute.xlu0 %5224
        %5228 = vset.pattern.permute.xlu0 0
        %5229 = vperm.xlu0 %5228, %v342
        %v5230 = vpop.permute.xlu0 %5229
        %5233 = vset.pattern.permute.xlu0 0
        %5234 = vperm.xlu0 %5233, %v343
        %v5235 = vpop.permute.xlu0 %5234
        %5238 = vset.pattern.permute.xlu0 0
        %5239 = vperm.xlu0 %5238, %v344
        %v5240 = vpop.permute.xlu0 %5239
        %5243 = vset.pattern.permute.xlu0 0
        %5244 = vperm.xlu0 %5243, %v345
        %v5245 = vpop.permute.xlu0 %5244
        %5248 = vset.pattern.permute.xlu0 0
        %5249 = vperm.xlu0 %5248, %v346
        %v5250 = vpop.permute.xlu0 %5249
        %5253 = vset.pattern.permute.xlu0 0
        %5254 = vperm.xlu0 %5253, %v347
        %v5255 = vpop.permute.xlu0 %5254
        %5258 = vset.pattern.permute.xlu0 0
        %5259 = vperm.xlu0 %5258, %v348
        %v5260 = vpop.permute.xlu0 %5259
        %5263 = vset.pattern.permute.xlu0 0
        %5264 = vperm.xlu0 %5263, %v349
        %v5265 = vpop.permute.xlu0 %5264
        %5268 = vset.pattern.permute.xlu0 0
        %5269 = vperm.xlu0 %5268, %v350
        %v5270 = vpop.permute.xlu0 %5269
        %5273 = vset.pattern.permute.xlu0 0
        %5274 = vperm.xlu0 %5273, %v351
        %v5275 = vpop.permute.xlu0 %5274
        %5278 = vset.pattern.permute.xlu0 0
        %5279 = vperm.xlu0 %5278, %v352
        %v5280 = vpop.permute.xlu0 %5279
        %5283 = vset.pattern.permute.xlu0 0
        %5284 = vperm.xlu0 %5283, %v353
        %v5285 = vpop.permute.xlu0 %5284
        %5288 = vset.pattern.permute.xlu0 0
        %5289 = vperm.xlu0 %5288, %v354
        %v5290 = vpop.permute.xlu0 %5289
        %5293 = vset.pattern.permute.xlu0 0
        %5294 = vperm.xlu0 %5293, %v355
        %v5295 = vpop.permute.xlu0 %5294
        %5298 = vset.pattern.permute.xlu0 0
        %5299 = vperm.xlu0 %5298, %v356
        %v5300 = vpop.permute.xlu0 %5299
        %5303 = vset.pattern.permute.xlu0 0
        %5304 = vperm.xlu0 %5303, %v357
        %v5305 = vpop.permute.xlu0 %5304
        %5308 = vset.pattern.permute.xlu0 0
        %5309 = vperm.xlu0 %5308, %v358
        %v5310 = vpop.permute.xlu0 %5309
        %5313 = vset.pattern.permute.xlu0 0
        %5314 = vperm.xlu0 %5313, %v359
        %v5315 = vpop.permute.xlu0 %5314
        %5318 = vset.pattern.permute.xlu0 0
        %5319 = vperm.xlu0 %5318, %v360
        %v5320 = vpop.permute.xlu0 %5319
        %5323 = vset.pattern.permute.xlu0 0
        %5324 = vperm.xlu0 %5323, %v361
        %v5325 = vpop.permute.xlu0 %5324
        %5328 = vset.pattern.permute.xlu0 0
        %5329 = vperm.xlu0 %5328, %v362
        %v5330 = vpop.permute.xlu0 %5329
        %5333 = vset.pattern.permute.xlu0 0
        %5334 = vperm.xlu0 %5333, %v363
        %v5335 = vpop.permute.xlu0 %5334
        %5338 = vset.pattern.permute.xlu0 0
        %5339 = vperm.xlu0 %5338, %v364
        %v5340 = vpop.permute.xlu0 %5339
        %5343 = vset.pattern.permute.xlu0 0
        %5344 = vperm.xlu0 %5343, %v365
        %v5345 = vpop.permute.xlu0 %5344
        %5348 = vset.pattern.permute.xlu0 0
        %5349 = vperm.xlu0 %5348, %v366
        %v5350 = vpop.permute.xlu0 %5349
        %5353 = vset.pattern.permute.xlu0 0
        %5354 = vperm.xlu0 %5353, %v367
        %v5355 = vpop.permute.xlu0 %5354
        %5358 = vset.pattern.permute.xlu0 0
        %5359 = vperm.xlu0 %5358, %v368
        %v5360 = vpop.permute.xlu0 %5359
        %5363 = vset.pattern.permute.xlu0 0
        %5364 = vperm.xlu0 %5363, %v369
        %v5365 = vpop.permute.xlu0 %5364
        %5368 = vset.pattern.permute.xlu0 0
        %5369 = vperm.xlu0 %5368, %v370
        %v5370 = vpop.permute.xlu0 %5369
        %5373 = vset.pattern.permute.xlu0 0
        %5374 = vperm.xlu0 %5373, %v371
        %v5375 = vpop.permute.xlu0 %5374
        %5378 = vset.pattern.permute.xlu0 0
        %5379 = vperm.xlu0 %5378, %v372
        %v5380 = vpop.permute.xlu0 %5379
        %5383 = vset.pattern.permute.xlu0 0
        %5384 = vperm.xlu0 %5383, %v373
        %v5385 = vpop.permute.xlu0 %5384
        %5388 = vset.pattern.permute.xlu0 0
        %5389 = vperm.xlu0 %5388, %v374
        %v5390 = vpop.permute.xlu0 %5389
        %5393 = vset.pattern.permute.xlu0 0
        %5394 = vperm.xlu0 %5393, %v375
        %v5395 = vpop.permute.xlu0 %5394
        %5398 = vset.pattern.permute.xlu0 0
        %5399 = vperm.xlu0 %5398, %v376
        %v5400 = vpop.permute.xlu0 %5399
        %5403 = vset.pattern.permute.xlu0 0
        %5404 = vperm.xlu0 %5403, %v377
        %v5405 = vpop.permute.xlu0 %5404
        %5408 = vset.pattern.permute.xlu0 0
        %5409 = vperm.xlu0 %5408, %v378
        %v5410 = vpop.permute.xlu0 %5409
        %5413 = vset.pattern.permute.xlu0 0
        %5414 = vperm.xlu0 %5413, %v379
        %v5415 = vpop.permute.xlu0 %5414
        %v5417 = vmul.f32 %v5033, %v5100
        %v5418 = vmul.f32 %v5034, %v5105
        %v5419 = vmul.f32 %v5035, %v5110
        %v5420 = vmul.f32 %v5036, %v5115
        %v5421 = vmul.f32 %v5037, %v5120
        %v5422 = vmul.f32 %v5038, %v5125
        %v5423 = vmul.f32 %v5039, %v5130
        %v5424 = vmul.f32 %v5040, %v5135
        %v5425 = vmul.f32 %v5041, %v5140
        %v5426 = vmul.f32 %v5042, %v5145
        %v5427 = vmul.f32 %v5043, %v5150
        %v5428 = vmul.f32 %v5044, %v5155
        %v5429 = vmul.f32 %v5045, %v5160
        %v5430 = vmul.f32 %v5046, %v5165
        %v5431 = vmul.f32 %v5047, %v5170
        %v5432 = vmul.f32 %v5048, %v5175
        %v5433 = vmul.f32 %v5049, %v5180
        %v5434 = vmul.f32 %v5050, %v5185
        %v5435 = vmul.f32 %v5051, %v5190
        %v5436 = vmul.f32 %v5052, %v5195
        %v5437 = vmul.f32 %v5053, %v5200
        %v5438 = vmul.f32 %v5054, %v5205
        %v5439 = vmul.f32 %v5055, %v5210
        %v5440 = vmul.f32 %v5056, %v5215
        %v5441 = vmul.f32 %v5057, %v5220
        %v5442 = vmul.f32 %v5058, %v5225
        %v5443 = vmul.f32 %v5059, %v5230
        %v5444 = vmul.f32 %v5060, %v5235
        %v5445 = vmul.f32 %v5061, %v5240
        %v5446 = vmul.f32 %v5062, %v5245
        %v5447 = vmul.f32 %v5063, %v5250
        %v5448 = vmul.f32 %v5064, %v5255
        %v5449 = vmul.f32 %v5065, %v5260
        %v5450 = vmul.f32 %v5066, %v5265
        %v5451 = vmul.f32 %v5067, %v5270
        %v5452 = vmul.f32 %v5068, %v5275
        %v5453 = vmul.f32 %v5069, %v5280
        %v5454 = vmul.f32 %v5070, %v5285
        %v5455 = vmul.f32 %v5071, %v5290
        %v5456 = vmul.f32 %v5072, %v5295
        %v5457 = vmul.f32 %v5073, %v5300
        %v5458 = vmul.f32 %v5074, %v5305
        %v5459 = vmul.f32 %v5075, %v5310
        %v5460 = vmul.f32 %v5076, %v5315
        %v5461 = vmul.f32 %v5077, %v5320
        %v5462 = vmul.f32 %v5078, %v5325
        %v5463 = vmul.f32 %v5079, %v5330
        %v5464 = vmul.f32 %v5080, %v5335
        %v5465 = vmul.f32 %v5081, %v5340
        %v5466 = vmul.f32 %v5082, %v5345
        %v5467 = vmul.f32 %v5083, %v5350
        %v5468 = vmul.f32 %v5084, %v5355
        %v5469 = vmul.f32 %v5085, %v5360
        %v5470 = vmul.f32 %v5086, %v5365
        %v5471 = vmul.f32 %v5087, %v5370
        %v5472 = vmul.f32 %v5088, %v5375
        %v5473 = vmul.f32 %v5089, %v5380
        %v5474 = vmul.f32 %v5090, %v5385
        %v5475 = vmul.f32 %v5091, %v5390
        %v5476 = vmul.f32 %v5092, %v5395
        %v5477 = vmul.f32 %v5093, %v5400
        %v5478 = vmul.f32 %v5094, %v5405
        %v5479 = vmul.f32 %v5095, %v5410
        %v5480 = vmul.f32 %v5096, %v5415
        %v5481 = vadd.f32 %v5417, %v5418
        %v5482 = vadd.f32 %v5481, %v5419
        %v5483 = vadd.f32 %v5482, %v5420
        %v5484 = vadd.f32 %v5483, %v5421
        %v5485 = vadd.f32 %v5484, %v5422
        %v5486 = vadd.f32 %v5485, %v5423
        %v5487 = vadd.f32 %v5486, %v5424
        %v5488 = vadd.f32 %v5487, %v5425
        %v5489 = vadd.f32 %v5488, %v5426
        %v5490 = vadd.f32 %v5489, %v5427
        %v5491 = vadd.f32 %v5490, %v5428
        %v5492 = vadd.f32 %v5491, %v5429
        %v5493 = vadd.f32 %v5492, %v5430
        %v5494 = vadd.f32 %v5493, %v5431
        %v5495 = vadd.f32 %v5494, %v5432
        %v5496 = vadd.f32 %v5495, %v5433
        %v5497 = vadd.f32 %v5496, %v5434
        %v5498 = vadd.f32 %v5497, %v5435
        %v5499 = vadd.f32 %v5498, %v5436
        %v5500 = vadd.f32 %v5499, %v5437
        %v5501 = vadd.f32 %v5500, %v5438
        %v5502 = vadd.f32 %v5501, %v5439
        %v5503 = vadd.f32 %v5502, %v5440
        %v5504 = vadd.f32 %v5503, %v5441
        %v5505 = vadd.f32 %v5504, %v5442
        %v5506 = vadd.f32 %v5505, %v5443
        %v5507 = vadd.f32 %v5506, %v5444
        %v5508 = vadd.f32 %v5507, %v5445
        %v5509 = vadd.f32 %v5508, %v5446
        %v5510 = vadd.f32 %v5509, %v5447
        %v5511 = vadd.f32 %v5510, %v5448
        %v5512 = vadd.f32 %v5511, %v5449
        %v5513 = vadd.f32 %v5512, %v5450
        %v5514 = vadd.f32 %v5513, %v5451
        %v5515 = vadd.f32 %v5514, %v5452
        %v5516 = vadd.f32 %v5515, %v5453
        %v5517 = vadd.f32 %v5516, %v5454
        %v5518 = vadd.f32 %v5517, %v5455
        %v5519 = vadd.f32 %v5518, %v5456
        %v5520 = vadd.f32 %v5519, %v5457
        %v5521 = vadd.f32 %v5520, %v5458
        %v5522 = vadd.f32 %v5521, %v5459
        %v5523 = vadd.f32 %v5522, %v5460
        %v5524 = vadd.f32 %v5523, %v5461
        %v5525 = vadd.f32 %v5524, %v5462
        %v5526 = vadd.f32 %v5525, %v5463
        %v5527 = vadd.f32 %v5526, %v5464
        %v5528 = vadd.f32 %v5527, %v5465
        %v5529 = vadd.f32 %v5528, %v5466
        %v5530 = vadd.f32 %v5529, %v5467
        %v5531 = vadd.f32 %v5530, %v5468
        %v5532 = vadd.f32 %v5531, %v5469
        %v5533 = vadd.f32 %v5532, %v5470
        %v5534 = vadd.f32 %v5533, %v5471
        %v5535 = vadd.f32 %v5534, %v5472
        %v5536 = vadd.f32 %v5535, %v5473
        %v5537 = vadd.f32 %v5536, %v5474
        %v5538 = vadd.f32 %v5537, %v5475
        %v5539 = vadd.f32 %v5538, %v5476
        %v5540 = vadd.f32 %v5539, %v5477
        %v5541 = vadd.f32 %v5540, %v5478
        %v5542 = vadd.f32 %v5541, %v5479
        %v5543 = vadd.f32 %v5542, %v5480
        %v5544 = vrot.slane %v5543, 4
        %v5545 = vadd.f32 %v5543, %v5544
        %v5546 = vrot.slane %v5545, 2
        %v5547 = vadd.f32 %v5545, %v5546
        %v5548 = vrot.slane %v5547, 1
        %v5549 = vadd.f32 %v5547, %v5548
        %v5550 = vmul.f32 %v5033, %v5033
        %v5551 = vmul.f32 %v5034, %v5034
        %v5552 = vmul.f32 %v5035, %v5035
        %v5553 = vmul.f32 %v5036, %v5036
        %v5554 = vmul.f32 %v5037, %v5037
        %v5555 = vmul.f32 %v5038, %v5038
        %v5556 = vmul.f32 %v5039, %v5039
        %v5557 = vmul.f32 %v5040, %v5040
        %v5558 = vmul.f32 %v5041, %v5041
        %v5559 = vmul.f32 %v5042, %v5042
        %v5560 = vmul.f32 %v5043, %v5043
        %v5561 = vmul.f32 %v5044, %v5044
        %v5562 = vmul.f32 %v5045, %v5045
        %v5563 = vmul.f32 %v5046, %v5046
        %v5564 = vmul.f32 %v5047, %v5047
        %v5565 = vmul.f32 %v5048, %v5048
        %v5566 = vmul.f32 %v5049, %v5049
        %v5567 = vmul.f32 %v5050, %v5050
        %v5568 = vmul.f32 %v5051, %v5051
        %v5569 = vmul.f32 %v5052, %v5052
        %v5570 = vmul.f32 %v5053, %v5053
        %v5571 = vmul.f32 %v5054, %v5054
        %v5572 = vmul.f32 %v5055, %v5055
        %v5573 = vmul.f32 %v5056, %v5056
        %v5574 = vmul.f32 %v5057, %v5057
        %v5575 = vmul.f32 %v5058, %v5058
        %v5576 = vmul.f32 %v5059, %v5059
        %v5577 = vmul.f32 %v5060, %v5060
        %v5578 = vmul.f32 %v5061, %v5061
        %v5579 = vmul.f32 %v5062, %v5062
        %v5580 = vmul.f32 %v5063, %v5063
        %v5581 = vmul.f32 %v5064, %v5064
        %v5582 = vmul.f32 %v5065, %v5065
        %v5583 = vmul.f32 %v5066, %v5066
        %v5584 = vmul.f32 %v5067, %v5067
        %v5585 = vmul.f32 %v5068, %v5068
        %v5586 = vmul.f32 %v5069, %v5069
        %v5587 = vmul.f32 %v5070, %v5070
        %v5588 = vmul.f32 %v5071, %v5071
        %v5589 = vmul.f32 %v5072, %v5072
        %v5590 = vmul.f32 %v5073, %v5073
        %v5591 = vmul.f32 %v5074, %v5074
        %v5592 = vmul.f32 %v5075, %v5075
        %v5593 = vmul.f32 %v5076, %v5076
        %v5594 = vmul.f32 %v5077, %v5077
        %v5595 = vmul.f32 %v5078, %v5078
        %v5596 = vmul.f32 %v5079, %v5079
        %v5597 = vmul.f32 %v5080, %v5080
        %v5598 = vmul.f32 %v5081, %v5081
        %v5599 = vmul.f32 %v5082, %v5082
        %v5600 = vmul.f32 %v5083, %v5083
        %v5601 = vmul.f32 %v5084, %v5084
        %v5602 = vmul.f32 %v5085, %v5085
        %v5603 = vmul.f32 %v5086, %v5086
        %v5604 = vmul.f32 %v5087, %v5087
        %v5605 = vmul.f32 %v5088, %v5088
        %v5606 = vmul.f32 %v5089, %v5089
        %v5607 = vmul.f32 %v5090, %v5090
        %v5608 = vmul.f32 %v5091, %v5091
        %v5609 = vmul.f32 %v5092, %v5092
        %v5610 = vmul.f32 %v5093, %v5093
        %v5611 = vmul.f32 %v5094, %v5094
        %v5612 = vmul.f32 %v5095, %v5095
        %v5613 = vmul.f32 %v5096, %v5096
        %v5614 = vmul.f32 %v5550, %v5100
        %v5615 = vmul.f32 %v5551, %v5105
        %v5616 = vmul.f32 %v5552, %v5110
        %v5617 = vmul.f32 %v5553, %v5115
        %v5618 = vmul.f32 %v5554, %v5120
        %v5619 = vmul.f32 %v5555, %v5125
        %v5620 = vmul.f32 %v5556, %v5130
        %v5621 = vmul.f32 %v5557, %v5135
        %v5622 = vmul.f32 %v5558, %v5140
        %v5623 = vmul.f32 %v5559, %v5145
        %v5624 = vmul.f32 %v5560, %v5150
        %v5625 = vmul.f32 %v5561, %v5155
        %v5626 = vmul.f32 %v5562, %v5160
        %v5627 = vmul.f32 %v5563, %v5165
        %v5628 = vmul.f32 %v5564, %v5170
        %v5629 = vmul.f32 %v5565, %v5175
        %v5630 = vmul.f32 %v5566, %v5180
        %v5631 = vmul.f32 %v5567, %v5185
        %v5632 = vmul.f32 %v5568, %v5190
        %v5633 = vmul.f32 %v5569, %v5195
        %v5634 = vmul.f32 %v5570, %v5200
        %v5635 = vmul.f32 %v5571, %v5205
        %v5636 = vmul.f32 %v5572, %v5210
        %v5637 = vmul.f32 %v5573, %v5215
        %v5638 = vmul.f32 %v5574, %v5220
        %v5639 = vmul.f32 %v5575, %v5225
        %v5640 = vmul.f32 %v5576, %v5230
        %v5641 = vmul.f32 %v5577, %v5235
        %v5642 = vmul.f32 %v5578, %v5240
        %v5643 = vmul.f32 %v5579, %v5245
        %v5644 = vmul.f32 %v5580, %v5250
        %v5645 = vmul.f32 %v5581, %v5255
        %v5646 = vmul.f32 %v5582, %v5260
        %v5647 = vmul.f32 %v5583, %v5265
        %v5648 = vmul.f32 %v5584, %v5270
        %v5649 = vmul.f32 %v5585, %v5275
        %v5650 = vmul.f32 %v5586, %v5280
        %v5651 = vmul.f32 %v5587, %v5285
        %v5652 = vmul.f32 %v5588, %v5290
        %v5653 = vmul.f32 %v5589, %v5295
        %v5654 = vmul.f32 %v5590, %v5300
        %v5655 = vmul.f32 %v5591, %v5305
        %v5656 = vmul.f32 %v5592, %v5310
        %v5657 = vmul.f32 %v5593, %v5315
        %v5658 = vmul.f32 %v5594, %v5320
        %v5659 = vmul.f32 %v5595, %v5325
        %v5660 = vmul.f32 %v5596, %v5330
        %v5661 = vmul.f32 %v5597, %v5335
        %v5662 = vmul.f32 %v5598, %v5340
        %v5663 = vmul.f32 %v5599, %v5345
        %v5664 = vmul.f32 %v5600, %v5350
        %v5665 = vmul.f32 %v5601, %v5355
        %v5666 = vmul.f32 %v5602, %v5360
        %v5667 = vmul.f32 %v5603, %v5365
        %v5668 = vmul.f32 %v5604, %v5370
        %v5669 = vmul.f32 %v5605, %v5375
        %v5670 = vmul.f32 %v5606, %v5380
        %v5671 = vmul.f32 %v5607, %v5385
        %v5672 = vmul.f32 %v5608, %v5390
        %v5673 = vmul.f32 %v5609, %v5395
        %v5674 = vmul.f32 %v5610, %v5400
        %v5675 = vmul.f32 %v5611, %v5405
        %v5676 = vmul.f32 %v5612, %v5410
        %v5677 = vmul.f32 %v5613, %v5415
        %v5678 = vadd.f32 %v5614, %v5615
        %v5679 = vadd.f32 %v5678, %v5616
        %v5680 = vadd.f32 %v5679, %v5617
        %v5681 = vadd.f32 %v5680, %v5618
        %v5682 = vadd.f32 %v5681, %v5619
        %v5683 = vadd.f32 %v5682, %v5620
        %v5684 = vadd.f32 %v5683, %v5621
        %v5685 = vadd.f32 %v5684, %v5622
        %v5686 = vadd.f32 %v5685, %v5623
        %v5687 = vadd.f32 %v5686, %v5624
        %v5688 = vadd.f32 %v5687, %v5625
        %v5689 = vadd.f32 %v5688, %v5626
        %v5690 = vadd.f32 %v5689, %v5627
        %v5691 = vadd.f32 %v5690, %v5628
        %v5692 = vadd.f32 %v5691, %v5629
        %v5693 = vadd.f32 %v5692, %v5630
        %v5694 = vadd.f32 %v5693, %v5631
        %v5695 = vadd.f32 %v5694, %v5632
        %v5696 = vadd.f32 %v5695, %v5633
        %v5697 = vadd.f32 %v5696, %v5634
        %v5698 = vadd.f32 %v5697, %v5635
        %v5699 = vadd.f32 %v5698, %v5636
        %v5700 = vadd.f32 %v5699, %v5637
        %v5701 = vadd.f32 %v5700, %v5638
        %v5702 = vadd.f32 %v5701, %v5639
        %v5703 = vadd.f32 %v5702, %v5640
        %v5704 = vadd.f32 %v5703, %v5641
        %v5705 = vadd.f32 %v5704, %v5642
        %v5706 = vadd.f32 %v5705, %v5643
        %v5707 = vadd.f32 %v5706, %v5644
        %v5708 = vadd.f32 %v5707, %v5645
        %v5709 = vadd.f32 %v5708, %v5646
        %v5710 = vadd.f32 %v5709, %v5647
        %v5711 = vadd.f32 %v5710, %v5648
        %v5712 = vadd.f32 %v5711, %v5649
        %v5713 = vadd.f32 %v5712, %v5650
        %v5714 = vadd.f32 %v5713, %v5651
        %v5715 = vadd.f32 %v5714, %v5652
        %v5716 = vadd.f32 %v5715, %v5653
        %v5717 = vadd.f32 %v5716, %v5654
        %v5718 = vadd.f32 %v5717, %v5655
        %v5719 = vadd.f32 %v5718, %v5656
        %v5720 = vadd.f32 %v5719, %v5657
        %v5721 = vadd.f32 %v5720, %v5658
        %v5722 = vadd.f32 %v5721, %v5659
        %v5723 = vadd.f32 %v5722, %v5660
        %v5724 = vadd.f32 %v5723, %v5661
        %v5725 = vadd.f32 %v5724, %v5662
        %v5726 = vadd.f32 %v5725, %v5663
        %v5727 = vadd.f32 %v5726, %v5664
        %v5728 = vadd.f32 %v5727, %v5665
        %v5729 = vadd.f32 %v5728, %v5666
        %v5730 = vadd.f32 %v5729, %v5667
        %v5731 = vadd.f32 %v5730, %v5668
        %v5732 = vadd.f32 %v5731, %v5669
        %v5733 = vadd.f32 %v5732, %v5670
        %v5734 = vadd.f32 %v5733, %v5671
        %v5735 = vadd.f32 %v5734, %v5672
        %v5736 = vadd.f32 %v5735, %v5673
        %v5737 = vadd.f32 %v5736, %v5674
        %v5738 = vadd.f32 %v5737, %v5675
        %v5739 = vadd.f32 %v5738, %v5676
        %v5740 = vadd.f32 %v5739, %v5677
        %v5741 = vrot.slane %v5740, 4
        %v5742 = vadd.f32 %v5740, %v5741
        %v5743 = vrot.slane %v5742, 2
        %v5744 = vadd.f32 %v5742, %v5743
        %v5745 = vrot.slane %v5744, 1
        %v5746 = vadd.f32 %v5744, %v5745
        %vm5747 = vcmask 1040384
        %v5748 = vsel %vm5747, %v5549, %v5746
        %5749 = vst [vmem:[%s283] sm:$0x3] %v5748
        %v5750 = vpack.c.bf16 %v5034, %v5033
        %v5751 = vpack.c.bf16 %v5036, %v5035
        %v5752 = vpack.c.bf16 %v5038, %v5037
        %v5753 = vpack.c.bf16 %v5040, %v5039
        %v5754 = vpack.c.bf16 %v5042, %v5041
        %v5755 = vpack.c.bf16 %v5044, %v5043
        %v5756 = vpack.c.bf16 %v5046, %v5045
        %v5757 = vpack.c.bf16 %v5048, %v5047
        %v5758 = vpack.c.bf16 %v5050, %v5049
        %v5759 = vpack.c.bf16 %v5052, %v5051
        %v5760 = vpack.c.bf16 %v5054, %v5053
        %v5761 = vpack.c.bf16 %v5056, %v5055
        %v5762 = vpack.c.bf16 %v5058, %v5057
        %v5763 = vpack.c.bf16 %v5060, %v5059
        %v5764 = vpack.c.bf16 %v5062, %v5061
        %v5765 = vpack.c.bf16 %v5064, %v5063
        %v5766 = vpack.c.bf16 %v5066, %v5065
        %v5767 = vpack.c.bf16 %v5068, %v5067
        %v5768 = vpack.c.bf16 %v5070, %v5069
        %v5769 = vpack.c.bf16 %v5072, %v5071
        %v5770 = vpack.c.bf16 %v5074, %v5073
        %v5771 = vpack.c.bf16 %v5076, %v5075
        %v5772 = vpack.c.bf16 %v5078, %v5077
        %v5773 = vpack.c.bf16 %v5080, %v5079
        %v5774 = vpack.c.bf16 %v5082, %v5081
        %v5775 = vpack.c.bf16 %v5084, %v5083
        %v5776 = vpack.c.bf16 %v5086, %v5085
        %v5777 = vpack.c.bf16 %v5088, %v5087
        %v5778 = vpack.c.bf16 %v5090, %v5089
        %v5779 = vpack.c.bf16 %v5092, %v5091
        %v5780 = vpack.c.bf16 %v5094, %v5093
        %v5781 = vpack.c.bf16 %v5096, %v5095
        %v5814 = vunpack.c.l.b16 %v5750
        %v5815 = vunpack.c.h.b16 %v5750
        %v5816 = vunpack.c.l.b16 %v5751
        %v5817 = vunpack.c.h.b16 %v5751
        %v5818 = vunpack.c.l.b16 %v5752
        %v5819 = vunpack.c.h.b16 %v5752
        %v5820 = vunpack.c.l.b16 %v5753
        %v5821 = vunpack.c.h.b16 %v5753
        %v5822 = vunpack.c.l.b16 %v5754
        %v5823 = vunpack.c.h.b16 %v5754
        %v5824 = vunpack.c.l.b16 %v5755
        %v5825 = vunpack.c.h.b16 %v5755
        %v5826 = vunpack.c.l.b16 %v5756
        %v5827 = vunpack.c.h.b16 %v5756
        %v5828 = vunpack.c.l.b16 %v5757
        %v5829 = vunpack.c.h.b16 %v5757
        %v5830 = vunpack.c.l.b16 %v5758
        %v5831 = vunpack.c.h.b16 %v5758
        %v5832 = vunpack.c.l.b16 %v5759
        %v5833 = vunpack.c.h.b16 %v5759
        %v5834 = vunpack.c.l.b16 %v5760
        %v5835 = vunpack.c.h.b16 %v5760
        %v5836 = vunpack.c.l.b16 %v5761
        %v5837 = vunpack.c.h.b16 %v5761
        %v5838 = vunpack.c.l.b16 %v5762
        %v5839 = vunpack.c.h.b16 %v5762
        %v5840 = vunpack.c.l.b16 %v5763
        %v5841 = vunpack.c.h.b16 %v5763
        %v5842 = vunpack.c.l.b16 %v5764
        %v5843 = vunpack.c.h.b16 %v5764
        %v5844 = vunpack.c.l.b16 %v5765
        %v5845 = vunpack.c.h.b16 %v5765
        %v5846 = vunpack.c.l.b16 %v5766
        %v5847 = vunpack.c.h.b16 %v5766
        %v5848 = vunpack.c.l.b16 %v5767
        %v5849 = vunpack.c.h.b16 %v5767
        %v5850 = vunpack.c.l.b16 %v5768
        %v5851 = vunpack.c.h.b16 %v5768
        %v5852 = vunpack.c.l.b16 %v5769
        %v5853 = vunpack.c.h.b16 %v5769
        %v5854 = vunpack.c.l.b16 %v5770
        %v5855 = vunpack.c.h.b16 %v5770
        %v5856 = vunpack.c.l.b16 %v5771
        %v5857 = vunpack.c.h.b16 %v5771
        %v5858 = vunpack.c.l.b16 %v5772
        %v5859 = vunpack.c.h.b16 %v5772
        %v5860 = vunpack.c.l.b16 %v5773
        %v5861 = vunpack.c.h.b16 %v5773
        %v5862 = vunpack.c.l.b16 %v5774
        %v5863 = vunpack.c.h.b16 %v5774
        %v5864 = vunpack.c.l.b16 %v5775
        %v5865 = vunpack.c.h.b16 %v5775
        %v5866 = vunpack.c.l.b16 %v5776
        %v5867 = vunpack.c.h.b16 %v5776
        %v5868 = vunpack.c.l.b16 %v5777
        %v5869 = vunpack.c.h.b16 %v5777
        %v5870 = vunpack.c.l.b16 %v5778
        %v5871 = vunpack.c.h.b16 %v5778
        %v5872 = vunpack.c.l.b16 %v5779
        %v5873 = vunpack.c.h.b16 %v5779
        %v5874 = vunpack.c.l.b16 %v5780
        %v5875 = vunpack.c.h.b16 %v5780
        %v5876 = vunpack.c.l.b16 %v5781
        %v5877 = vunpack.c.h.b16 %v5781
        %v5878 = vpack.c.b16 %v5814, %v5814
        %v5879 = vpack.c.b16 %v5815, %v5815
        %v5880 = vpack.c.b16 %v5816, %v5816
        %v5881 = vpack.c.b16 %v5817, %v5817
        %v5882 = vpack.c.b16 %v5818, %v5818
        %v5883 = vpack.c.b16 %v5819, %v5819
        %v5884 = vpack.c.b16 %v5820, %v5820
        %v5885 = vpack.c.b16 %v5821, %v5821
        %v5886 = vpack.c.b16 %v5822, %v5822
        %v5887 = vpack.c.b16 %v5823, %v5823
        %v5888 = vpack.c.b16 %v5824, %v5824
        %v5889 = vpack.c.b16 %v5825, %v5825
        %v5890 = vpack.c.b16 %v5826, %v5826
        %v5891 = vpack.c.b16 %v5827, %v5827
        %v5892 = vpack.c.b16 %v5828, %v5828
        %v5893 = vpack.c.b16 %v5829, %v5829
        %v5894 = vpack.c.b16 %v5830, %v5830
        %v5895 = vpack.c.b16 %v5831, %v5831
        %v5896 = vpack.c.b16 %v5832, %v5832
        %v5897 = vpack.c.b16 %v5833, %v5833
        %v5898 = vpack.c.b16 %v5834, %v5834
        %v5899 = vpack.c.b16 %v5835, %v5835
        %v5900 = vpack.c.b16 %v5836, %v5836
        %v5901 = vpack.c.b16 %v5837, %v5837
        %v5902 = vpack.c.b16 %v5838, %v5838
        %v5903 = vpack.c.b16 %v5839, %v5839
        %v5904 = vpack.c.b16 %v5840, %v5840
        %v5905 = vpack.c.b16 %v5841, %v5841
        %v5906 = vpack.c.b16 %v5842, %v5842
        %v5907 = vpack.c.b16 %v5843, %v5843
        %v5908 = vpack.c.b16 %v5844, %v5844
        %v5909 = vpack.c.b16 %v5845, %v5845
        %v5910 = vpack.c.b16 %v5846, %v5846
        %v5911 = vpack.c.b16 %v5847, %v5847
        %v5912 = vpack.c.b16 %v5848, %v5848
        %v5913 = vpack.c.b16 %v5849, %v5849
        %v5914 = vpack.c.b16 %v5850, %v5850
        %v5915 = vpack.c.b16 %v5851, %v5851
        %v5916 = vpack.c.b16 %v5852, %v5852
        %v5917 = vpack.c.b16 %v5853, %v5853
        %v5918 = vpack.c.b16 %v5854, %v5854
        %v5919 = vpack.c.b16 %v5855, %v5855
        %v5920 = vpack.c.b16 %v5856, %v5856
        %v5921 = vpack.c.b16 %v5857, %v5857
        %v5922 = vpack.c.b16 %v5858, %v5858
        %v5923 = vpack.c.b16 %v5859, %v5859
        %v5924 = vpack.c.b16 %v5860, %v5860
        %v5925 = vpack.c.b16 %v5861, %v5861
        %v5926 = vpack.c.b16 %v5862, %v5862
        %v5927 = vpack.c.b16 %v5863, %v5863
        %v5928 = vpack.c.b16 %v5864, %v5864
        %v5929 = vpack.c.b16 %v5865, %v5865
        %v5930 = vpack.c.b16 %v5866, %v5866
        %v5931 = vpack.c.b16 %v5867, %v5867
        %v5932 = vpack.c.b16 %v5868, %v5868
        %v5933 = vpack.c.b16 %v5869, %v5869
        %v5934 = vpack.c.b16 %v5870, %v5870
        %v5935 = vpack.c.b16 %v5871, %v5871
        %v5936 = vpack.c.b16 %v5872, %v5872
        %v5937 = vpack.c.b16 %v5873, %v5873
        %v5938 = vpack.c.b16 %v5874, %v5874
        %v5939 = vpack.c.b16 %v5875, %v5875
        %v5940 = vpack.c.b16 %v5876, %v5876
        %v5941 = vpack.c.b16 %v5877, %v5877
        %6006 = vst [vmem:[%s276] sm:$0xf] %v5878
        %6007 = vst [vmem:[%s276 + $0x4] sm:$0xf] %v5879
        %6008 = vst [vmem:[%s276 + $0x8] sm:$0xf] %v5880
        %6009 = vst [vmem:[%s276 + $0xc] sm:$0xf] %v5881
        %6010 = vst [vmem:[%s276 + $0x10] sm:$0xf] %v5882
        %6011 = vst [vmem:[%s276 + $0x14] sm:$0xf] %v5883
        %6012 = vst [vmem:[%s276 + $0x18] sm:$0xf] %v5884
        %6013 = vst [vmem:[%s276 + $0x1c] sm:$0xf] %v5885
        %6014 = vst [vmem:[%s276 + $0x20] sm:$0xf] %v5886
        %6015 = vst [vmem:[%s276 + $0x24] sm:$0xf] %v5887
        %6016 = vst [vmem:[%s276 + $0x28] sm:$0xf] %v5888
        %6017 = vst [vmem:[%s276 + $0x2c] sm:$0xf] %v5889
        %6018 = vst [vmem:[%s276 + $0x30] sm:$0xf] %v5890
        %6019 = vst [vmem:[%s276 + $0x34] sm:$0xf] %v5891
        %6020 = vst [vmem:[%s276 + $0x38] sm:$0xf] %v5892
        %6021 = vst [vmem:[%s276 + $0x3c] sm:$0xf] %v5893
        %6022 = vst [vmem:[%s276 + $0x40] sm:$0xf] %v5894
        %6023 = vst [vmem:[%s276 + $0x44] sm:$0xf] %v5895
        %6024 = vst [vmem:[%s276 + $0x48] sm:$0xf] %v5896
        %6025 = vst [vmem:[%s276 + $0x4c] sm:$0xf] %v5897
        %6026 = vst [vmem:[%s276 + $0x50] sm:$0xf] %v5898
        %6027 = vst [vmem:[%s276 + $0x54] sm:$0xf] %v5899
        %6028 = vst [vmem:[%s276 + $0x58] sm:$0xf] %v5900
        %6029 = vst [vmem:[%s276 + $0x5c] sm:$0xf] %v5901
        %6030 = vst [vmem:[%s276 + $0x60] sm:$0xf] %v5902
        %6031 = vst [vmem:[%s276 + $0x64] sm:$0xf] %v5903
        %6032 = vst [vmem:[%s276 + $0x68] sm:$0xf] %v5904
        %6033 = vst [vmem:[%s276 + $0x6c] sm:$0xf] %v5905
        %6034 = vst [vmem:[%s276 + $0x70] sm:$0xf] %v5906
        %6035 = vst [vmem:[%s276 + $0x74] sm:$0xf] %v5907
        %6036 = vst [vmem:[%s276 + $0x78] sm:$0xf] %v5908
        %6037 = vst [vmem:[%s276 + $0x7c] sm:$0xf] %v5909
        %6038 = vst [vmem:[%s276 + $0x80] sm:$0xf] %v5910
        %6039 = vst [vmem:[%s276 + $0x84] sm:$0xf] %v5911
        %6040 = vst [vmem:[%s276 + $0x88] sm:$0xf] %v5912
        %6041 = vst [vmem:[%s276 + $0x8c] sm:$0xf] %v5913
        %6042 = vst [vmem:[%s276 + $0x90] sm:$0xf] %v5914
        %6043 = vst [vmem:[%s276 + $0x94] sm:$0xf] %v5915
        %6044 = vst [vmem:[%s276 + $0x98] sm:$0xf] %v5916
        %6045 = vst [vmem:[%s276 + $0x9c] sm:$0xf] %v5917
        %6046 = vst [vmem:[%s276 + $0xa0] sm:$0xf] %v5918
        %6047 = vst [vmem:[%s276 + $0xa4] sm:$0xf] %v5919
        %6048 = vst [vmem:[%s276 + $0xa8] sm:$0xf] %v5920
        %6049 = vst [vmem:[%s276 + $0xac] sm:$0xf] %v5921
        %6050 = vst [vmem:[%s276 + $0xb0] sm:$0xf] %v5922
        %6051 = vst [vmem:[%s276 + $0xb4] sm:$0xf] %v5923
        %6052 = vst [vmem:[%s276 + $0xb8] sm:$0xf] %v5924
        %6053 = vst [vmem:[%s276 + $0xbc] sm:$0xf] %v5925
        %6054 = vst [vmem:[%s276 + $0xc0] sm:$0xf] %v5926
        %6055 = vst [vmem:[%s276 + $0xc4] sm:$0xf] %v5927
        %6056 = vst [vmem:[%s276 + $0xc8] sm:$0xf] %v5928
        %6057 = vst [vmem:[%s276 + $0xcc] sm:$0xf] %v5929
        %6058 = vst [vmem:[%s276 + $0xd0] sm:$0xf] %v5930
        %6059 = vst [vmem:[%s276 + $0xd4] sm:$0xf] %v5931
        %6060 = vst [vmem:[%s276 + $0xd8] sm:$0xf] %v5932
        %6061 = vst [vmem:[%s276 + $0xdc] sm:$0xf] %v5933
        %6062 = vst [vmem:[%s276 + $0xe0] sm:$0xf] %v5934
        %6063 = vst [vmem:[%s276 + $0xe4] sm:$0xf] %v5935
        %6064 = vst [vmem:[%s276 + $0xe8] sm:$0xf] %v5936
        %6065 = vst [vmem:[%s276 + $0xec] sm:$0xf] %v5937
        %6066 = vst [vmem:[%s276 + $0xf0] sm:$0xf] %v5938
        %6067 = vst [vmem:[%s276 + $0xf4] sm:$0xf] %v5939
        %6068 = vst [vmem:[%s276 + $0xf8] sm:$0xf] %v5940
        %6069 = vst [vmem:[%s276 + $0xfc] sm:$0xf] %v5941
        %s6070 = sand.u32 %s134, 1
        %s6071 = scalar_lea.sflag [#allocation3], %s6070
        %s6072 = sand.u32 %s134, 1
        %s6073 = smul.addr %s6072, 256
        %s6074 = scalar_lea.vmem [#allocation2], %s6073
        %s6075 = sand.u32 %s160, 1
        %s6076 = scalar_lea.sflag [#allocation5], %s6075
        %s6077 = sand.u32 %s160, 1
        %s6078 = smul.addr %s6077, 2
        %s6079 = scalar_lea.vmem [#allocation4], %s6078
        // Predicated region
        $region37: #{tpu_custom_call.1} parent=35 // pred_check
          %p6080 = pneg %p144
        $region38: #{tpu_custom_call.1} parent=35 // pred_check_branch
          %6082 = sbr.rel (%p6080) target = $region40
        $region39: #{tpu_custom_call.1} parent=35 // pred_region
          %s6083 = smul.u32 64, %s23
          %s6085 = ssub.s32 4096, 4096
          %6086 = vsyncadd %s6071, %s6085
          %s6087 = smul.addr %s6083, 64
          %s6088 = scalar_lea.hbm %s4, %s6087
          %s6089 = sshll.u32 %s6074, 4
          %s6090 = int_to_ptr.vmem [resolvable:$true] %s6089
          %6095 = dma.vmem_to_hbm [thread:$0]  %s6090, 4096, %s6088, %s6071, 64, 64, 4
        $region40: #{tpu_custom_call.1} parent=35 // pred_fallthru
          _
        // Predicated region
        $region41: #{tpu_custom_call.1} parent=35 // pred_check
          %p6096 = pneg %p170
        $region42: #{tpu_custom_call.1} parent=35 // pred_check_branch
          %6098 = sbr.rel (%p6096) target = $region44
        $region43: #{tpu_custom_call.1} parent=35 // pred_region
          %s6100 = ssub.s32 32, 32
          %6101 = vsyncadd %s6076, %s6100
          %s6102 = smul.addr %s23, 32
          %s6103 = scalar_lea.hbm %s5, %s6102
          %s6105 = sshll.u32 %s6079, 4
          %s6106 = int_to_ptr.vmem [resolvable:$true] %s6105
          %6108 = dma.vmem_to_hbm [thread:$0]  %s6106, 32, %s6103, %s6076
        $region44: #{tpu_custom_call.1} parent=35 // pred_fallthru
          _
      $region36: #{tpu_custom_call.1} parent=5 // pred_fallthru
        _
      %p6109 = scmp.le.s32.totalorder 2, %s18
      // Predicated region
      $region45: #{tpu_custom_call.1} parent=5 // pred_check
        %p6110 = pneg %p6109
      $region46: #{tpu_custom_call.1} parent=5 // pred_check_branch
        %6112 = sbr.rel (%p6110) target = $region48
      $region47: #{tpu_custom_call.1} parent=5 // pred_region
        %s6113 = ssub.s32 %s18, 2
        // Predicated region
        $region49: #{tpu_custom_call.1} parent=47 // pred_check
          %p6114 = pneg %p150
        $region50: #{tpu_custom_call.1} parent=47 // pred_check_branch
          %6116 = sbr.rel (%p6114) target = $region52
        $region51: #{tpu_custom_call.1} parent=47 // pred_region
          %s6117 = sand.u32 %s135, 1
          %s6118 = scalar_lea.sflag [#allocation3], %s6117
          %s6119 = sand.u32 %s135, 1
          %s6120 = smul.addr %s6119, 256
          %s6121 = scalar_lea.vmem [#allocation2], %s6120
          %6122 = dma.done %s6118, 4096
        $region52: #{tpu_custom_call.1} parent=47 // pred_fallthru
          _
        // Predicated region
        $region53: #{tpu_custom_call.1} parent=47 // pred_check
          %p6123 = pneg %p176
        $region54: #{tpu_custom_call.1} parent=47 // pred_check_branch
          %6125 = sbr.rel (%p6123) target = $region56
        $region55: #{tpu_custom_call.1} parent=47 // pred_region
          %s6126 = sand.u32 %s161, 1
          %s6127 = scalar_lea.sflag [#allocation5], %s6126
          %s6128 = sand.u32 %s161, 1
          %s6129 = smul.addr %s6128, 2
          %s6130 = scalar_lea.vmem [#allocation4], %s6129
          %6131 = dma.done %s6127, 32
        $region56: #{tpu_custom_call.1} parent=47 // pred_fallthru
          _
      $region48: #{tpu_custom_call.1} parent=5 // pred_fallthru
        _
    $region6: #{tpu_custom_call.1} parent=1 // loop_footer
      %s22 = sadd.s32 1, %s18
    $region7: #{tpu_custom_call.1} parent=1 // loop_footer_branch
      %17 = sbr.rel target = $region3
    $region8: #{tpu_custom_call.1} parent=1 // loop_exit
      _
    %6132 = vsyncpa [#allocation3], 1
    %s6133 = scalar_lea.sflag [#allocation3], 1
    %6134 = vsyncpa %s6133, 1
    %6135 = vsyncpa [#allocation5], 1
    %s6136 = scalar_lea.sflag [#allocation5], 1
    %6137 = vsyncpa %s6136, 1

</llo_original>
